<compile_context>
chip_gen: v7x
topology: tpu7x:2x2x1
jax: 0.10.0
libtpu: 0.0.40
codegen_flags: <defaults>
</compile_context>

<pallas_src>
import jax
import jax.numpy as jnp
from jax import lax
from jax.experimental import pallas as pl
from jax.experimental.pallas import tpu as pltpu

# ---- model config (matches the PyTorch module) ------------------------------
INPUT_SIZE = 2
HIDDEN_SIZE = 64
NUM_LAYERS = 2
NUM_CLASSES = 2
B_PAD = 8  # pad batch to a full sublane


# ---- Pallas kernel -----------------------------------------------------------
def lstm_kernel(
    xproj_ref,   # (T, B_PAD, 4H)  precomputed x @ W_ih0 + b0 (layer-0 gates pre-act, input part)
    whh0_ref,    # (H, 4H)
    wih1_ref,    # (H, 4H)
    whh1_ref,    # (H, 4H)
    b1_ref,      # (1, 4H)
    h0_ref,      # (L, B_PAD, H) initial hidden state
    c0_ref,      # (L, B_PAD, H) initial cell state
    out_ref,     # (B_PAD, H)    final top-layer hidden state
):
    H = HIDDEN_SIZE
    T = xproj_ref.shape[0]
    Bp = xproj_ref.shape[1]

    # Hoist weight/bias loads (and the bias sublane-broadcast) out of the loop.
    whh0 = whh0_ref[...]
    wih1 = wih1_ref[...]
    whh1 = whh1_ref[...]
    b1 = jnp.broadcast_to(b1_ref[...], (Bp, 4 * H))

    def gates_to_hc(gates, c_prev):
        i_g = jax.nn.sigmoid(gates[:, 0 * H:1 * H])
        f_g = jax.nn.sigmoid(gates[:, 1 * H:2 * H])
        g_g = jnp.tanh(gates[:, 2 * H:3 * H])
        o_g = jax.nn.sigmoid(gates[:, 3 * H:4 * H])
        c_new = f_g * c_prev + i_g * g_g
        h_new = o_g * jnp.tanh(c_new)
        return h_new, c_new

    def step(t, carry):
        h0c, c0c, h1c, c1c = carry
        # Layer 0: input projection was precomputed; only the recurrent matmul here.
        g0 = xproj_ref[t] + jnp.dot(h0c, whh0, preferred_element_type=jnp.float32)
        h0n, c0n = gates_to_hc(g0, c0c)
        # Layer 1: fused (H, 4H) matmuls for input and recurrent paths.
        g1 = (
            jnp.dot(h0n, wih1, preferred_element_type=jnp.float32)
            + jnp.dot(h1c, whh1, preferred_element_type=jnp.float32)
            + b1
        )
        h1n, c1n = gates_to_hc(g1, c1c)
        return (h0n, c0n, h1n, c1n)

    init = (
        h0_ref[0].astype(jnp.float32),
        c0_ref[0].astype(jnp.float32),
        h0_ref[1].astype(jnp.float32),
        c0_ref[1].astype(jnp.float32),
    )
    final = lax.fori_loop(0, T, step, init, unroll=True)
    out_ref[...] = final[2].astype(out_ref.dtype)  # top-layer hidden at last step


# ---- wrapper -----------------------------------------------------------------
def lstm_forward(x, params, h0, c0):
    """x: (B, T, D_in) float32. Returns (B, NUM_CLASSES) float32."""
    B, T, Din = x.shape
    H = HIDDEN_SIZE
    Bp = B_PAD

    # Time-major, pad batch to a full sublane.
    x_tm = jnp.transpose(x, (1, 0, 2))                       # (T, B, Din)
    x_tm = jnp.pad(x_tm, ((0, 0), (0, Bp - B), (0, 0)))      # (T, Bp, Din)

    # Precompute the layer-0 input projection for all timesteps (cheap, well-shaped,
    # and removes the degenerate K=2 matmul from the serial recurrent path).
    xproj = (
        jnp.einsum("tbd,dg->tbg", x_tm, params["wih0"]) + params["b0"][None, :, :]
    ).astype(jnp.float32)                                    # (T, Bp, 4H)

    # Pad recurrent initial state.
    h0p = jnp.pad(h0, ((0, 0), (0, Bp - B), (0, 0)))
    c0p = jnp.pad(c0, ((0, 0), (0, Bp - B), (0, 0)))

    operands = (
        xproj,
        params["whh0"],
        params["wih1"],
        params["whh1"],
        params["b1"],
        h0p,
        c0p,
    )

    def full_spec(shape):
        n = len(shape)
        return pl.BlockSpec(shape, lambda i, n=n: (0,) * n)

    grid_spec = pltpu.PrefetchScalarGridSpec(
        num_scalar_prefetch=0,
        grid=(1,),
        in_specs=[full_spec(op.shape) for op in operands],
        out_specs=pl.BlockSpec((Bp, H), lambda i: (0, 0)),
    )

    h_last = pl.pallas_call(
        lstm_kernel,
        out_shape=jax.ShapeDtypeStruct((Bp, H), jnp.float32),
        grid_spec=grid_spec,
        compiler_params=pltpu.CompilerParams(
            dimension_semantics=("arbitrary",),
        ),
    )(*operands)

    # Tiny FC head (H=64 -> C=2) in plain XLA, on unpadded rows.
    return h_last[:B] @ params["wfc"] + params["bfc"]


# ---- pure-JAX reference (for verification) ----------------------------------
def lstm_reference(x, params, h0, c0):
    B, T, _ = x.shape
    H = HIDDEN_SIZE
    h = [h0[l] for l in range(NUM_LAYERS)]
    c = [c0[l] for l in range(NUM_LAYERS)]
    wih = [params["wih0"], params["wih1"]]
    whh = [params["whh0"], params["whh1"]]
    b = [params["b0"], params["b1"]]
    for t in range(T):
        inp = x[:, t, :]
        for l in range(NUM_LAYERS):
            g = inp @ wih[l] + h[l] @ whh[l] + b[l]
            i_g = jax.nn.sigmoid(g[:, 0 * H:1 * H])
            f_g = jax.nn.sigmoid(g[:, 1 * H:2 * H])
            g_g = jnp.tanh(g[:, 2 * H:3 * H])
            o_g = jax.nn.sigmoid(g[:, 3 * H:4 * H])
            c[l] = f_g * c[l] + i_g * g_g
            h[l] = o_g * jnp.tanh(c[l])
            inp = h[l]
    return h[-1] @ params["wfc"] + params["bfc"]


# ---- parameter init (deterministic, PyTorch-style U(-1/sqrt(H), 1/sqrt(H))) --
def init_params(key):
    H, Din, C = HIDDEN_SIZE, INPUT_SIZE, NUM_CLASSES
    bound = 1.0 / jnp.sqrt(jnp.float32(H))
    ks = jax.random.split(key, 8)
    u = lambda k, shape: jax.random.uniform(
        k, shape, jnp.float32, minval=-bound, maxval=bound
    )
    return {
        "wih0": u(ks[0], (Din, 4 * H)),   # packed gate-major (i, f, g, o)
        "whh0": u(ks[1], (H, 4 * H)),
        "b0": u(ks[2], (1, 4 * H)),       # = b_ih + b_hh folded together
        "wih1": u(ks[3], (H, 4 * H)),
        "whh1": u(ks[4], (H, 4 * H)),
        "b1": u(ks[5], (1, 4 * H)),
        "wfc": u(ks[6], (H, C)),
        "bfc": u(ks[7], (1, C)),
    }


if __name__ == "__main__":
    B, T = 2, 8
    key = jax.random.PRNGKey(0)
    k_x, k_h, k_c, k_p = jax.random.split(key, 4)

    x = jax.random.normal(k_x, (B, T, INPUT_SIZE), jnp.float32)
    # The PyTorch forward draws h0/c0 ~ N(0,1) each call; we draw them
    # deterministically here.
    h0 = jax.random.normal(k_h, (NUM_LAYERS, B, HIDDEN_SIZE), jnp.float32)
    c0 = jax.random.normal(k_c, (NUM_LAYERS, B, HIDDEN_SIZE), jnp.float32)
    params = init_params(k_p)

    out = lstm_forward(x, params, h0, c0)
    out = jax.block_until_ready(out)

    ref = lstm_reference(x, params, h0, c0)
    assert out.shape == (B, NUM_CLASSES)
    assert jnp.allclose(out, ref, atol=1e-4, rtol=1e-4), (out, ref)

    print("KERNEL_OK")
</pallas_src>

<mosaic_0001>
module attributes {stable_mosaic.version = 11 : i64} {
  func.func @lstm_kernel(%arg0: i32, %arg1: memref<8x8x256xf32, #tpu.memory_space<vmem>>, %arg2: memref<64x256xf32, #tpu.memory_space<vmem>>, %arg3: memref<64x256xf32, #tpu.memory_space<vmem>>, %arg4: memref<64x256xf32, #tpu.memory_space<vmem>>, %arg5: memref<1x256xf32, #tpu.memory_space<vmem>>, %arg6: memref<2x8x64xf32, #tpu.memory_space<vmem>>, %arg7: memref<2x8x64xf32, #tpu.memory_space<vmem>>, %arg8: memref<8x64xf32, #tpu.memory_space<vmem>>) attributes {dimension_semantics = [#tpu.dimension_semantics<arbitrary>], iteration_bounds = array<i64: 1>, scalar_prefetch = 0 : i64, scratch_operands = 0 : i64, tpu.core_type = #tpu.core_type<tc>, window_params = [{pipeline_mode = #tpu.pipeline_mode<synchronous>, transform_indices = @transform_0, window_bounds = array<i64: 8, 8, 256>}, {pipeline_mode = #tpu.pipeline_mode<synchronous>, transform_indices = @transform_1, window_bounds = array<i64: 64, 256>}, {pipeline_mode = #tpu.pipeline_mode<synchronous>, transform_indices = @transform_2, window_bounds = array<i64: 64, 256>}, {pipeline_mode = #tpu.pipeline_mode<synchronous>, transform_indices = @transform_3, window_bounds = array<i64: 64, 256>}, {pipeline_mode = #tpu.pipeline_mode<synchronous>, transform_indices = @transform_4, window_bounds = array<i64: 1, 256>}, {pipeline_mode = #tpu.pipeline_mode<synchronous>, transform_indices = @transform_5, window_bounds = array<i64: 2, 8, 64>}, {pipeline_mode = #tpu.pipeline_mode<synchronous>, transform_indices = @transform_6, window_bounds = array<i64: 2, 8, 64>}, {pipeline_mode = #tpu.pipeline_mode<synchronous>, transform_indices = @transform_7, window_bounds = array<i64: 8, 64>}]} {
    %c0 = arith.constant 0 : index
    %c0_0 = arith.constant 0 : index
    %0 = vector.load %arg2[%c0, %c0_0] : memref<64x256xf32, #tpu.memory_space<vmem>>, vector<64x256xf32>
    %c0_1 = arith.constant 0 : index
    %c0_2 = arith.constant 0 : index
    %1 = vector.load %arg3[%c0_1, %c0_2] : memref<64x256xf32, #tpu.memory_space<vmem>>, vector<64x256xf32>
    %c0_3 = arith.constant 0 : index
    %c0_4 = arith.constant 0 : index
    %2 = vector.load %arg4[%c0_3, %c0_4] : memref<64x256xf32, #tpu.memory_space<vmem>>, vector<64x256xf32>
    %c0_5 = arith.constant 0 : index
    %c0_6 = arith.constant 0 : index
    %3 = vector.load %arg5[%c0_5, %c0_6] : memref<1x256xf32, #tpu.memory_space<vmem>>, vector<1x256xf32>
    %4 = vector.shape_cast %3 : vector<1x256xf32> to vector<1x256xf32>
    %5 = vector.broadcast %4 : vector<1x256xf32> to vector<8x256xf32>
    %c0_7 = arith.constant 0 : index
    %c0_8 = arith.constant 0 : index
    %c0_9 = arith.constant 0 : index
    %6 = vector.load %arg6[%c0_7, %c0_8, %c0_9] : memref<2x8x64xf32, #tpu.memory_space<vmem>>, vector<1x8x64xf32>
    %7 = vector.shape_cast %6 : vector<1x8x64xf32> to vector<8x64xf32>
    %c0_10 = arith.constant 0 : index
    %c0_11 = arith.constant 0 : index
    %c0_12 = arith.constant 0 : index
    %8 = vector.load %arg7[%c0_10, %c0_11, %c0_12] : memref<2x8x64xf32, #tpu.memory_space<vmem>>, vector<1x8x64xf32>
    %9 = vector.shape_cast %8 : vector<1x8x64xf32> to vector<8x64xf32>
    %c1 = arith.constant 1 : index
    %c0_13 = arith.constant 0 : index
    %c0_14 = arith.constant 0 : index
    %10 = vector.load %arg6[%c1, %c0_13, %c0_14] : memref<2x8x64xf32, #tpu.memory_space<vmem>>, vector<1x8x64xf32>
    %11 = vector.shape_cast %10 : vector<1x8x64xf32> to vector<8x64xf32>
    %c1_15 = arith.constant 1 : index
    %c0_16 = arith.constant 0 : index
    %c0_17 = arith.constant 0 : index
    %12 = vector.load %arg7[%c1_15, %c0_16, %c0_17] : memref<2x8x64xf32, #tpu.memory_space<vmem>>, vector<1x8x64xf32>
    %13 = vector.shape_cast %12 : vector<1x8x64xf32> to vector<8x64xf32>
    %c0_i32 = arith.constant 0 : i32
    %14 = arith.index_cast %c0_i32 : i32 to index
    %c0_18 = arith.constant 0 : index
    %c0_19 = arith.constant 0 : index
    %15 = vector.load %arg1[%14, %c0_18, %c0_19] : memref<8x8x256xf32, #tpu.memory_space<vmem>>, vector<1x8x256xf32>
    %16 = vector.shape_cast %15 : vector<1x8x256xf32> to vector<8x256xf32>
    %cst = arith.constant dense<0.000000e+00> : vector<8x256xf32>
    %17 = tpu.matmul %7, %0, %cst {dimension_numbers = #tpu.dot_dimension_numbers<[1], [0], [0], [1], [0, 0, 1, 1], [], []>} : vector<8x64xf32>, vector<64x256xf32>, vector<8x256xf32> -> vector<8x256xf32>
    %18 = arith.addf %16, %17 : vector<8x256xf32>
    %19 = vector.extract_strided_slice %18 {offsets = [0, 0], sizes = [8, 64], strides = [1, 1]} : vector<8x256xf32> to vector<8x64xf32>
    %20 = arith.negf %19 : vector<8x64xf32>
    %21 = math.exp %20 : vector<8x64xf32>
    %cst_20 = arith.constant 1.000000e+00 : f32
    %22 = vector.broadcast %cst_20 : f32 to vector<8x64xf32>
    %23 = arith.addf %22, %21 : vector<8x64xf32>
    %24 = arith.divf %22, %23 : vector<8x64xf32>
    %25 = vector.extract_strided_slice %18 {offsets = [0, 64], sizes = [8, 64], strides = [1, 1]} : vector<8x256xf32> to vector<8x64xf32>
    %26 = arith.negf %25 : vector<8x64xf32>
    %27 = math.exp %26 : vector<8x64xf32>
    %cst_21 = arith.constant 1.000000e+00 : f32
    %28 = vector.broadcast %cst_21 : f32 to vector<8x64xf32>
    %29 = arith.addf %28, %27 : vector<8x64xf32>
    %30 = arith.divf %28, %29 : vector<8x64xf32>
    %31 = vector.extract_strided_slice %18 {offsets = [0, 128], sizes = [8, 64], strides = [1, 1]} : vector<8x256xf32> to vector<8x64xf32>
    %32 = math.tanh %31 : vector<8x64xf32>
    %33 = vector.extract_strided_slice %18 {offsets = [0, 192], sizes = [8, 64], strides = [1, 1]} : vector<8x256xf32> to vector<8x64xf32>
    %34 = arith.negf %33 : vector<8x64xf32>
    %35 = math.exp %34 : vector<8x64xf32>
    %cst_22 = arith.constant 1.000000e+00 : f32
    %36 = vector.broadcast %cst_22 : f32 to vector<8x64xf32>
    %37 = arith.addf %36, %35 : vector<8x64xf32>
    %38 = arith.divf %36, %37 : vector<8x64xf32>
    %39 = arith.mulf %30, %9 : vector<8x64xf32>
    %40 = arith.mulf %24, %32 : vector<8x64xf32>
    %41 = arith.addf %39, %40 : vector<8x64xf32>
    %42 = math.tanh %41 : vector<8x64xf32>
    %43 = arith.mulf %38, %42 : vector<8x64xf32>
    %cst_23 = arith.constant dense<0.000000e+00> : vector<8x256xf32>
    %44 = tpu.matmul %43, %1, %cst_23 {dimension_numbers = #tpu.dot_dimension_numbers<[1], [0], [0], [1], [0, 0, 1, 1], [], []>} : vector<8x64xf32>, vector<64x256xf32>, vector<8x256xf32> -> vector<8x256xf32>
    %cst_24 = arith.constant dense<0.000000e+00> : vector<8x256xf32>
    %45 = tpu.matmul %11, %2, %cst_24 {dimension_numbers = #tpu.dot_dimension_numbers<[1], [0], [0], [1], [0, 0, 1, 1], [], []>} : vector<8x64xf32>, vector<64x256xf32>, vector<8x256xf32> -> vector<8x256xf32>
    %46 = arith.addf %44, %45 : vector<8x256xf32>
    %47 = arith.addf %46, %5 : vector<8x256xf32>
    %48 = vector.extract_strided_slice %47 {offsets = [0, 0], sizes = [8, 64], strides = [1, 1]} : vector<8x256xf32> to vector<8x64xf32>
    %49 = arith.negf %48 : vector<8x64xf32>
    %50 = math.exp %49 : vector<8x64xf32>
    %cst_25 = arith.constant 1.000000e+00 : f32
    %51 = vector.broadcast %cst_25 : f32 to vector<8x64xf32>
    %52 = arith.addf %51, %50 : vector<8x64xf32>
    %53 = arith.divf %51, %52 : vector<8x64xf32>
    %54 = vector.extract_strided_slice %47 {offsets = [0, 64], sizes = [8, 64], strides = [1, 1]} : vector<8x256xf32> to vector<8x64xf32>
    %55 = arith.negf %54 : vector<8x64xf32>
    %56 = math.exp %55 : vector<8x64xf32>
    %cst_26 = arith.constant 1.000000e+00 : f32
    %57 = vector.broadcast %cst_26 : f32 to vector<8x64xf32>
    %58 = arith.addf %57, %56 : vector<8x64xf32>
    %59 = arith.divf %57, %58 : vector<8x64xf32>
    %60 = vector.extract_strided_slice %47 {offsets = [0, 128], sizes = [8, 64], strides = [1, 1]} : vector<8x256xf32> to vector<8x64xf32>
    %61 = math.tanh %60 : vector<8x64xf32>
    %62 = vector.extract_strided_slice %47 {offsets = [0, 192], sizes = [8, 64], strides = [1, 1]} : vector<8x256xf32> to vector<8x64xf32>
    %63 = arith.negf %62 : vector<8x64xf32>
    %64 = math.exp %63 : vector<8x64xf32>
    %cst_27 = arith.constant 1.000000e+00 : f32
    %65 = vector.broadcast %cst_27 : f32 to vector<8x64xf32>
    %66 = arith.addf %65, %64 : vector<8x64xf32>
    %67 = arith.divf %65, %66 : vector<8x64xf32>
    %68 = arith.mulf %59, %13 : vector<8x64xf32>
    %69 = arith.mulf %53, %61 : vector<8x64xf32>
    %70 = arith.addf %68, %69 : vector<8x64xf32>
    %71 = math.tanh %70 : vector<8x64xf32>
    %72 = arith.mulf %67, %71 : vector<8x64xf32>
    %c1_i32 = arith.constant 1 : i32
    %73 = arith.index_cast %c1_i32 : i32 to index
    %c0_28 = arith.constant 0 : index
    %c0_29 = arith.constant 0 : index
    %74 = vector.load %arg1[%73, %c0_28, %c0_29] : memref<8x8x256xf32, #tpu.memory_space<vmem>>, vector<1x8x256xf32>
    %75 = vector.shape_cast %74 : vector<1x8x256xf32> to vector<8x256xf32>
    %cst_30 = arith.constant dense<0.000000e+00> : vector<8x256xf32>
    %76 = tpu.matmul %43, %0, %cst_30 {dimension_numbers = #tpu.dot_dimension_numbers<[1], [0], [0], [1], [0, 0, 1, 1], [], []>} : vector<8x64xf32>, vector<64x256xf32>, vector<8x256xf32> -> vector<8x256xf32>
    %77 = arith.addf %75, %76 : vector<8x256xf32>
    %78 = vector.extract_strided_slice %77 {offsets = [0, 0], sizes = [8, 64], strides = [1, 1]} : vector<8x256xf32> to vector<8x64xf32>
    %79 = arith.negf %78 : vector<8x64xf32>
    %80 = math.exp %79 : vector<8x64xf32>
    %cst_31 = arith.constant 1.000000e+00 : f32
    %81 = vector.broadcast %cst_31 : f32 to vector<8x64xf32>
    %82 = arith.addf %81, %80 : vector<8x64xf32>
    %83 = arith.divf %81, %82 : vector<8x64xf32>
    %84 = vector.extract_strided_slice %77 {offsets = [0, 64], sizes = [8, 64], strides = [1, 1]} : vector<8x256xf32> to vector<8x64xf32>
    %85 = arith.negf %84 : vector<8x64xf32>
    %86 = math.exp %85 : vector<8x64xf32>
    %cst_32 = arith.constant 1.000000e+00 : f32
    %87 = vector.broadcast %cst_32 : f32 to vector<8x64xf32>
    %88 = arith.addf %87, %86 : vector<8x64xf32>
    %89 = arith.divf %87, %88 : vector<8x64xf32>
    %90 = vector.extract_strided_slice %77 {offsets = [0, 128], sizes = [8, 64], strides = [1, 1]} : vector<8x256xf32> to vector<8x64xf32>
    %91 = math.tanh %90 : vector<8x64xf32>
    %92 = vector.extract_strided_slice %77 {offsets = [0, 192], sizes = [8, 64], strides = [1, 1]} : vector<8x256xf32> to vector<8x64xf32>
    %93 = arith.negf %92 : vector<8x64xf32>
    %94 = math.exp %93 : vector<8x64xf32>
    %cst_33 = arith.constant 1.000000e+00 : f32
    %95 = vector.broadcast %cst_33 : f32 to vector<8x64xf32>
    %96 = arith.addf %95, %94 : vector<8x64xf32>
    %97 = arith.divf %95, %96 : vector<8x64xf32>
    %98 = arith.mulf %89, %41 : vector<8x64xf32>
    %99 = arith.mulf %83, %91 : vector<8x64xf32>
    %100 = arith.addf %98, %99 : vector<8x64xf32>
    %101 = math.tanh %100 : vector<8x64xf32>
    %102 = arith.mulf %97, %101 : vector<8x64xf32>
    %cst_34 = arith.constant dense<0.000000e+00> : vector<8x256xf32>
    %103 = tpu.matmul %102, %1, %cst_34 {dimension_numbers = #tpu.dot_dimension_numbers<[1], [0], [0], [1], [0, 0, 1, 1], [], []>} : vector<8x64xf32>, vector<64x256xf32>, vector<8x256xf32> -> vector<8x256xf32>
    %cst_35 = arith.constant dense<0.000000e+00> : vector<8x256xf32>
    %104 = tpu.matmul %72, %2, %cst_35 {dimension_numbers = #tpu.dot_dimension_numbers<[1], [0], [0], [1], [0, 0, 1, 1], [], []>} : vector<8x64xf32>, vector<64x256xf32>, vector<8x256xf32> -> vector<8x256xf32>
    %105 = arith.addf %103, %104 : vector<8x256xf32>
    %106 = arith.addf %105, %5 : vector<8x256xf32>
    %107 = vector.extract_strided_slice %106 {offsets = [0, 0], sizes = [8, 64], strides = [1, 1]} : vector<8x256xf32> to vector<8x64xf32>
    %108 = arith.negf %107 : vector<8x64xf32>
    %109 = math.exp %108 : vector<8x64xf32>
    %cst_36 = arith.constant 1.000000e+00 : f32
    %110 = vector.broadcast %cst_36 : f32 to vector<8x64xf32>
    %111 = arith.addf %110, %109 : vector<8x64xf32>
    %112 = arith.divf %110, %111 : vector<8x64xf32>
    %113 = vector.extract_strided_slice %106 {offsets = [0, 64], sizes = [8, 64], strides = [1, 1]} : vector<8x256xf32> to vector<8x64xf32>
    %114 = arith.negf %113 : vector<8x64xf32>
    %115 = math.exp %114 : vector<8x64xf32>
    %cst_37 = arith.constant 1.000000e+00 : f32
    %116 = vector.broadcast %cst_37 : f32 to vector<8x64xf32>
    %117 = arith.addf %116, %115 : vector<8x64xf32>
    %118 = arith.divf %116, %117 : vector<8x64xf32>
    %119 = vector.extract_strided_slice %106 {offsets = [0, 128], sizes = [8, 64], strides = [1, 1]} : vector<8x256xf32> to vector<8x64xf32>
    %120 = math.tanh %119 : vector<8x64xf32>
    %121 = vector.extract_strided_slice %106 {offsets = [0, 192], sizes = [8, 64], strides = [1, 1]} : vector<8x256xf32> to vector<8x64xf32>
    %122 = arith.negf %121 : vector<8x64xf32>
    %123 = math.exp %122 : vector<8x64xf32>
    %cst_38 = arith.constant 1.000000e+00 : f32
    %124 = vector.broadcast %cst_38 : f32 to vector<8x64xf32>
    %125 = arith.addf %124, %123 : vector<8x64xf32>
    %126 = arith.divf %124, %125 : vector<8x64xf32>
    %127 = arith.mulf %118, %70 : vector<8x64xf32>
    %128 = arith.mulf %112, %120 : vector<8x64xf32>
    %129 = arith.addf %127, %128 : vector<8x64xf32>
    %130 = math.tanh %129 : vector<8x64xf32>
    %131 = arith.mulf %126, %130 : vector<8x64xf32>
    %c2_i32 = arith.constant 2 : i32
    %132 = arith.index_cast %c2_i32 : i32 to index
    %c0_39 = arith.constant 0 : index
    %c0_40 = arith.constant 0 : index
    %133 = vector.load %arg1[%132, %c0_39, %c0_40] : memref<8x8x256xf32, #tpu.memory_space<vmem>>, vector<1x8x256xf32>
    %134 = vector.shape_cast %133 : vector<1x8x256xf32> to vector<8x256xf32>
    %cst_41 = arith.constant dense<0.000000e+00> : vector<8x256xf32>
    %135 = tpu.matmul %102, %0, %cst_41 {dimension_numbers = #tpu.dot_dimension_numbers<[1], [0], [0], [1], [0, 0, 1, 1], [], []>} : vector<8x64xf32>, vector<64x256xf32>, vector<8x256xf32> -> vector<8x256xf32>
    %136 = arith.addf %134, %135 : vector<8x256xf32>
    %137 = vector.extract_strided_slice %136 {offsets = [0, 0], sizes = [8, 64], strides = [1, 1]} : vector<8x256xf32> to vector<8x64xf32>
    %138 = arith.negf %137 : vector<8x64xf32>
    %139 = math.exp %138 : vector<8x64xf32>
    %cst_42 = arith.constant 1.000000e+00 : f32
    %140 = vector.broadcast %cst_42 : f32 to vector<8x64xf32>
    %141 = arith.addf %140, %139 : vector<8x64xf32>
    %142 = arith.divf %140, %141 : vector<8x64xf32>
    %143 = vector.extract_strided_slice %136 {offsets = [0, 64], sizes = [8, 64], strides = [1, 1]} : vector<8x256xf32> to vector<8x64xf32>
    %144 = arith.negf %143 : vector<8x64xf32>
    %145 = math.exp %144 : vector<8x64xf32>
    %cst_43 = arith.constant 1.000000e+00 : f32
    %146 = vector.broadcast %cst_43 : f32 to vector<8x64xf32>
    %147 = arith.addf %146, %145 : vector<8x64xf32>
    %148 = arith.divf %146, %147 : vector<8x64xf32>
    %149 = vector.extract_strided_slice %136 {offsets = [0, 128], sizes = [8, 64], strides = [1, 1]} : vector<8x256xf32> to vector<8x64xf32>
    %150 = math.tanh %149 : vector<8x64xf32>
    %151 = vector.extract_strided_slice %136 {offsets = [0, 192], sizes = [8, 64], strides = [1, 1]} : vector<8x256xf32> to vector<8x64xf32>
    %152 = arith.negf %151 : vector<8x64xf32>
    %153 = math.exp %152 : vector<8x64xf32>
    %cst_44 = arith.constant 1.000000e+00 : f32
    %154 = vector.broadcast %cst_44 : f32 to vector<8x64xf32>
    %155 = arith.addf %154, %153 : vector<8x64xf32>
    %156 = arith.divf %154, %155 : vector<8x64xf32>
    %157 = arith.mulf %148, %100 : vector<8x64xf32>
    %158 = arith.mulf %142, %150 : vector<8x64xf32>
    %159 = arith.addf %157, %158 : vector<8x64xf32>
    %160 = math.tanh %159 : vector<8x64xf32>
    %161 = arith.mulf %156, %160 : vector<8x64xf32>
    %cst_45 = arith.constant dense<0.000000e+00> : vector<8x256xf32>
    %162 = tpu.matmul %161, %1, %cst_45 {dimension_numbers = #tpu.dot_dimension_numbers<[1], [0], [0], [1], [0, 0, 1, 1], [], []>} : vector<8x64xf32>, vector<64x256xf32>, vector<8x256xf32> -> vector<8x256xf32>
    %cst_46 = arith.constant dense<0.000000e+00> : vector<8x256xf32>
    %163 = tpu.matmul %131, %2, %cst_46 {dimension_numbers = #tpu.dot_dimension_numbers<[1], [0], [0], [1], [0, 0, 1, 1], [], []>} : vector<8x64xf32>, vector<64x256xf32>, vector<8x256xf32> -> vector<8x256xf32>
    %164 = arith.addf %162, %163 : vector<8x256xf32>
    %165 = arith.addf %164, %5 : vector<8x256xf32>
    %166 = vector.extract_strided_slice %165 {offsets = [0, 0], sizes = [8, 64], strides = [1, 1]} : vector<8x256xf32> to vector<8x64xf32>
    %167 = arith.negf %166 : vector<8x64xf32>
    %168 = math.exp %167 : vector<8x64xf32>
    %cst_47 = arith.constant 1.000000e+00 : f32
    %169 = vector.broadcast %cst_47 : f32 to vector<8x64xf32>
    %170 = arith.addf %169, %168 : vector<8x64xf32>
    %171 = arith.divf %169, %170 : vector<8x64xf32>
    %172 = vector.extract_strided_slice %165 {offsets = [0, 64], sizes = [8, 64], strides = [1, 1]} : vector<8x256xf32> to vector<8x64xf32>
    %173 = arith.negf %172 : vector<8x64xf32>
    %174 = math.exp %173 : vector<8x64xf32>
    %cst_48 = arith.constant 1.000000e+00 : f32
    %175 = vector.broadcast %cst_48 : f32 to vector<8x64xf32>
    %176 = arith.addf %175, %174 : vector<8x64xf32>
    %177 = arith.divf %175, %176 : vector<8x64xf32>
    %178 = vector.extract_strided_slice %165 {offsets = [0, 128], sizes = [8, 64], strides = [1, 1]} : vector<8x256xf32> to vector<8x64xf32>
    %179 = math.tanh %178 : vector<8x64xf32>
    %180 = vector.extract_strided_slice %165 {offsets = [0, 192], sizes = [8, 64], strides = [1, 1]} : vector<8x256xf32> to vector<8x64xf32>
    %181 = arith.negf %180 : vector<8x64xf32>
    %182 = math.exp %181 : vector<8x64xf32>
    %cst_49 = arith.constant 1.000000e+00 : f32
    %183 = vector.broadcast %cst_49 : f32 to vector<8x64xf32>
    %184 = arith.addf %183, %182 : vector<8x64xf32>
    %185 = arith.divf %183, %184 : vector<8x64xf32>
    %186 = arith.mulf %177, %129 : vector<8x64xf32>
    %187 = arith.mulf %171, %179 : vector<8x64xf32>
    %188 = arith.addf %186, %187 : vector<8x64xf32>
    %189 = math.tanh %188 : vector<8x64xf32>
    %190 = arith.mulf %185, %189 : vector<8x64xf32>
    %c3_i32 = arith.constant 3 : i32
    %191 = arith.index_cast %c3_i32 : i32 to index
    %c0_50 = arith.constant 0 : index
    %c0_51 = arith.constant 0 : index
    %192 = vector.load %arg1[%191, %c0_50, %c0_51] : memref<8x8x256xf32, #tpu.memory_space<vmem>>, vector<1x8x256xf32>
    %193 = vector.shape_cast %192 : vector<1x8x256xf32> to vector<8x256xf32>
    %cst_52 = arith.constant dense<0.000000e+00> : vector<8x256xf32>
    %194 = tpu.matmul %161, %0, %cst_52 {dimension_numbers = #tpu.dot_dimension_numbers<[1], [0], [0], [1], [0, 0, 1, 1], [], []>} : vector<8x64xf32>, vector<64x256xf32>, vector<8x256xf32> -> vector<8x256xf32>
    %195 = arith.addf %193, %194 : vector<8x256xf32>
    %196 = vector.extract_strided_slice %195 {offsets = [0, 0], sizes = [8, 64], strides = [1, 1]} : vector<8x256xf32> to vector<8x64xf32>
    %197 = arith.negf %196 : vector<8x64xf32>
    %198 = math.exp %197 : vector<8x64xf32>
    %cst_53 = arith.constant 1.000000e+00 : f32
    %199 = vector.broadcast %cst_53 : f32 to vector<8x64xf32>
    %200 = arith.addf %199, %198 : vector<8x64xf32>
    %201 = arith.divf %199, %200 : vector<8x64xf32>
    %202 = vector.extract_strided_slice %195 {offsets = [0, 64], sizes = [8, 64], strides = [1, 1]} : vector<8x256xf32> to vector<8x64xf32>
    %203 = arith.negf %202 : vector<8x64xf32>
    %204 = math.exp %203 : vector<8x64xf32>
    %cst_54 = arith.constant 1.000000e+00 : f32
    %205 = vector.broadcast %cst_54 : f32 to vector<8x64xf32>
    %206 = arith.addf %205, %204 : vector<8x64xf32>
    %207 = arith.divf %205, %206 : vector<8x64xf32>
    %208 = vector.extract_strided_slice %195 {offsets = [0, 128], sizes = [8, 64], strides = [1, 1]} : vector<8x256xf32> to vector<8x64xf32>
    %209 = math.tanh %208 : vector<8x64xf32>
    %210 = vector.extract_strided_slice %195 {offsets = [0, 192], sizes = [8, 64], strides = [1, 1]} : vector<8x256xf32> to vector<8x64xf32>
    %211 = arith.negf %210 : vector<8x64xf32>
    %212 = math.exp %211 : vector<8x64xf32>
    %cst_55 = arith.constant 1.000000e+00 : f32
    %213 = vector.broadcast %cst_55 : f32 to vector<8x64xf32>
    %214 = arith.addf %213, %212 : vector<8x64xf32>
    %215 = arith.divf %213, %214 : vector<8x64xf32>
    %216 = arith.mulf %207, %159 : vector<8x64xf32>
    %217 = arith.mulf %201, %209 : vector<8x64xf32>
    %218 = arith.addf %216, %217 : vector<8x64xf32>
    %219 = math.tanh %218 : vector<8x64xf32>
    %220 = arith.mulf %215, %219 : vector<8x64xf32>
    %cst_56 = arith.constant dense<0.000000e+00> : vector<8x256xf32>
    %221 = tpu.matmul %220, %1, %cst_56 {dimension_numbers = #tpu.dot_dimension_numbers<[1], [0], [0], [1], [0, 0, 1, 1], [], []>} : vector<8x64xf32>, vector<64x256xf32>, vector<8x256xf32> -> vector<8x256xf32>
    %cst_57 = arith.constant dense<0.000000e+00> : vector<8x256xf32>
    %222 = tpu.matmul %190, %2, %cst_57 {dimension_numbers = #tpu.dot_dimension_numbers<[1], [0], [0], [1], [0, 0, 1, 1], [], []>} : vector<8x64xf32>, vector<64x256xf32>, vector<8x256xf32> -> vector<8x256xf32>
    %223 = arith.addf %221, %222 : vector<8x256xf32>
    %224 = arith.addf %223, %5 : vector<8x256xf32>
    %225 = vector.extract_strided_slice %224 {offsets = [0, 0], sizes = [8, 64], strides = [1, 1]} : vector<8x256xf32> to vector<8x64xf32>
    %226 = arith.negf %225 : vector<8x64xf32>
    %227 = math.exp %226 : vector<8x64xf32>
    %cst_58 = arith.constant 1.000000e+00 : f32
    %228 = vector.broadcast %cst_58 : f32 to vector<8x64xf32>
    %229 = arith.addf %228, %227 : vector<8x64xf32>
    %230 = arith.divf %228, %229 : vector<8x64xf32>
    %231 = vector.extract_strided_slice %224 {offsets = [0, 64], sizes = [8, 64], strides = [1, 1]} : vector<8x256xf32> to vector<8x64xf32>
    %232 = arith.negf %231 : vector<8x64xf32>
    %233 = math.exp %232 : vector<8x64xf32>
    %cst_59 = arith.constant 1.000000e+00 : f32
    %234 = vector.broadcast %cst_59 : f32 to vector<8x64xf32>
    %235 = arith.addf %234, %233 : vector<8x64xf32>
    %236 = arith.divf %234, %235 : vector<8x64xf32>
    %237 = vector.extract_strided_slice %224 {offsets = [0, 128], sizes = [8, 64], strides = [1, 1]} : vector<8x256xf32> to vector<8x64xf32>
    %238 = math.tanh %237 : vector<8x64xf32>
    %239 = vector.extract_strided_slice %224 {offsets = [0, 192], sizes = [8, 64], strides = [1, 1]} : vector<8x256xf32> to vector<8x64xf32>
    %240 = arith.negf %239 : vector<8x64xf32>
    %241 = math.exp %240 : vector<8x64xf32>
    %cst_60 = arith.constant 1.000000e+00 : f32
    %242 = vector.broadcast %cst_60 : f32 to vector<8x64xf32>
    %243 = arith.addf %242, %241 : vector<8x64xf32>
    %244 = arith.divf %242, %243 : vector<8x64xf32>
    %245 = arith.mulf %236, %188 : vector<8x64xf32>
    %246 = arith.mulf %230, %238 : vector<8x64xf32>
    %247 = arith.addf %245, %246 : vector<8x64xf32>
    %248 = math.tanh %247 : vector<8x64xf32>
    %249 = arith.mulf %244, %248 : vector<8x64xf32>
    %c4_i32 = arith.constant 4 : i32
    %250 = arith.index_cast %c4_i32 : i32 to index
    %c0_61 = arith.constant 0 : index
    %c0_62 = arith.constant 0 : index
    %251 = vector.load %arg1[%250, %c0_61, %c0_62] : memref<8x8x256xf32, #tpu.memory_space<vmem>>, vector<1x8x256xf32>
    %252 = vector.shape_cast %251 : vector<1x8x256xf32> to vector<8x256xf32>
    %cst_63 = arith.constant dense<0.000000e+00> : vector<8x256xf32>
    %253 = tpu.matmul %220, %0, %cst_63 {dimension_numbers = #tpu.dot_dimension_numbers<[1], [0], [0], [1], [0, 0, 1, 1], [], []>} : vector<8x64xf32>, vector<64x256xf32>, vector<8x256xf32> -> vector<8x256xf32>
    %254 = arith.addf %252, %253 : vector<8x256xf32>
    %255 = vector.extract_strided_slice %254 {offsets = [0, 0], sizes = [8, 64], strides = [1, 1]} : vector<8x256xf32> to vector<8x64xf32>
    %256 = arith.negf %255 : vector<8x64xf32>
    %257 = math.exp %256 : vector<8x64xf32>
    %cst_64 = arith.constant 1.000000e+00 : f32
    %258 = vector.broadcast %cst_64 : f32 to vector<8x64xf32>
    %259 = arith.addf %258, %257 : vector<8x64xf32>
    %260 = arith.divf %258, %259 : vector<8x64xf32>
    %261 = vector.extract_strided_slice %254 {offsets = [0, 64], sizes = [8, 64], strides = [1, 1]} : vector<8x256xf32> to vector<8x64xf32>
    %262 = arith.negf %261 : vector<8x64xf32>
    %263 = math.exp %262 : vector<8x64xf32>
    %cst_65 = arith.constant 1.000000e+00 : f32
    %264 = vector.broadcast %cst_65 : f32 to vector<8x64xf32>
    %265 = arith.addf %264, %263 : vector<8x64xf32>
    %266 = arith.divf %264, %265 : vector<8x64xf32>
    %267 = vector.extract_strided_slice %254 {offsets = [0, 128], sizes = [8, 64], strides = [1, 1]} : vector<8x256xf32> to vector<8x64xf32>
    %268 = math.tanh %267 : vector<8x64xf32>
    %269 = vector.extract_strided_slice %254 {offsets = [0, 192], sizes = [8, 64], strides = [1, 1]} : vector<8x256xf32> to vector<8x64xf32>
    %270 = arith.negf %269 : vector<8x64xf32>
    %271 = math.exp %270 : vector<8x64xf32>
    %cst_66 = arith.constant 1.000000e+00 : f32
    %272 = vector.broadcast %cst_66 : f32 to vector<8x64xf32>
    %273 = arith.addf %272, %271 : vector<8x64xf32>
    %274 = arith.divf %272, %273 : vector<8x64xf32>
    %275 = arith.mulf %266, %218 : vector<8x64xf32>
    %276 = arith.mulf %260, %268 : vector<8x64xf32>
    %277 = arith.addf %275, %276 : vector<8x64xf32>
    %278 = math.tanh %277 : vector<8x64xf32>
    %279 = arith.mulf %274, %278 : vector<8x64xf32>
    %cst_67 = arith.constant dense<0.000000e+00> : vector<8x256xf32>
    %280 = tpu.matmul %279, %1, %cst_67 {dimension_numbers = #tpu.dot_dimension_numbers<[1], [0], [0], [1], [0, 0, 1, 1], [], []>} : vector<8x64xf32>, vector<64x256xf32>, vector<8x256xf32> -> vector<8x256xf32>
    %cst_68 = arith.constant dense<0.000000e+00> : vector<8x256xf32>
    %281 = tpu.matmul %249, %2, %cst_68 {dimension_numbers = #tpu.dot_dimension_numbers<[1], [0], [0], [1], [0, 0, 1, 1], [], []>} : vector<8x64xf32>, vector<64x256xf32>, vector<8x256xf32> -> vector<8x256xf32>
    %282 = arith.addf %280, %281 : vector<8x256xf32>
    %283 = arith.addf %282, %5 : vector<8x256xf32>
    %284 = vector.extract_strided_slice %283 {offsets = [0, 0], sizes = [8, 64], strides = [1, 1]} : vector<8x256xf32> to vector<8x64xf32>
    %285 = arith.negf %284 : vector<8x64xf32>
    %286 = math.exp %285 : vector<8x64xf32>
    %cst_69 = arith.constant 1.000000e+00 : f32
    %287 = vector.broadcast %cst_69 : f32 to vector<8x64xf32>
    %288 = arith.addf %287, %286 : vector<8x64xf32>
    %289 = arith.divf %287, %288 : vector<8x64xf32>
    %290 = vector.extract_strided_slice %283 {offsets = [0, 64], sizes = [8, 64], strides = [1, 1]} : vector<8x256xf32> to vector<8x64xf32>
    %291 = arith.negf %290 : vector<8x64xf32>
    %292 = math.exp %291 : vector<8x64xf32>
    %cst_70 = arith.constant 1.000000e+00 : f32
    %293 = vector.broadcast %cst_70 : f32 to vector<8x64xf32>
    %294 = arith.addf %293, %292 : vector<8x64xf32>
    %295 = arith.divf %293, %294 : vector<8x64xf32>
    %296 = vector.extract_strided_slice %283 {offsets = [0, 128], sizes = [8, 64], strides = [1, 1]} : vector<8x256xf32> to vector<8x64xf32>
    %297 = math.tanh %296 : vector<8x64xf32>
    %298 = vector.extract_strided_slice %283 {offsets = [0, 192], sizes = [8, 64], strides = [1, 1]} : vector<8x256xf32> to vector<8x64xf32>
    %299 = arith.negf %298 : vector<8x64xf32>
    %300 = math.exp %299 : vector<8x64xf32>
    %cst_71 = arith.constant 1.000000e+00 : f32
    %301 = vector.broadcast %cst_71 : f32 to vector<8x64xf32>
    %302 = arith.addf %301, %300 : vector<8x64xf32>
    %303 = arith.divf %301, %302 : vector<8x64xf32>
    %304 = arith.mulf %295, %247 : vector<8x64xf32>
    %305 = arith.mulf %289, %297 : vector<8x64xf32>
    %306 = arith.addf %304, %305 : vector<8x64xf32>
    %307 = math.tanh %306 : vector<8x64xf32>
    %308 = arith.mulf %303, %307 : vector<8x64xf32>
    %c5_i32 = arith.constant 5 : i32
    %309 = arith.index_cast %c5_i32 : i32 to index
    %c0_72 = arith.constant 0 : index
    %c0_73 = arith.constant 0 : index
    %310 = vector.load %arg1[%309, %c0_72, %c0_73] : memref<8x8x256xf32, #tpu.memory_space<vmem>>, vector<1x8x256xf32>
    %311 = vector.shape_cast %310 : vector<1x8x256xf32> to vector<8x256xf32>
    %cst_74 = arith.constant dense<0.000000e+00> : vector<8x256xf32>
    %312 = tpu.matmul %279, %0, %cst_74 {dimension_numbers = #tpu.dot_dimension_numbers<[1], [0], [0], [1], [0, 0, 1, 1], [], []>} : vector<8x64xf32>, vector<64x256xf32>, vector<8x256xf32> -> vector<8x256xf32>
    %313 = arith.addf %311, %312 : vector<8x256xf32>
    %314 = vector.extract_strided_slice %313 {offsets = [0, 0], sizes = [8, 64], strides = [1, 1]} : vector<8x256xf32> to vector<8x64xf32>
    %315 = arith.negf %314 : vector<8x64xf32>
    %316 = math.exp %315 : vector<8x64xf32>
    %cst_75 = arith.constant 1.000000e+00 : f32
    %317 = vector.broadcast %cst_75 : f32 to vector<8x64xf32>
    %318 = arith.addf %317, %316 : vector<8x64xf32>
    %319 = arith.divf %317, %318 : vector<8x64xf32>
    %320 = vector.extract_strided_slice %313 {offsets = [0, 64], sizes = [8, 64], strides = [1, 1]} : vector<8x256xf32> to vector<8x64xf32>
    %321 = arith.negf %320 : vector<8x64xf32>
    %322 = math.exp %321 : vector<8x64xf32>
    %cst_76 = arith.constant 1.000000e+00 : f32
    %323 = vector.broadcast %cst_76 : f32 to vector<8x64xf32>
    %324 = arith.addf %323, %322 : vector<8x64xf32>
    %325 = arith.divf %323, %324 : vector<8x64xf32>
    %326 = vector.extract_strided_slice %313 {offsets = [0, 128], sizes = [8, 64], strides = [1, 1]} : vector<8x256xf32> to vector<8x64xf32>
    %327 = math.tanh %326 : vector<8x64xf32>
    %328 = vector.extract_strided_slice %313 {offsets = [0, 192], sizes = [8, 64], strides = [1, 1]} : vector<8x256xf32> to vector<8x64xf32>
    %329 = arith.negf %328 : vector<8x64xf32>
    %330 = math.exp %329 : vector<8x64xf32>
    %cst_77 = arith.constant 1.000000e+00 : f32
    %331 = vector.broadcast %cst_77 : f32 to vector<8x64xf32>
    %332 = arith.addf %331, %330 : vector<8x64xf32>
    %333 = arith.divf %331, %332 : vector<8x64xf32>
    %334 = arith.mulf %325, %277 : vector<8x64xf32>
    %335 = arith.mulf %319, %327 : vector<8x64xf32>
    %336 = arith.addf %334, %335 : vector<8x64xf32>
    %337 = math.tanh %336 : vector<8x64xf32>
    %338 = arith.mulf %333, %337 : vector<8x64xf32>
    %cst_78 = arith.constant dense<0.000000e+00> : vector<8x256xf32>
    %339 = tpu.matmul %338, %1, %cst_78 {dimension_numbers = #tpu.dot_dimension_numbers<[1], [0], [0], [1], [0, 0, 1, 1], [], []>} : vector<8x64xf32>, vector<64x256xf32>, vector<8x256xf32> -> vector<8x256xf32>
    %cst_79 = arith.constant dense<0.000000e+00> : vector<8x256xf32>
    %340 = tpu.matmul %308, %2, %cst_79 {dimension_numbers = #tpu.dot_dimension_numbers<[1], [0], [0], [1], [0, 0, 1, 1], [], []>} : vector<8x64xf32>, vector<64x256xf32>, vector<8x256xf32> -> vector<8x256xf32>
    %341 = arith.addf %339, %340 : vector<8x256xf32>
    %342 = arith.addf %341, %5 : vector<8x256xf32>
    %343 = vector.extract_strided_slice %342 {offsets = [0, 0], sizes = [8, 64], strides = [1, 1]} : vector<8x256xf32> to vector<8x64xf32>
    %344 = arith.negf %343 : vector<8x64xf32>
    %345 = math.exp %344 : vector<8x64xf32>
    %cst_80 = arith.constant 1.000000e+00 : f32
    %346 = vector.broadcast %cst_80 : f32 to vector<8x64xf32>
    %347 = arith.addf %346, %345 : vector<8x64xf32>
    %348 = arith.divf %346, %347 : vector<8x64xf32>
    %349 = vector.extract_strided_slice %342 {offsets = [0, 64], sizes = [8, 64], strides = [1, 1]} : vector<8x256xf32> to vector<8x64xf32>
    %350 = arith.negf %349 : vector<8x64xf32>
    %351 = math.exp %350 : vector<8x64xf32>
    %cst_81 = arith.constant 1.000000e+00 : f32
    %352 = vector.broadcast %cst_81 : f32 to vector<8x64xf32>
    %353 = arith.addf %352, %351 : vector<8x64xf32>
    %354 = arith.divf %352, %353 : vector<8x64xf32>
    %355 = vector.extract_strided_slice %342 {offsets = [0, 128], sizes = [8, 64], strides = [1, 1]} : vector<8x256xf32> to vector<8x64xf32>
    %356 = math.tanh %355 : vector<8x64xf32>
    %357 = vector.extract_strided_slice %342 {offsets = [0, 192], sizes = [8, 64], strides = [1, 1]} : vector<8x256xf32> to vector<8x64xf32>
    %358 = arith.negf %357 : vector<8x64xf32>
    %359 = math.exp %358 : vector<8x64xf32>
    %cst_82 = arith.constant 1.000000e+00 : f32
    %360 = vector.broadcast %cst_82 : f32 to vector<8x64xf32>
    %361 = arith.addf %360, %359 : vector<8x64xf32>
    %362 = arith.divf %360, %361 : vector<8x64xf32>
    %363 = arith.mulf %354, %306 : vector<8x64xf32>
    %364 = arith.mulf %348, %356 : vector<8x64xf32>
    %365 = arith.addf %363, %364 : vector<8x64xf32>
    %366 = math.tanh %365 : vector<8x64xf32>
    %367 = arith.mulf %362, %366 : vector<8x64xf32>
    %c6_i32 = arith.constant 6 : i32
    %368 = arith.index_cast %c6_i32 : i32 to index
    %c0_83 = arith.constant 0 : index
    %c0_84 = arith.constant 0 : index
    %369 = vector.load %arg1[%368, %c0_83, %c0_84] : memref<8x8x256xf32, #tpu.memory_space<vmem>>, vector<1x8x256xf32>
    %370 = vector.shape_cast %369 : vector<1x8x256xf32> to vector<8x256xf32>
    %cst_85 = arith.constant dense<0.000000e+00> : vector<8x256xf32>
    %371 = tpu.matmul %338, %0, %cst_85 {dimension_numbers = #tpu.dot_dimension_numbers<[1], [0], [0], [1], [0, 0, 1, 1], [], []>} : vector<8x64xf32>, vector<64x256xf32>, vector<8x256xf32> -> vector<8x256xf32>
    %372 = arith.addf %370, %371 : vector<8x256xf32>
    %373 = vector.extract_strided_slice %372 {offsets = [0, 0], sizes = [8, 64], strides = [1, 1]} : vector<8x256xf32> to vector<8x64xf32>
    %374 = arith.negf %373 : vector<8x64xf32>
    %375 = math.exp %374 : vector<8x64xf32>
    %cst_86 = arith.constant 1.000000e+00 : f32
    %376 = vector.broadcast %cst_86 : f32 to vector<8x64xf32>
    %377 = arith.addf %376, %375 : vector<8x64xf32>
    %378 = arith.divf %376, %377 : vector<8x64xf32>
    %379 = vector.extract_strided_slice %372 {offsets = [0, 64], sizes = [8, 64], strides = [1, 1]} : vector<8x256xf32> to vector<8x64xf32>
    %380 = arith.negf %379 : vector<8x64xf32>
    %381 = math.exp %380 : vector<8x64xf32>
    %cst_87 = arith.constant 1.000000e+00 : f32
    %382 = vector.broadcast %cst_87 : f32 to vector<8x64xf32>
    %383 = arith.addf %382, %381 : vector<8x64xf32>
    %384 = arith.divf %382, %383 : vector<8x64xf32>
    %385 = vector.extract_strided_slice %372 {offsets = [0, 128], sizes = [8, 64], strides = [1, 1]} : vector<8x256xf32> to vector<8x64xf32>
    %386 = math.tanh %385 : vector<8x64xf32>
    %387 = vector.extract_strided_slice %372 {offsets = [0, 192], sizes = [8, 64], strides = [1, 1]} : vector<8x256xf32> to vector<8x64xf32>
    %388 = arith.negf %387 : vector<8x64xf32>
    %389 = math.exp %388 : vector<8x64xf32>
    %cst_88 = arith.constant 1.000000e+00 : f32
    %390 = vector.broadcast %cst_88 : f32 to vector<8x64xf32>
    %391 = arith.addf %390, %389 : vector<8x64xf32>
    %392 = arith.divf %390, %391 : vector<8x64xf32>
    %393 = arith.mulf %384, %336 : vector<8x64xf32>
    %394 = arith.mulf %378, %386 : vector<8x64xf32>
    %395 = arith.addf %393, %394 : vector<8x64xf32>
    %396 = math.tanh %395 : vector<8x64xf32>
    %397 = arith.mulf %392, %396 : vector<8x64xf32>
    %cst_89 = arith.constant dense<0.000000e+00> : vector<8x256xf32>
    %398 = tpu.matmul %397, %1, %cst_89 {dimension_numbers = #tpu.dot_dimension_numbers<[1], [0], [0], [1], [0, 0, 1, 1], [], []>} : vector<8x64xf32>, vector<64x256xf32>, vector<8x256xf32> -> vector<8x256xf32>
    %cst_90 = arith.constant dense<0.000000e+00> : vector<8x256xf32>
    %399 = tpu.matmul %367, %2, %cst_90 {dimension_numbers = #tpu.dot_dimension_numbers<[1], [0], [0], [1], [0, 0, 1, 1], [], []>} : vector<8x64xf32>, vector<64x256xf32>, vector<8x256xf32> -> vector<8x256xf32>
    %400 = arith.addf %398, %399 : vector<8x256xf32>
    %401 = arith.addf %400, %5 : vector<8x256xf32>
    %402 = vector.extract_strided_slice %401 {offsets = [0, 0], sizes = [8, 64], strides = [1, 1]} : vector<8x256xf32> to vector<8x64xf32>
    %403 = arith.negf %402 : vector<8x64xf32>
    %404 = math.exp %403 : vector<8x64xf32>
    %cst_91 = arith.constant 1.000000e+00 : f32
    %405 = vector.broadcast %cst_91 : f32 to vector<8x64xf32>
    %406 = arith.addf %405, %404 : vector<8x64xf32>
    %407 = arith.divf %405, %406 : vector<8x64xf32>
    %408 = vector.extract_strided_slice %401 {offsets = [0, 64], sizes = [8, 64], strides = [1, 1]} : vector<8x256xf32> to vector<8x64xf32>
    %409 = arith.negf %408 : vector<8x64xf32>
    %410 = math.exp %409 : vector<8x64xf32>
    %cst_92 = arith.constant 1.000000e+00 : f32
    %411 = vector.broadcast %cst_92 : f32 to vector<8x64xf32>
    %412 = arith.addf %411, %410 : vector<8x64xf32>
    %413 = arith.divf %411, %412 : vector<8x64xf32>
    %414 = vector.extract_strided_slice %401 {offsets = [0, 128], sizes = [8, 64], strides = [1, 1]} : vector<8x256xf32> to vector<8x64xf32>
    %415 = math.tanh %414 : vector<8x64xf32>
    %416 = vector.extract_strided_slice %401 {offsets = [0, 192], sizes = [8, 64], strides = [1, 1]} : vector<8x256xf32> to vector<8x64xf32>
    %417 = arith.negf %416 : vector<8x64xf32>
    %418 = math.exp %417 : vector<8x64xf32>
    %cst_93 = arith.constant 1.000000e+00 : f32
    %419 = vector.broadcast %cst_93 : f32 to vector<8x64xf32>
    %420 = arith.addf %419, %418 : vector<8x64xf32>
    %421 = arith.divf %419, %420 : vector<8x64xf32>
    %422 = arith.mulf %413, %365 : vector<8x64xf32>
    %423 = arith.mulf %407, %415 : vector<8x64xf32>
    %424 = arith.addf %422, %423 : vector<8x64xf32>
    %425 = math.tanh %424 : vector<8x64xf32>
    %426 = arith.mulf %421, %425 : vector<8x64xf32>
    %c7_i32 = arith.constant 7 : i32
    %427 = arith.index_cast %c7_i32 : i32 to index
    %c0_94 = arith.constant 0 : index
    %c0_95 = arith.constant 0 : index
    %428 = vector.load %arg1[%427, %c0_94, %c0_95] : memref<8x8x256xf32, #tpu.memory_space<vmem>>, vector<1x8x256xf32>
    %429 = vector.shape_cast %428 : vector<1x8x256xf32> to vector<8x256xf32>
    %cst_96 = arith.constant dense<0.000000e+00> : vector<8x256xf32>
    %430 = tpu.matmul %397, %0, %cst_96 {dimension_numbers = #tpu.dot_dimension_numbers<[1], [0], [0], [1], [0, 0, 1, 1], [], []>} : vector<8x64xf32>, vector<64x256xf32>, vector<8x256xf32> -> vector<8x256xf32>
    %431 = arith.addf %429, %430 : vector<8x256xf32>
    %432 = vector.extract_strided_slice %431 {offsets = [0, 0], sizes = [8, 64], strides = [1, 1]} : vector<8x256xf32> to vector<8x64xf32>
    %433 = arith.negf %432 : vector<8x64xf32>
    %434 = math.exp %433 : vector<8x64xf32>
    %cst_97 = arith.constant 1.000000e+00 : f32
    %435 = vector.broadcast %cst_97 : f32 to vector<8x64xf32>
    %436 = arith.addf %435, %434 : vector<8x64xf32>
    %437 = arith.divf %435, %436 : vector<8x64xf32>
    %438 = vector.extract_strided_slice %431 {offsets = [0, 64], sizes = [8, 64], strides = [1, 1]} : vector<8x256xf32> to vector<8x64xf32>
    %439 = arith.negf %438 : vector<8x64xf32>
    %440 = math.exp %439 : vector<8x64xf32>
    %cst_98 = arith.constant 1.000000e+00 : f32
    %441 = vector.broadcast %cst_98 : f32 to vector<8x64xf32>
    %442 = arith.addf %441, %440 : vector<8x64xf32>
    %443 = arith.divf %441, %442 : vector<8x64xf32>
    %444 = vector.extract_strided_slice %431 {offsets = [0, 128], sizes = [8, 64], strides = [1, 1]} : vector<8x256xf32> to vector<8x64xf32>
    %445 = math.tanh %444 : vector<8x64xf32>
    %446 = vector.extract_strided_slice %431 {offsets = [0, 192], sizes = [8, 64], strides = [1, 1]} : vector<8x256xf32> to vector<8x64xf32>
    %447 = arith.negf %446 : vector<8x64xf32>
    %448 = math.exp %447 : vector<8x64xf32>
    %cst_99 = arith.constant 1.000000e+00 : f32
    %449 = vector.broadcast %cst_99 : f32 to vector<8x64xf32>
    %450 = arith.addf %449, %448 : vector<8x64xf32>
    %451 = arith.divf %449, %450 : vector<8x64xf32>
    %452 = arith.mulf %443, %395 : vector<8x64xf32>
    %453 = arith.mulf %437, %445 : vector<8x64xf32>
    %454 = arith.addf %452, %453 : vector<8x64xf32>
    %455 = math.tanh %454 : vector<8x64xf32>
    %456 = arith.mulf %451, %455 : vector<8x64xf32>
    %cst_100 = arith.constant dense<0.000000e+00> : vector<8x256xf32>
    %457 = tpu.matmul %456, %1, %cst_100 {dimension_numbers = #tpu.dot_dimension_numbers<[1], [0], [0], [1], [0, 0, 1, 1], [], []>} : vector<8x64xf32>, vector<64x256xf32>, vector<8x256xf32> -> vector<8x256xf32>
    %cst_101 = arith.constant dense<0.000000e+00> : vector<8x256xf32>
    %458 = tpu.matmul %426, %2, %cst_101 {dimension_numbers = #tpu.dot_dimension_numbers<[1], [0], [0], [1], [0, 0, 1, 1], [], []>} : vector<8x64xf32>, vector<64x256xf32>, vector<8x256xf32> -> vector<8x256xf32>
    %459 = arith.addf %457, %458 : vector<8x256xf32>
    %460 = arith.addf %459, %5 : vector<8x256xf32>
    %461 = vector.extract_strided_slice %460 {offsets = [0, 0], sizes = [8, 64], strides = [1, 1]} : vector<8x256xf32> to vector<8x64xf32>
    %462 = arith.negf %461 : vector<8x64xf32>
    %463 = math.exp %462 : vector<8x64xf32>
    %cst_102 = arith.constant 1.000000e+00 : f32
    %464 = vector.broadcast %cst_102 : f32 to vector<8x64xf32>
    %465 = arith.addf %464, %463 : vector<8x64xf32>
    %466 = arith.divf %464, %465 : vector<8x64xf32>
    %467 = vector.extract_strided_slice %460 {offsets = [0, 64], sizes = [8, 64], strides = [1, 1]} : vector<8x256xf32> to vector<8x64xf32>
    %468 = arith.negf %467 : vector<8x64xf32>
    %469 = math.exp %468 : vector<8x64xf32>
    %cst_103 = arith.constant 1.000000e+00 : f32
    %470 = vector.broadcast %cst_103 : f32 to vector<8x64xf32>
    %471 = arith.addf %470, %469 : vector<8x64xf32>
    %472 = arith.divf %470, %471 : vector<8x64xf32>
    %473 = vector.extract_strided_slice %460 {offsets = [0, 128], sizes = [8, 64], strides = [1, 1]} : vector<8x256xf32> to vector<8x64xf32>
    %474 = math.tanh %473 : vector<8x64xf32>
    %475 = vector.extract_strided_slice %460 {offsets = [0, 192], sizes = [8, 64], strides = [1, 1]} : vector<8x256xf32> to vector<8x64xf32>
    %476 = arith.negf %475 : vector<8x64xf32>
    %477 = math.exp %476 : vector<8x64xf32>
    %cst_104 = arith.constant 1.000000e+00 : f32
    %478 = vector.broadcast %cst_104 : f32 to vector<8x64xf32>
    %479 = arith.addf %478, %477 : vector<8x64xf32>
    %480 = arith.divf %478, %479 : vector<8x64xf32>
    %481 = arith.mulf %472, %424 : vector<8x64xf32>
    %482 = arith.mulf %466, %474 : vector<8x64xf32>
    %483 = arith.addf %481, %482 : vector<8x64xf32>
    %484 = math.tanh %483 : vector<8x64xf32>
    %485 = arith.mulf %480, %484 : vector<8x64xf32>
    %c8_i32 = arith.constant 8 : i32
    %c0_105 = arith.constant 0 : index
    %c0_106 = arith.constant 0 : index
    %486 = vector.load %arg8[%c0_105, %c0_106] : memref<8x64xf32, #tpu.memory_space<vmem>>, vector<8x64xf32>
    tpu.vector_store %arg8[%c0_105, %c0_106], %485 {strides = array<i32>} : memref<8x64xf32, #tpu.memory_space<vmem>>, vector<8x64xf32>,
    return
  }
  func.func @transform_0(%arg0: i32) -> (i32, i32, i32) {
    %c0_i32 = arith.constant 0 : i32
    %c0_i32_0 = arith.constant 0 : i32
    %c0_i32_1 = arith.constant 0 : i32
    %c0_i32_2 = arith.constant 0 : i32
    return %c0_i32, %c0_i32_0, %c0_i32_1 : i32, i32, i32
  }
  func.func @transform_1(%arg0: i32) -> (i32, i32) {
    %c0_i32 = arith.constant 0 : i32
    %c0_i32_0 = arith.constant 0 : i32
    %c0_i32_1 = arith.constant 0 : i32
    return %c0_i32, %c0_i32_0 : i32, i32
  }
  func.func @transform_2(%arg0: i32) -> (i32, i32) {
    %c0_i32 = arith.constant 0 : i32
    %c0_i32_0 = arith.constant 0 : i32
    %c0_i32_1 = arith.constant 0 : i32
    return %c0_i32, %c0_i32_0 : i32, i32
  }
  func.func @transform_3(%arg0: i32) -> (i32, i32) {
    %c0_i32 = arith.constant 0 : i32
    %c0_i32_0 = arith.constant 0 : i32
    %c0_i32_1 = arith.constant 0 : i32
    return %c0_i32, %c0_i32_0 : i32, i32
  }
  func.func @transform_4(%arg0: i32) -> (i32, i32) {
    %c0_i32 = arith.constant 0 : i32
    %c0_i32_0 = arith.constant 0 : i32
    %c0_i32_1 = arith.constant 0 : i32
    return %c0_i32, %c0_i32_0 : i32, i32
  }
  func.func @transform_5(%arg0: i32) -> (i32, i32, i32) {
    %c0_i32 = arith.constant 0 : i32
    %c0_i32_0 = arith.constant 0 : i32
    %c0_i32_1 = arith.constant 0 : i32
    %c0_i32_2 = arith.constant 0 : i32
    return %c0_i32, %c0_i32_0, %c0_i32_1 : i32, i32, i32
  }
  func.func @transform_6(%arg0: i32) -> (i32, i32, i32) {
    %c0_i32 = arith.constant 0 : i32
    %c0_i32_0 = arith.constant 0 : i32
    %c0_i32_1 = arith.constant 0 : i32
    %c0_i32_2 = arith.constant 0 : i32
    return %c0_i32, %c0_i32_0, %c0_i32_1 : i32, i32, i32
  }
  func.func @transform_7(%arg0: i32) -> (i32, i32) {
    %c0_i32 = arith.constant 0 : i32
    %c0_i32_0 = arith.constant 0 : i32
    %c0_i32_1 = arith.constant 0 : i32
    return %c0_i32, %c0_i32_0 : i32, i32
  }
}

</mosaic_0001>

<llo_original>
// kernel: tpu_custom_call.1
$region0: #{tpu_custom_call.1}
  #allocation0 [shape = 'u32[]', space=smem, size = 0x4, offset = 0x4, fixed_abs, tag = 'smem constant byte address 0x4 - core index']
  #allocation1 [shape = 'u32[144,128]{1,0:T(1,128)}', space=vmem, size = 0x12000, scoped, tag = 'internal scratch']
  %s0 = inlined_call_operand.hbm [shape: f32[8,8,256], index: 0, kind: input, shape index: {}]
  %s1 = inlined_call_operand.hbm [shape: f32[64,256], index: 1, kind: input, shape index: {}]
  %s2 = inlined_call_operand.hbm [shape: f32[64,256], index: 2, kind: input, shape index: {}]
  %s3 = inlined_call_operand.hbm [shape: f32[64,256], index: 3, kind: input, shape index: {}]
  %s4 = inlined_call_operand.vmem [shape: f32[1,256], index: 4, kind: input, shape index: {}]
  %s5 = inlined_call_operand.vmem [shape: f32[2,8,64], index: 5, kind: input, shape index: {}]
  %s6 = inlined_call_operand.hbm [shape: f32[2,8,64], index: 6, kind: input, shape index: {}]
  %s7 = inlined_call_operand.hbm [shape: f32[8,64], index: 7, kind: output, shape index: {}]
  %s8 = sld [smem:[#allocation0]]
  $region58: #{tpu_custom_call.1} parent=0
    _
  %s10 = ssub.s32 1, %s8
  %s11 = scalar_select 0, %s10, %s8
  $region1: #{tpu_custom_call.1} parent=0
    #allocation2 [shape = 'u8[65536]{0}', space=vmem, size = 0x10000, scoped, tag = 'input window, operand 0, single buffered']
    #allocation3 [shape = 's32[1]{0}', space=sflag, size = 0x4, scoped, tag = 'scoped memory for tpu_custom_call.1']
    #allocation4 [shape = 's32[1]{0}', space=sflag, size = 0x4, scoped, tag = 'scoped memory for tpu_custom_call.1']
    #allocation5 [shape = 'u8[65536]{0}', space=vmem, size = 0x10000, scoped, tag = 'input window, operand 1, single buffered']
    #allocation6 [shape = 's32[1]{0}', space=sflag, size = 0x4, scoped, tag = 'scoped memory for tpu_custom_call.1']
    #allocation7 [shape = 'u8[65536]{0}', space=vmem, size = 0x10000, scoped, tag = 'input window, operand 2, single buffered']
    #allocation8 [shape = 'u8[65536]{0}', space=vmem, size = 0x10000, scoped, tag = 'input window, operand 3, single buffered']
    #allocation9 [shape = 's32[1]{0}', space=sflag, size = 0x4, scoped, tag = 'scoped memory for tpu_custom_call.1']
    #allocation10 [shape = 'u8[8192]{0}', space=vmem, size = 0x2000, scoped, tag = 'input window, operand 6, single buffered']
    #allocation11 [shape = 'u8[4096]{0}', space=vmem, size = 0x1000, scoped, tag = 'output window, operand 0, single buffered']
    %12 = vsyncpa [#allocation3], 0
    %13 = vsyncpa [#allocation6], 0
    %14 = vsyncpa [#allocation9], 0
    %15 = vsyncpa [#allocation4], 0
    // Predicated region
    $region2: #{tpu_custom_call.1} parent=1 // pred_check
      _
    $region3: #{tpu_custom_call.1} parent=1 // pred_check_branch
      %17 = sbr.rel (0) target = $region5
    $region4: #{tpu_custom_call.1} parent=1 // pred_region
      %s19 = ssub.s32 2048, 2048
      %20 = vsyncadd [#allocation3], %s19
      %s21 = sshll.u32 [#allocation2], 4
      %s22 = int_to_ptr.vmem [resolvable:$true] %s21
      %27 = dma.hbm_to_vmem [thread:$0]  %s0, 2048, %s22, [#allocation3], 256, 256, 16
    $region5: #{tpu_custom_call.1} parent=1 // pred_fallthru
      _
    // Predicated region
    $region6: #{tpu_custom_call.1} parent=1 // pred_check
      _
    $region7: #{tpu_custom_call.1} parent=1 // pred_check_branch
      %29 = sbr.rel (0) target = $region9
    $region8: #{tpu_custom_call.1} parent=1 // pred_region
      %s31 = ssub.s32 2048, 2048
      %32 = vsyncadd [#allocation6], %s31
      %s33 = sshll.u32 [#allocation5], 4
      %s34 = int_to_ptr.vmem [resolvable:$true] %s33
      %39 = dma.hbm_to_vmem [thread:$0]  %s1, 2048, %s34, [#allocation6], 256, 256, 16
    $region9: #{tpu_custom_call.1} parent=1 // pred_fallthru
      _
    // Predicated region
    $region10: #{tpu_custom_call.1} parent=1 // pred_check
      _
    $region11: #{tpu_custom_call.1} parent=1 // pred_check_branch
      %41 = sbr.rel (0) target = $region13
    $region12: #{tpu_custom_call.1} parent=1 // pred_region
      %s43 = ssub.s32 2048, 2048
      %44 = vsyncadd [#allocation6], %s43
      %s45 = sshll.u32 [#allocation7], 4
      %s46 = int_to_ptr.vmem [resolvable:$true] %s45
      %51 = dma.hbm_to_vmem [thread:$0]  %s2, 2048, %s46, [#allocation6], 256, 256, 16
    $region13: #{tpu_custom_call.1} parent=1 // pred_fallthru
      _
    // Predicated region
    $region14: #{tpu_custom_call.1} parent=1 // pred_check
      _
    $region15: #{tpu_custom_call.1} parent=1 // pred_check_branch
      %53 = sbr.rel (0) target = $region17
    $region16: #{tpu_custom_call.1} parent=1 // pred_region
      %s55 = ssub.s32 2048, 2048
      %56 = vsyncadd [#allocation9], %s55
      %s57 = sshll.u32 [#allocation8], 4
      %s58 = int_to_ptr.vmem [resolvable:$true] %s57
      %63 = dma.hbm_to_vmem [thread:$0]  %s3, 2048, %s58, [#allocation9], 256, 256, 16
    $region17: #{tpu_custom_call.1} parent=1 // pred_fallthru
      _
    // Predicated region
    $region18: #{tpu_custom_call.1} parent=1 // pred_check
      _
    $region19: #{tpu_custom_call.1} parent=1 // pred_check_branch
      %65 = sbr.rel (0) target = $region21
    $region20: #{tpu_custom_call.1} parent=1 // pred_region
      _
    $region21: #{tpu_custom_call.1} parent=1 // pred_fallthru
      _
    // Predicated region
    $region22: #{tpu_custom_call.1} parent=1 // pred_check
      _
    $region23: #{tpu_custom_call.1} parent=1 // pred_check_branch
      %67 = sbr.rel (0) target = $region25
    $region24: #{tpu_custom_call.1} parent=1 // pred_region
      _
    $region25: #{tpu_custom_call.1} parent=1 // pred_fallthru
      _
    // Predicated region
    $region26: #{tpu_custom_call.1} parent=1 // pred_check
      _
    $region27: #{tpu_custom_call.1} parent=1 // pred_check_branch
      %69 = sbr.rel (0) target = $region29
    $region28: #{tpu_custom_call.1} parent=1 // pred_region
      %s71 = ssub.s32 256, 256
      %72 = vsyncadd [#allocation9], %s71
      %s73 = sshll.u32 [#allocation10], 4
      %s74 = int_to_ptr.vmem [resolvable:$true] %s73
      %79 = dma.hbm_to_vmem [thread:$0]  %s6, 256, %s74, [#allocation9], 128, 128, 8
    $region29: #{tpu_custom_call.1} parent=1 // pred_fallthru
      _
    // Predicated region
    $region30: #{tpu_custom_call.1} parent=1 // pred_check
      _
    $region31: #{tpu_custom_call.1} parent=1 // pred_check_branch
      %81 = sbr.rel (0) target = $region33
    $region32: #{tpu_custom_call.1} parent=1 // pred_region
      %82 = dma.done [#allocation3], 2048
    $region33: #{tpu_custom_call.1} parent=1 // pred_fallthru
      _
    // Predicated region
    $region34: #{tpu_custom_call.1} parent=1 // pred_check
      _
    $region35: #{tpu_custom_call.1} parent=1 // pred_check_branch
      %84 = sbr.rel (0) target = $region37
    $region36: #{tpu_custom_call.1} parent=1 // pred_region
      %85 = dma.done [#allocation6], 2048
    $region37: #{tpu_custom_call.1} parent=1 // pred_fallthru
      _
    // Predicated region
    $region38: #{tpu_custom_call.1} parent=1 // pred_check
      _
    $region39: #{tpu_custom_call.1} parent=1 // pred_check_branch
      %87 = sbr.rel (0) target = $region41
    $region40: #{tpu_custom_call.1} parent=1 // pred_region
      %88 = dma.done [#allocation6], 2048
    $region41: #{tpu_custom_call.1} parent=1 // pred_fallthru
      _
    // Predicated region
    $region42: #{tpu_custom_call.1} parent=1 // pred_check
      _
    $region43: #{tpu_custom_call.1} parent=1 // pred_check_branch
      %90 = sbr.rel (0) target = $region45
    $region44: #{tpu_custom_call.1} parent=1 // pred_region
      %91 = dma.done [#allocation9], 2048
    $region45: #{tpu_custom_call.1} parent=1 // pred_fallthru
      _
    // Predicated region
    $region46: #{tpu_custom_call.1} parent=1 // pred_check
      _
    $region47: #{tpu_custom_call.1} parent=1 // pred_check_branch
      %93 = sbr.rel (0) target = $region49
    $region48: #{tpu_custom_call.1} parent=1 // pred_region
      %94 = dma.done [#allocation9], 256
    $region49: #{tpu_custom_call.1} parent=1 // pred_fallthru
      _
    %v95 = vld [vmem:[#allocation5] sm:$0xff]
    %v96 = vld [vmem:[#allocation5 + $0x8] sm:$0xff]
    %v97 = vld [vmem:[#allocation5 + $0x10] sm:$0xff]
    %v98 = vld [vmem:[#allocation5 + $0x18] sm:$0xff]
    %v99 = vld [vmem:[#allocation5 + $0x20] sm:$0xff]
    %v100 = vld [vmem:[#allocation5 + $0x28] sm:$0xff]
    %v101 = vld [vmem:[#allocation5 + $0x30] sm:$0xff]
    %v102 = vld [vmem:[#allocation5 + $0x38] sm:$0xff]
    %v103 = vld [vmem:[#allocation5 + $0x40] sm:$0xff]
    %v104 = vld [vmem:[#allocation5 + $0x48] sm:$0xff]
    %v105 = vld [vmem:[#allocation5 + $0x50] sm:$0xff]
    %v106 = vld [vmem:[#allocation5 + $0x58] sm:$0xff]
    %v107 = vld [vmem:[#allocation5 + $0x60] sm:$0xff]
    %v108 = vld [vmem:[#allocation5 + $0x68] sm:$0xff]
    %v109 = vld [vmem:[#allocation5 + $0x70] sm:$0xff]
    %v110 = vld [vmem:[#allocation5 + $0x78] sm:$0xff]
    %v111 = vld [vmem:[#allocation7] sm:$0xff]
    %v112 = vld [vmem:[#allocation7 + $0x8] sm:$0xff]
    %v113 = vld [vmem:[#allocation7 + $0x10] sm:$0xff]
    %v114 = vld [vmem:[#allocation7 + $0x18] sm:$0xff]
    %v115 = vld [vmem:[#allocation7 + $0x20] sm:$0xff]
    %v116 = vld [vmem:[#allocation7 + $0x28] sm:$0xff]
    %v117 = vld [vmem:[#allocation7 + $0x30] sm:$0xff]
    %v118 = vld [vmem:[#allocation7 + $0x38] sm:$0xff]
    %v119 = vld [vmem:[#allocation7 + $0x40] sm:$0xff]
    %v120 = vld [vmem:[#allocation7 + $0x48] sm:$0xff]
    %v121 = vld [vmem:[#allocation7 + $0x50] sm:$0xff]
    %v122 = vld [vmem:[#allocation7 + $0x58] sm:$0xff]
    %v123 = vld [vmem:[#allocation7 + $0x60] sm:$0xff]
    %v124 = vld [vmem:[#allocation7 + $0x68] sm:$0xff]
    %v125 = vld [vmem:[#allocation7 + $0x70] sm:$0xff]
    %v126 = vld [vmem:[#allocation7 + $0x78] sm:$0xff]
    %v127 = vld [vmem:[#allocation8] sm:$0xff]
    %v128 = vld [vmem:[#allocation8 + $0x8] sm:$0xff]
    %v129 = vld [vmem:[#allocation8 + $0x10] sm:$0xff]
    %v130 = vld [vmem:[#allocation8 + $0x18] sm:$0xff]
    %v131 = vld [vmem:[#allocation8 + $0x20] sm:$0xff]
    %v132 = vld [vmem:[#allocation8 + $0x28] sm:$0xff]
    %v133 = vld [vmem:[#allocation8 + $0x30] sm:$0xff]
    %v134 = vld [vmem:[#allocation8 + $0x38] sm:$0xff]
    %v135 = vld [vmem:[#allocation8 + $0x40] sm:$0xff]
    %v136 = vld [vmem:[#allocation8 + $0x48] sm:$0xff]
    %v137 = vld [vmem:[#allocation8 + $0x50] sm:$0xff]
    %v138 = vld [vmem:[#allocation8 + $0x58] sm:$0xff]
    %v139 = vld [vmem:[#allocation8 + $0x60] sm:$0xff]
    %v140 = vld [vmem:[#allocation8 + $0x68] sm:$0xff]
    %v141 = vld [vmem:[#allocation8 + $0x70] sm:$0xff]
    %v142 = vld [vmem:[#allocation8 + $0x78] sm:$0xff]
    %v143 = vld [vmem:[%s4] sm:$0x3]
    %v145 = vlaneseq
    %v146 = vshrl.u32 %v145, 7
    %v147 = vsub.s32 0, %v146
    %v148 = vrot.slane %v143, %v147
    %v149 = vlaneseq
    %v150 = vshrl.u32 %v149, 7
    %v151 = vsub.s32 1, %v150
    %v152 = vrot.slane %v143, %v151
    %v155 = vld [vmem:[%s5] sm:$0xff]
    %v156 = vld [vmem:[#allocation10] sm:$0xff]
    %s157 = scalar_lea.vmem %s5, 8
    %v158 = vld [vmem:[%s157] sm:$0xff]
    %s159 = scalar_lea.vmem [#allocation10], 8
    %v160 = vld [vmem:[%s159] sm:$0xff]
    %v161 = vld [vmem:[#allocation2] sm:$0xff]
    %v162 = vld [vmem:[#allocation2 + $0x8] sm:$0xff]
    %vm163 = vcmask 523264
    %v165 = vsel %vm163, %v155, 0
    %167 = vmatprep.subr.mxu0 %v96
    %168 = vmatpush1.msra.mxu0 %v95
    %169 = vmatprep.subr.mxu0 %v98
    %170 = vmatpush1.msra.mxu0 %v97
    %171 = vmatprep.subr.mxu0 %v100
    %172 = vmatpush1.msra.mxu0 %v99
    %173 = vmatprep.subr.mxu0 %v102
    %174 = vmatpush1.msra.mxu0 %v101
    %175 = vmatprep.subr.mxu0 %v104
    %176 = vmatpush1.msra.mxu0 %v103
    %177 = vmatprep.subr.mxu0 %v106
    %178 = vmatpush1.msra.mxu0 %v105
    %179 = vmatprep.subr.mxu0 %v108
    %180 = vmatpush1.msra.mxu0 %v107
    %181 = vmatprep.subr.mxu0 %v110
    %182 = vmatpush1.msra.mxu0 %v109
    %183 = vmatprep.subr.mxu0 0.0
    %184 = vmatpush1.msra.mxu0 0.0
    %185 = vmatprep.subr.mxu0 0.0
    %186 = vmatpush1.msra.mxu0 0.0
    %187 = vmatprep.subr.mxu0 0.0
    %188 = vmatpush1.msra.mxu0 0.0
    %189 = vmatprep.subr.mxu0 0.0
    %190 = vmatpush1.msra.mxu0 0.0
    %191 = vmatprep.subr.mxu0 0.0
    %192 = vmatpush1.msra.mxu0 0.0
    %193 = vmatprep.subr.mxu0 0.0
    %194 = vmatpush1.msra.mxu0 0.0
    %195 = vmatprep.subr.mxu0 0.0
    %196 = vmatpush1.msra.mxu0 0.0
    %197 = vmatprep.subr.mxu0 0.0
    %198 = vmatpush1.msra.mxu0 0.0
    %199 = vmatprep.subr.mxu0 0.0
    %200 = vmatpush1.msra.mxu0 0.0
    %201 = vmatprep.subr.mxu0 0.0
    %202 = vmatpush1.msra.mxu0 0.0
    %203 = vmatprep.subr.mxu0 0.0
    %204 = vmatpush1.msra.mxu0 0.0
    %205 = vmatprep.subr.mxu0 0.0
    %206 = vmatpush1.msra.mxu0 0.0
    %207 = vmatprep.subr.mxu0 0.0
    %208 = vmatpush1.msra.mxu0 0.0
    %209 = vmatprep.subr.mxu0 0.0
    %210 = vmatpush1.msra.mxu0 0.0
    %211 = vmatprep.subr.mxu0 0.0
    %212 = vmatpush1.msra.mxu0 0.0
    %213 = vmatprep.subr.mxu0 0.0
    %214 = vmatpush1.msra.mxu0 0.0
    %215 = vmatprep.subr.mxu0 0.0
    %216 = vmatpush1.msra.mxu0 0.0
    %217 = vmatprep.subr.mxu0 0.0
    %218 = vmatpush1.msra.mxu0 0.0
    %219 = vmatprep.subr.mxu0 0.0
    %220 = vmatpush1.msra.mxu0 0.0
    %221 = vmatprep.subr.mxu0 0.0
    %222 = vmatpush1.msra.mxu0 0.0
    %223 = vmatprep.subr.mxu0 0.0
    %224 = vmatpush1.msra.mxu0 0.0
    %225 = vmatprep.subr.mxu0 0.0
    %226 = vmatpush1.msra.mxu0 0.0
    %227 = vmatprep.subr.mxu0 0.0
    %228 = vmatpush1.msra.mxu0 0.0
    %229 = vmatprep.subr.mxu0 0.0
    %230 = vmatpush1.msra.mxu0 0.0
    %231 = vmatprep.mubr.f32.mxu0 0.0
    %232 = vmatmul.mubr.f32.gmra.mrb[0].mxu0 %v165
    %v233 = vpop.f32.mrb[0].mxu0
    %v234 = vadd.f32 0.0, %v233
    %v235 = vpop.f32.mrb[0].mxu0
    %v236 = vadd.f32 0.0, %v235
    %237 = vdwg.mxu0
    %v238 = vadd.f32 %v161, %v234
    %v239 = vadd.f32 %v162, %v236
    %v240 = vxor.u32 %v238, 2147483648
    %v241 = vmul.f32 %v240, 1.442695
    %v242 = vpow.pop %v241
    %v243 = vadd.f32 %v242, 1.0
    %v244 = vrcp.pop %v243
    %v245 = vmul.f32 1.0, %v244
    %v246 = vtanh.pop %v239
    %v247 = vxor.u32 %v239, 2147483648
    %v248 = vmul.f32 %v247, 1.442695
    %v249 = vpow.pop %v248
    %v250 = vadd.f32 %v249, 1.0
    %v251 = vrcp.pop %v250
    %v252 = vmul.f32 1.0, %v251
    %254 = vrot.lane.b32.xlu0 %v156, 64
    %v255 = vpop.permute.xlu0 %254
    %v257 = vmul.f32 %v245, %v255
    %v258 = vmul.f32 %v245, %v246
    %260 = vrot.lane.b32.xlu0 %v258, 64
    %v261 = vpop.permute.xlu0 %260
    %v263 = vadd.f32 %v257, %v261
    %v264 = vtanh.pop %v263
    %v265 = vmul.f32 %v252, %v264
    %v267 = vsel %vm163, %v158, 0
    %269 = vmatprep.subr.mxu0 %v128
    %270 = vmatpush1.msra.mxu0 %v127
    %271 = vmatprep.subr.mxu0 %v130
    %272 = vmatpush1.msra.mxu0 %v129
    %273 = vmatprep.subr.mxu0 %v132
    %274 = vmatpush1.msra.mxu0 %v131
    %275 = vmatprep.subr.mxu0 %v134
    %276 = vmatpush1.msra.mxu0 %v133
    %277 = vmatprep.subr.mxu0 %v136
    %278 = vmatpush1.msra.mxu0 %v135
    %279 = vmatprep.subr.mxu0 %v138
    %280 = vmatpush1.msra.mxu0 %v137
    %281 = vmatprep.subr.mxu0 %v140
    %282 = vmatpush1.msra.mxu0 %v139
    %283 = vmatprep.subr.mxu0 %v142
    %284 = vmatpush1.msra.mxu0 %v141
    %285 = vmatprep.subr.mxu0 0.0
    %286 = vmatpush1.msra.mxu0 0.0
    %287 = vmatprep.subr.mxu0 0.0
    %288 = vmatpush1.msra.mxu0 0.0
    %289 = vmatprep.subr.mxu0 0.0
    %290 = vmatpush1.msra.mxu0 0.0
    %291 = vmatprep.subr.mxu0 0.0
    %292 = vmatpush1.msra.mxu0 0.0
    %293 = vmatprep.subr.mxu0 0.0
    %294 = vmatpush1.msra.mxu0 0.0
    %295 = vmatprep.subr.mxu0 0.0
    %296 = vmatpush1.msra.mxu0 0.0
    %297 = vmatprep.subr.mxu0 0.0
    %298 = vmatpush1.msra.mxu0 0.0
    %299 = vmatprep.subr.mxu0 0.0
    %300 = vmatpush1.msra.mxu0 0.0
    %301 = vmatprep.subr.mxu0 0.0
    %302 = vmatpush1.msra.mxu0 0.0
    %303 = vmatprep.subr.mxu0 0.0
    %304 = vmatpush1.msra.mxu0 0.0
    %305 = vmatprep.subr.mxu0 0.0
    %306 = vmatpush1.msra.mxu0 0.0
    %307 = vmatprep.subr.mxu0 0.0
    %308 = vmatpush1.msra.mxu0 0.0
    %309 = vmatprep.subr.mxu0 0.0
    %310 = vmatpush1.msra.mxu0 0.0
    %311 = vmatprep.subr.mxu0 0.0
    %312 = vmatpush1.msra.mxu0 0.0
    %313 = vmatprep.subr.mxu0 0.0
    %314 = vmatpush1.msra.mxu0 0.0
    %315 = vmatprep.subr.mxu0 0.0
    %316 = vmatpush1.msra.mxu0 0.0
    %317 = vmatprep.subr.mxu0 0.0
    %318 = vmatpush1.msra.mxu0 0.0
    %319 = vmatprep.subr.mxu0 0.0
    %320 = vmatpush1.msra.mxu0 0.0
    %321 = vmatprep.subr.mxu0 0.0
    %322 = vmatpush1.msra.mxu0 0.0
    %323 = vmatprep.subr.mxu0 0.0
    %324 = vmatpush1.msra.mxu0 0.0
    %325 = vmatprep.subr.mxu0 0.0
    %326 = vmatpush1.msra.mxu0 0.0
    %327 = vmatprep.subr.mxu0 0.0
    %328 = vmatpush1.msra.mxu0 0.0
    %329 = vmatprep.subr.mxu0 0.0
    %330 = vmatpush1.msra.mxu0 0.0
    %331 = vmatprep.subr.mxu0 0.0
    %332 = vmatpush1.msra.mxu0 0.0
    %333 = vmatprep.mubr.f32.mxu0 0.0
    %334 = vmatmul.mubr.f32.gmra.mrb[0].mxu0 %v267
    %v335 = vpop.f32.mrb[0].mxu0
    %v336 = vadd.f32 0.0, %v335
    %v337 = vpop.f32.mrb[0].mxu0
    %v338 = vadd.f32 0.0, %v337
    %339 = vdwg.mxu0
    %341 = vrot.lane.b32.xlu0 %v265, 64
    %v342 = vpop.permute.xlu0 %341
    %v343 = vsel %vm163, %v342, 0
    %345 = vmatprep.subr.mxu0 %v112
    %346 = vmatpush1.msra.mxu0 %v111
    %347 = vmatprep.subr.mxu0 %v114
    %348 = vmatpush1.msra.mxu0 %v113
    %349 = vmatprep.subr.mxu0 %v116
    %350 = vmatpush1.msra.mxu0 %v115
    %351 = vmatprep.subr.mxu0 %v118
    %352 = vmatpush1.msra.mxu0 %v117
    %353 = vmatprep.subr.mxu0 %v120
    %354 = vmatpush1.msra.mxu0 %v119
    %355 = vmatprep.subr.mxu0 %v122
    %356 = vmatpush1.msra.mxu0 %v121
    %357 = vmatprep.subr.mxu0 %v124
    %358 = vmatpush1.msra.mxu0 %v123
    %359 = vmatprep.subr.mxu0 %v126
    %360 = vmatpush1.msra.mxu0 %v125
    %361 = vmatprep.subr.mxu0 0.0
    %362 = vmatpush1.msra.mxu0 0.0
    %363 = vmatprep.subr.mxu0 0.0
    %364 = vmatpush1.msra.mxu0 0.0
    %365 = vmatprep.subr.mxu0 0.0
    %366 = vmatpush1.msra.mxu0 0.0
    %367 = vmatprep.subr.mxu0 0.0
    %368 = vmatpush1.msra.mxu0 0.0
    %369 = vmatprep.subr.mxu0 0.0
    %370 = vmatpush1.msra.mxu0 0.0
    %371 = vmatprep.subr.mxu0 0.0
    %372 = vmatpush1.msra.mxu0 0.0
    %373 = vmatprep.subr.mxu0 0.0
    %374 = vmatpush1.msra.mxu0 0.0
    %375 = vmatprep.subr.mxu0 0.0
    %376 = vmatpush1.msra.mxu0 0.0
    %377 = vmatprep.subr.mxu0 0.0
    %378 = vmatpush1.msra.mxu0 0.0
    %379 = vmatprep.subr.mxu0 0.0
    %380 = vmatpush1.msra.mxu0 0.0
    %381 = vmatprep.subr.mxu0 0.0
    %382 = vmatpush1.msra.mxu0 0.0
    %383 = vmatprep.subr.mxu0 0.0
    %384 = vmatpush1.msra.mxu0 0.0
    %385 = vmatprep.subr.mxu0 0.0
    %386 = vmatpush1.msra.mxu0 0.0
    %387 = vmatprep.subr.mxu0 0.0
    %388 = vmatpush1.msra.mxu0 0.0
    %389 = vmatprep.subr.mxu0 0.0
    %390 = vmatpush1.msra.mxu0 0.0
    %391 = vmatprep.subr.mxu0 0.0
    %392 = vmatpush1.msra.mxu0 0.0
    %393 = vmatprep.subr.mxu0 0.0
    %394 = vmatpush1.msra.mxu0 0.0
    %395 = vmatprep.subr.mxu0 0.0
    %396 = vmatpush1.msra.mxu0 0.0
    %397 = vmatprep.subr.mxu0 0.0
    %398 = vmatpush1.msra.mxu0 0.0
    %399 = vmatprep.subr.mxu0 0.0
    %400 = vmatpush1.msra.mxu0 0.0
    %401 = vmatprep.subr.mxu0 0.0
    %402 = vmatpush1.msra.mxu0 0.0
    %403 = vmatprep.subr.mxu0 0.0
    %404 = vmatpush1.msra.mxu0 0.0
    %405 = vmatprep.subr.mxu0 0.0
    %406 = vmatpush1.msra.mxu0 0.0
    %407 = vmatprep.subr.mxu0 0.0
    %408 = vmatpush1.msra.mxu0 0.0
    %409 = vmatprep.mubr.f32.mxu0 0.0
    %410 = vmatmul.mubr.f32.gmra.mrb[0].mxu0 %v343
    %v411 = vpop.f32.mrb[0].mxu0
    %v412 = vadd.f32 %v336, %v411
    %v413 = vpop.f32.mrb[0].mxu0
    %v414 = vadd.f32 %v338, %v413
    %415 = vdwg.mxu0
    %v416 = vadd.f32 %v412, %v148
    %v417 = vadd.f32 %v414, %v152
    %v418 = vxor.u32 %v416, 2147483648
    %v419 = vmul.f32 %v418, 1.442695
    %v420 = vpow.pop %v419
    %v421 = vadd.f32 %v420, 1.0
    %v422 = vrcp.pop %v421
    %v423 = vmul.f32 1.0, %v422
    %v424 = vtanh.pop %v417
    %v425 = vxor.u32 %v417, 2147483648
    %v426 = vmul.f32 %v425, 1.442695
    %v427 = vpow.pop %v426
    %v428 = vadd.f32 %v427, 1.0
    %v429 = vrcp.pop %v428
    %v430 = vmul.f32 1.0, %v429
    %432 = vrot.lane.b32.xlu0 %v160, 64
    %v433 = vpop.permute.xlu0 %432
    %v435 = vmul.f32 %v423, %v433
    %v436 = vmul.f32 %v423, %v424
    %438 = vrot.lane.b32.xlu0 %v436, 64
    %v439 = vpop.permute.xlu0 %438
    %v441 = vadd.f32 %v435, %v439
    %v442 = vtanh.pop %v441
    %v443 = vmul.f32 %v430, %v442
    %s444 = scalar_lea.vmem [#allocation2], 16
    %v445 = vld [vmem:[%s444] sm:$0xff]
    %v446 = vld [vmem:[%s444 + $0x8] sm:$0xff]
    %447 = vmatprep.subr.mxu0 %v96
    %448 = vmatpush1.msra.mxu0 %v95
    %449 = vmatprep.subr.mxu0 %v98
    %450 = vmatpush1.msra.mxu0 %v97
    %451 = vmatprep.subr.mxu0 %v100
    %452 = vmatpush1.msra.mxu0 %v99
    %453 = vmatprep.subr.mxu0 %v102
    %454 = vmatpush1.msra.mxu0 %v101
    %455 = vmatprep.subr.mxu0 %v104
    %456 = vmatpush1.msra.mxu0 %v103
    %457 = vmatprep.subr.mxu0 %v106
    %458 = vmatpush1.msra.mxu0 %v105
    %459 = vmatprep.subr.mxu0 %v108
    %460 = vmatpush1.msra.mxu0 %v107
    %461 = vmatprep.subr.mxu0 %v110
    %462 = vmatpush1.msra.mxu0 %v109
    %463 = vmatprep.subr.mxu0 0.0
    %464 = vmatpush1.msra.mxu0 0.0
    %465 = vmatprep.subr.mxu0 0.0
    %466 = vmatpush1.msra.mxu0 0.0
    %467 = vmatprep.subr.mxu0 0.0
    %468 = vmatpush1.msra.mxu0 0.0
    %469 = vmatprep.subr.mxu0 0.0
    %470 = vmatpush1.msra.mxu0 0.0
    %471 = vmatprep.subr.mxu0 0.0
    %472 = vmatpush1.msra.mxu0 0.0
    %473 = vmatprep.subr.mxu0 0.0
    %474 = vmatpush1.msra.mxu0 0.0
    %475 = vmatprep.subr.mxu0 0.0
    %476 = vmatpush1.msra.mxu0 0.0
    %477 = vmatprep.subr.mxu0 0.0
    %478 = vmatpush1.msra.mxu0 0.0
    %479 = vmatprep.subr.mxu0 0.0
    %480 = vmatpush1.msra.mxu0 0.0
    %481 = vmatprep.subr.mxu0 0.0
    %482 = vmatpush1.msra.mxu0 0.0
    %483 = vmatprep.subr.mxu0 0.0
    %484 = vmatpush1.msra.mxu0 0.0
    %485 = vmatprep.subr.mxu0 0.0
    %486 = vmatpush1.msra.mxu0 0.0
    %487 = vmatprep.subr.mxu0 0.0
    %488 = vmatpush1.msra.mxu0 0.0
    %489 = vmatprep.subr.mxu0 0.0
    %490 = vmatpush1.msra.mxu0 0.0
    %491 = vmatprep.subr.mxu0 0.0
    %492 = vmatpush1.msra.mxu0 0.0
    %493 = vmatprep.subr.mxu0 0.0
    %494 = vmatpush1.msra.mxu0 0.0
    %495 = vmatprep.subr.mxu0 0.0
    %496 = vmatpush1.msra.mxu0 0.0
    %497 = vmatprep.subr.mxu0 0.0
    %498 = vmatpush1.msra.mxu0 0.0
    %499 = vmatprep.subr.mxu0 0.0
    %500 = vmatpush1.msra.mxu0 0.0
    %501 = vmatprep.subr.mxu0 0.0
    %502 = vmatpush1.msra.mxu0 0.0
    %503 = vmatprep.subr.mxu0 0.0
    %504 = vmatpush1.msra.mxu0 0.0
    %505 = vmatprep.subr.mxu0 0.0
    %506 = vmatpush1.msra.mxu0 0.0
    %507 = vmatprep.subr.mxu0 0.0
    %508 = vmatpush1.msra.mxu0 0.0
    %509 = vmatprep.subr.mxu0 0.0
    %510 = vmatpush1.msra.mxu0 0.0
    %511 = vmatprep.mubr.f32.mxu0 0.0
    %512 = vmatmul.mubr.f32.gmra.mrb[0].mxu0 %v343
    %v513 = vpop.f32.mrb[0].mxu0
    %v514 = vadd.f32 0.0, %v513
    %v515 = vpop.f32.mrb[0].mxu0
    %v516 = vadd.f32 0.0, %v515
    %517 = vdwg.mxu0
    %v518 = vadd.f32 %v445, %v514
    %v519 = vadd.f32 %v446, %v516
    %v520 = vxor.u32 %v518, 2147483648
    %v521 = vmul.f32 %v520, 1.442695
    %v522 = vpow.pop %v521
    %v523 = vadd.f32 %v522, 1.0
    %v524 = vrcp.pop %v523
    %v525 = vmul.f32 1.0, %v524
    %v526 = vtanh.pop %v519
    %v527 = vxor.u32 %v519, 2147483648
    %v528 = vmul.f32 %v527, 1.442695
    %v529 = vpow.pop %v528
    %v530 = vadd.f32 %v529, 1.0
    %v531 = vrcp.pop %v530
    %v532 = vmul.f32 1.0, %v531
    %v533 = vmul.f32 %v525, %v263
    %v534 = vmul.f32 %v525, %v526
    %536 = vrot.lane.b32.xlu0 %v534, 64
    %v537 = vpop.permute.xlu0 %536
    %v539 = vadd.f32 %v533, %v537
    %v540 = vtanh.pop %v539
    %v541 = vmul.f32 %v532, %v540
    %543 = vrot.lane.b32.xlu0 %v443, 64
    %v544 = vpop.permute.xlu0 %543
    %v545 = vsel %vm163, %v544, 0
    %547 = vmatprep.subr.mxu0 %v128
    %548 = vmatpush1.msra.mxu0 %v127
    %549 = vmatprep.subr.mxu0 %v130
    %550 = vmatpush1.msra.mxu0 %v129
    %551 = vmatprep.subr.mxu0 %v132
    %552 = vmatpush1.msra.mxu0 %v131
    %553 = vmatprep.subr.mxu0 %v134
    %554 = vmatpush1.msra.mxu0 %v133
    %555 = vmatprep.subr.mxu0 %v136
    %556 = vmatpush1.msra.mxu0 %v135
    %557 = vmatprep.subr.mxu0 %v138
    %558 = vmatpush1.msra.mxu0 %v137
    %559 = vmatprep.subr.mxu0 %v140
    %560 = vmatpush1.msra.mxu0 %v139
    %561 = vmatprep.subr.mxu0 %v142
    %562 = vmatpush1.msra.mxu0 %v141
    %563 = vmatprep.subr.mxu0 0.0
    %564 = vmatpush1.msra.mxu0 0.0
    %565 = vmatprep.subr.mxu0 0.0
    %566 = vmatpush1.msra.mxu0 0.0
    %567 = vmatprep.subr.mxu0 0.0
    %568 = vmatpush1.msra.mxu0 0.0
    %569 = vmatprep.subr.mxu0 0.0
    %570 = vmatpush1.msra.mxu0 0.0
    %571 = vmatprep.subr.mxu0 0.0
    %572 = vmatpush1.msra.mxu0 0.0
    %573 = vmatprep.subr.mxu0 0.0
    %574 = vmatpush1.msra.mxu0 0.0
    %575 = vmatprep.subr.mxu0 0.0
    %576 = vmatpush1.msra.mxu0 0.0
    %577 = vmatprep.subr.mxu0 0.0
    %578 = vmatpush1.msra.mxu0 0.0
    %579 = vmatprep.subr.mxu0 0.0
    %580 = vmatpush1.msra.mxu0 0.0
    %581 = vmatprep.subr.mxu0 0.0
    %582 = vmatpush1.msra.mxu0 0.0
    %583 = vmatprep.subr.mxu0 0.0
    %584 = vmatpush1.msra.mxu0 0.0
    %585 = vmatprep.subr.mxu0 0.0
    %586 = vmatpush1.msra.mxu0 0.0
    %587 = vmatprep.subr.mxu0 0.0
    %588 = vmatpush1.msra.mxu0 0.0
    %589 = vmatprep.subr.mxu0 0.0
    %590 = vmatpush1.msra.mxu0 0.0
    %591 = vmatprep.subr.mxu0 0.0
    %592 = vmatpush1.msra.mxu0 0.0
    %593 = vmatprep.subr.mxu0 0.0
    %594 = vmatpush1.msra.mxu0 0.0
    %595 = vmatprep.subr.mxu0 0.0
    %596 = vmatpush1.msra.mxu0 0.0
    %597 = vmatprep.subr.mxu0 0.0
    %598 = vmatpush1.msra.mxu0 0.0
    %599 = vmatprep.subr.mxu0 0.0
    %600 = vmatpush1.msra.mxu0 0.0
    %601 = vmatprep.subr.mxu0 0.0
    %602 = vmatpush1.msra.mxu0 0.0
    %603 = vmatprep.subr.mxu0 0.0
    %604 = vmatpush1.msra.mxu0 0.0
    %605 = vmatprep.subr.mxu0 0.0
    %606 = vmatpush1.msra.mxu0 0.0
    %607 = vmatprep.subr.mxu0 0.0
    %608 = vmatpush1.msra.mxu0 0.0
    %609 = vmatprep.subr.mxu0 0.0
    %610 = vmatpush1.msra.mxu0 0.0
    %611 = vmatprep.mubr.f32.mxu0 0.0
    %612 = vmatmul.mubr.f32.gmra.mrb[0].mxu0 %v545
    %v613 = vpop.f32.mrb[0].mxu0
    %v614 = vadd.f32 0.0, %v613
    %v615 = vpop.f32.mrb[0].mxu0
    %v616 = vadd.f32 0.0, %v615
    %617 = vdwg.mxu0
    %619 = vrot.lane.b32.xlu0 %v541, 64
    %v620 = vpop.permute.xlu0 %619
    %v621 = vsel %vm163, %v620, 0
    %623 = vmatprep.subr.mxu0 %v112
    %624 = vmatpush1.msra.mxu0 %v111
    %625 = vmatprep.subr.mxu0 %v114
    %626 = vmatpush1.msra.mxu0 %v113
    %627 = vmatprep.subr.mxu0 %v116
    %628 = vmatpush1.msra.mxu0 %v115
    %629 = vmatprep.subr.mxu0 %v118
    %630 = vmatpush1.msra.mxu0 %v117
    %631 = vmatprep.subr.mxu0 %v120
    %632 = vmatpush1.msra.mxu0 %v119
    %633 = vmatprep.subr.mxu0 %v122
    %634 = vmatpush1.msra.mxu0 %v121
    %635 = vmatprep.subr.mxu0 %v124
    %636 = vmatpush1.msra.mxu0 %v123
    %637 = vmatprep.subr.mxu0 %v126
    %638 = vmatpush1.msra.mxu0 %v125
    %639 = vmatprep.subr.mxu0 0.0
    %640 = vmatpush1.msra.mxu0 0.0
    %641 = vmatprep.subr.mxu0 0.0
    %642 = vmatpush1.msra.mxu0 0.0
    %643 = vmatprep.subr.mxu0 0.0
    %644 = vmatpush1.msra.mxu0 0.0
    %645 = vmatprep.subr.mxu0 0.0
    %646 = vmatpush1.msra.mxu0 0.0
    %647 = vmatprep.subr.mxu0 0.0
    %648 = vmatpush1.msra.mxu0 0.0
    %649 = vmatprep.subr.mxu0 0.0
    %650 = vmatpush1.msra.mxu0 0.0
    %651 = vmatprep.subr.mxu0 0.0
    %652 = vmatpush1.msra.mxu0 0.0
    %653 = vmatprep.subr.mxu0 0.0
    %654 = vmatpush1.msra.mxu0 0.0
    %655 = vmatprep.subr.mxu0 0.0
    %656 = vmatpush1.msra.mxu0 0.0
    %657 = vmatprep.subr.mxu0 0.0
    %658 = vmatpush1.msra.mxu0 0.0
    %659 = vmatprep.subr.mxu0 0.0
    %660 = vmatpush1.msra.mxu0 0.0
    %661 = vmatprep.subr.mxu0 0.0
    %662 = vmatpush1.msra.mxu0 0.0
    %663 = vmatprep.subr.mxu0 0.0
    %664 = vmatpush1.msra.mxu0 0.0
    %665 = vmatprep.subr.mxu0 0.0
    %666 = vmatpush1.msra.mxu0 0.0
    %667 = vmatprep.subr.mxu0 0.0
    %668 = vmatpush1.msra.mxu0 0.0
    %669 = vmatprep.subr.mxu0 0.0
    %670 = vmatpush1.msra.mxu0 0.0
    %671 = vmatprep.subr.mxu0 0.0
    %672 = vmatpush1.msra.mxu0 0.0
    %673 = vmatprep.subr.mxu0 0.0
    %674 = vmatpush1.msra.mxu0 0.0
    %675 = vmatprep.subr.mxu0 0.0
    %676 = vmatpush1.msra.mxu0 0.0
    %677 = vmatprep.subr.mxu0 0.0
    %678 = vmatpush1.msra.mxu0 0.0
    %679 = vmatprep.subr.mxu0 0.0
    %680 = vmatpush1.msra.mxu0 0.0
    %681 = vmatprep.subr.mxu0 0.0
    %682 = vmatpush1.msra.mxu0 0.0
    %683 = vmatprep.subr.mxu0 0.0
    %684 = vmatpush1.msra.mxu0 0.0
    %685 = vmatprep.subr.mxu0 0.0
    %686 = vmatpush1.msra.mxu0 0.0
    %687 = vmatprep.mubr.f32.mxu0 0.0
    %688 = vmatmul.mubr.f32.gmra.mrb[0].mxu0 %v621
    %v689 = vpop.f32.mrb[0].mxu0
    %v690 = vadd.f32 %v614, %v689
    %v691 = vpop.f32.mrb[0].mxu0
    %v692 = vadd.f32 %v616, %v691
    %693 = vdwg.mxu0
    %v694 = vadd.f32 %v690, %v148
    %v695 = vadd.f32 %v692, %v152
    %v696 = vxor.u32 %v694, 2147483648
    %v697 = vmul.f32 %v696, 1.442695
    %v698 = vpow.pop %v697
    %v699 = vadd.f32 %v698, 1.0
    %v700 = vrcp.pop %v699
    %v701 = vmul.f32 1.0, %v700
    %v702 = vtanh.pop %v695
    %v703 = vxor.u32 %v695, 2147483648
    %v704 = vmul.f32 %v703, 1.442695
    %v705 = vpow.pop %v704
    %v706 = vadd.f32 %v705, 1.0
    %v707 = vrcp.pop %v706
    %v708 = vmul.f32 1.0, %v707
    %v709 = vmul.f32 %v701, %v441
    %v710 = vmul.f32 %v701, %v702
    %712 = vrot.lane.b32.xlu0 %v710, 64
    %v713 = vpop.permute.xlu0 %712
    %v715 = vadd.f32 %v709, %v713
    %v716 = vtanh.pop %v715
    %v717 = vmul.f32 %v708, %v716
    %s718 = scalar_lea.vmem [#allocation2], 32
    %v719 = vld [vmem:[%s718] sm:$0xff]
    %v720 = vld [vmem:[%s718 + $0x8] sm:$0xff]
    %721 = vmatprep.subr.mxu0 %v96
    %722 = vmatpush1.msra.mxu0 %v95
    %723 = vmatprep.subr.mxu0 %v98
    %724 = vmatpush1.msra.mxu0 %v97
    %725 = vmatprep.subr.mxu0 %v100
    %726 = vmatpush1.msra.mxu0 %v99
    %727 = vmatprep.subr.mxu0 %v102
    %728 = vmatpush1.msra.mxu0 %v101
    %729 = vmatprep.subr.mxu0 %v104
    %730 = vmatpush1.msra.mxu0 %v103
    %731 = vmatprep.subr.mxu0 %v106
    %732 = vmatpush1.msra.mxu0 %v105
    %733 = vmatprep.subr.mxu0 %v108
    %734 = vmatpush1.msra.mxu0 %v107
    %735 = vmatprep.subr.mxu0 %v110
    %736 = vmatpush1.msra.mxu0 %v109
    %737 = vmatprep.subr.mxu0 0.0
    %738 = vmatpush1.msra.mxu0 0.0
    %739 = vmatprep.subr.mxu0 0.0
    %740 = vmatpush1.msra.mxu0 0.0
    %741 = vmatprep.subr.mxu0 0.0
    %742 = vmatpush1.msra.mxu0 0.0
    %743 = vmatprep.subr.mxu0 0.0
    %744 = vmatpush1.msra.mxu0 0.0
    %745 = vmatprep.subr.mxu0 0.0
    %746 = vmatpush1.msra.mxu0 0.0
    %747 = vmatprep.subr.mxu0 0.0
    %748 = vmatpush1.msra.mxu0 0.0
    %749 = vmatprep.subr.mxu0 0.0
    %750 = vmatpush1.msra.mxu0 0.0
    %751 = vmatprep.subr.mxu0 0.0
    %752 = vmatpush1.msra.mxu0 0.0
    %753 = vmatprep.subr.mxu0 0.0
    %754 = vmatpush1.msra.mxu0 0.0
    %755 = vmatprep.subr.mxu0 0.0
    %756 = vmatpush1.msra.mxu0 0.0
    %757 = vmatprep.subr.mxu0 0.0
    %758 = vmatpush1.msra.mxu0 0.0
    %759 = vmatprep.subr.mxu0 0.0
    %760 = vmatpush1.msra.mxu0 0.0
    %761 = vmatprep.subr.mxu0 0.0
    %762 = vmatpush1.msra.mxu0 0.0
    %763 = vmatprep.subr.mxu0 0.0
    %764 = vmatpush1.msra.mxu0 0.0
    %765 = vmatprep.subr.mxu0 0.0
    %766 = vmatpush1.msra.mxu0 0.0
    %767 = vmatprep.subr.mxu0 0.0
    %768 = vmatpush1.msra.mxu0 0.0
    %769 = vmatprep.subr.mxu0 0.0
    %770 = vmatpush1.msra.mxu0 0.0
    %771 = vmatprep.subr.mxu0 0.0
    %772 = vmatpush1.msra.mxu0 0.0
    %773 = vmatprep.subr.mxu0 0.0
    %774 = vmatpush1.msra.mxu0 0.0
    %775 = vmatprep.subr.mxu0 0.0
    %776 = vmatpush1.msra.mxu0 0.0
    %777 = vmatprep.subr.mxu0 0.0
    %778 = vmatpush1.msra.mxu0 0.0
    %779 = vmatprep.subr.mxu0 0.0
    %780 = vmatpush1.msra.mxu0 0.0
    %781 = vmatprep.subr.mxu0 0.0
    %782 = vmatpush1.msra.mxu0 0.0
    %783 = vmatprep.subr.mxu0 0.0
    %784 = vmatpush1.msra.mxu0 0.0
    %785 = vmatprep.mubr.f32.mxu0 0.0
    %786 = vmatmul.mubr.f32.gmra.mrb[0].mxu0 %v621
    %v787 = vpop.f32.mrb[0].mxu0
    %v788 = vadd.f32 0.0, %v787
    %v789 = vpop.f32.mrb[0].mxu0
    %v790 = vadd.f32 0.0, %v789
    %791 = vdwg.mxu0
    %v792 = vadd.f32 %v719, %v788
    %v793 = vadd.f32 %v720, %v790
    %v794 = vxor.u32 %v792, 2147483648
    %v795 = vmul.f32 %v794, 1.442695
    %v796 = vpow.pop %v795
    %v797 = vadd.f32 %v796, 1.0
    %v798 = vrcp.pop %v797
    %v799 = vmul.f32 1.0, %v798
    %v800 = vtanh.pop %v793
    %v801 = vxor.u32 %v793, 2147483648
    %v802 = vmul.f32 %v801, 1.442695
    %v803 = vpow.pop %v802
    %v804 = vadd.f32 %v803, 1.0
    %v805 = vrcp.pop %v804
    %v806 = vmul.f32 1.0, %v805
    %v807 = vmul.f32 %v799, %v539
    %v808 = vmul.f32 %v799, %v800
    %810 = vrot.lane.b32.xlu0 %v808, 64
    %v811 = vpop.permute.xlu0 %810
    %v813 = vadd.f32 %v807, %v811
    %v814 = vtanh.pop %v813
    %v815 = vmul.f32 %v806, %v814
    %817 = vrot.lane.b32.xlu0 %v717, 64
    %v818 = vpop.permute.xlu0 %817
    %v819 = vsel %vm163, %v818, 0
    %821 = vmatprep.subr.mxu0 %v128
    %822 = vmatpush1.msra.mxu0 %v127
    %823 = vmatprep.subr.mxu0 %v130
    %824 = vmatpush1.msra.mxu0 %v129
    %825 = vmatprep.subr.mxu0 %v132
    %826 = vmatpush1.msra.mxu0 %v131
    %827 = vmatprep.subr.mxu0 %v134
    %828 = vmatpush1.msra.mxu0 %v133
    %829 = vmatprep.subr.mxu0 %v136
    %830 = vmatpush1.msra.mxu0 %v135
    %831 = vmatprep.subr.mxu0 %v138
    %832 = vmatpush1.msra.mxu0 %v137
    %833 = vmatprep.subr.mxu0 %v140
    %834 = vmatpush1.msra.mxu0 %v139
    %835 = vmatprep.subr.mxu0 %v142
    %836 = vmatpush1.msra.mxu0 %v141
    %837 = vmatprep.subr.mxu0 0.0
    %838 = vmatpush1.msra.mxu0 0.0
    %839 = vmatprep.subr.mxu0 0.0
    %840 = vmatpush1.msra.mxu0 0.0
    %841 = vmatprep.subr.mxu0 0.0
    %842 = vmatpush1.msra.mxu0 0.0
    %843 = vmatprep.subr.mxu0 0.0
    %844 = vmatpush1.msra.mxu0 0.0
    %845 = vmatprep.subr.mxu0 0.0
    %846 = vmatpush1.msra.mxu0 0.0
    %847 = vmatprep.subr.mxu0 0.0
    %848 = vmatpush1.msra.mxu0 0.0
    %849 = vmatprep.subr.mxu0 0.0
    %850 = vmatpush1.msra.mxu0 0.0
    %851 = vmatprep.subr.mxu0 0.0
    %852 = vmatpush1.msra.mxu0 0.0
    %853 = vmatprep.subr.mxu0 0.0
    %854 = vmatpush1.msra.mxu0 0.0
    %855 = vmatprep.subr.mxu0 0.0
    %856 = vmatpush1.msra.mxu0 0.0
    %857 = vmatprep.subr.mxu0 0.0
    %858 = vmatpush1.msra.mxu0 0.0
    %859 = vmatprep.subr.mxu0 0.0
    %860 = vmatpush1.msra.mxu0 0.0
    %861 = vmatprep.subr.mxu0 0.0
    %862 = vmatpush1.msra.mxu0 0.0
    %863 = vmatprep.subr.mxu0 0.0
    %864 = vmatpush1.msra.mxu0 0.0
    %865 = vmatprep.subr.mxu0 0.0
    %866 = vmatpush1.msra.mxu0 0.0
    %867 = vmatprep.subr.mxu0 0.0
    %868 = vmatpush1.msra.mxu0 0.0
    %869 = vmatprep.subr.mxu0 0.0
    %870 = vmatpush1.msra.mxu0 0.0
    %871 = vmatprep.subr.mxu0 0.0
    %872 = vmatpush1.msra.mxu0 0.0
    %873 = vmatprep.subr.mxu0 0.0
    %874 = vmatpush1.msra.mxu0 0.0
    %875 = vmatprep.subr.mxu0 0.0
    %876 = vmatpush1.msra.mxu0 0.0
    %877 = vmatprep.subr.mxu0 0.0
    %878 = vmatpush1.msra.mxu0 0.0
    %879 = vmatprep.subr.mxu0 0.0
    %880 = vmatpush1.msra.mxu0 0.0
    %881 = vmatprep.subr.mxu0 0.0
    %882 = vmatpush1.msra.mxu0 0.0
    %883 = vmatprep.subr.mxu0 0.0
    %884 = vmatpush1.msra.mxu0 0.0
    %885 = vmatprep.mubr.f32.mxu0 0.0
    %886 = vmatmul.mubr.f32.gmra.mrb[0].mxu0 %v819
    %v887 = vpop.f32.mrb[0].mxu0
    %v888 = vadd.f32 0.0, %v887
    %v889 = vpop.f32.mrb[0].mxu0
    %v890 = vadd.f32 0.0, %v889
    %891 = vdwg.mxu0
    %893 = vrot.lane.b32.xlu0 %v815, 64
    %v894 = vpop.permute.xlu0 %893
    %v895 = vsel %vm163, %v894, 0
    %897 = vmatprep.subr.mxu0 %v112
    %898 = vmatpush1.msra.mxu0 %v111
    %899 = vmatprep.subr.mxu0 %v114
    %900 = vmatpush1.msra.mxu0 %v113
    %901 = vmatprep.subr.mxu0 %v116
    %902 = vmatpush1.msra.mxu0 %v115
    %903 = vmatprep.subr.mxu0 %v118
    %904 = vmatpush1.msra.mxu0 %v117
    %905 = vmatprep.subr.mxu0 %v120
    %906 = vmatpush1.msra.mxu0 %v119
    %907 = vmatprep.subr.mxu0 %v122
    %908 = vmatpush1.msra.mxu0 %v121
    %909 = vmatprep.subr.mxu0 %v124
    %910 = vmatpush1.msra.mxu0 %v123
    %911 = vmatprep.subr.mxu0 %v126
    %912 = vmatpush1.msra.mxu0 %v125
    %913 = vmatprep.subr.mxu0 0.0
    %914 = vmatpush1.msra.mxu0 0.0
    %915 = vmatprep.subr.mxu0 0.0
    %916 = vmatpush1.msra.mxu0 0.0
    %917 = vmatprep.subr.mxu0 0.0
    %918 = vmatpush1.msra.mxu0 0.0
    %919 = vmatprep.subr.mxu0 0.0
    %920 = vmatpush1.msra.mxu0 0.0
    %921 = vmatprep.subr.mxu0 0.0
    %922 = vmatpush1.msra.mxu0 0.0
    %923 = vmatprep.subr.mxu0 0.0
    %924 = vmatpush1.msra.mxu0 0.0
    %925 = vmatprep.subr.mxu0 0.0
    %926 = vmatpush1.msra.mxu0 0.0
    %927 = vmatprep.subr.mxu0 0.0
    %928 = vmatpush1.msra.mxu0 0.0
    %929 = vmatprep.subr.mxu0 0.0
    %930 = vmatpush1.msra.mxu0 0.0
    %931 = vmatprep.subr.mxu0 0.0
    %932 = vmatpush1.msra.mxu0 0.0
    %933 = vmatprep.subr.mxu0 0.0
    %934 = vmatpush1.msra.mxu0 0.0
    %935 = vmatprep.subr.mxu0 0.0
    %936 = vmatpush1.msra.mxu0 0.0
    %937 = vmatprep.subr.mxu0 0.0
    %938 = vmatpush1.msra.mxu0 0.0
    %939 = vmatprep.subr.mxu0 0.0
    %940 = vmatpush1.msra.mxu0 0.0
    %941 = vmatprep.subr.mxu0 0.0
    %942 = vmatpush1.msra.mxu0 0.0
    %943 = vmatprep.subr.mxu0 0.0
    %944 = vmatpush1.msra.mxu0 0.0
    %945 = vmatprep.subr.mxu0 0.0
    %946 = vmatpush1.msra.mxu0 0.0
    %947 = vmatprep.subr.mxu0 0.0
    %948 = vmatpush1.msra.mxu0 0.0
    %949 = vmatprep.subr.mxu0 0.0
    %950 = vmatpush1.msra.mxu0 0.0
    %951 = vmatprep.subr.mxu0 0.0
    %952 = vmatpush1.msra.mxu0 0.0
    %953 = vmatprep.subr.mxu0 0.0
    %954 = vmatpush1.msra.mxu0 0.0
    %955 = vmatprep.subr.mxu0 0.0
    %956 = vmatpush1.msra.mxu0 0.0
    %957 = vmatprep.subr.mxu0 0.0
    %958 = vmatpush1.msra.mxu0 0.0
    %959 = vmatprep.subr.mxu0 0.0
    %960 = vmatpush1.msra.mxu0 0.0
    %961 = vmatprep.mubr.f32.mxu0 0.0
    %962 = vmatmul.mubr.f32.gmra.mrb[0].mxu0 %v895
    %v963 = vpop.f32.mrb[0].mxu0
    %v964 = vadd.f32 %v888, %v963
    %v965 = vpop.f32.mrb[0].mxu0
    %v966 = vadd.f32 %v890, %v965
    %967 = vdwg.mxu0
    %v968 = vadd.f32 %v964, %v148
    %v969 = vadd.f32 %v966, %v152
    %v970 = vxor.u32 %v968, 2147483648
    %v971 = vmul.f32 %v970, 1.442695
    %v972 = vpow.pop %v971
    %v973 = vadd.f32 %v972, 1.0
    %v974 = vrcp.pop %v973
    %v975 = vmul.f32 1.0, %v974
    %v976 = vtanh.pop %v969
    %v977 = vxor.u32 %v969, 2147483648
    %v978 = vmul.f32 %v977, 1.442695
    %v979 = vpow.pop %v978
    %v980 = vadd.f32 %v979, 1.0
    %v981 = vrcp.pop %v980
    %v982 = vmul.f32 1.0, %v981
    %v983 = vmul.f32 %v975, %v715
    %v984 = vmul.f32 %v975, %v976
    %986 = vrot.lane.b32.xlu0 %v984, 64
    %v987 = vpop.permute.xlu0 %986
    %v989 = vadd.f32 %v983, %v987
    %v990 = vtanh.pop %v989
    %v991 = vmul.f32 %v982, %v990
    %s992 = scalar_lea.vmem [#allocation2], 48
    %v993 = vld [vmem:[%s992] sm:$0xff]
    %v994 = vld [vmem:[%s992 + $0x8] sm:$0xff]
    %995 = vmatprep.subr.mxu0 %v96
    %996 = vmatpush1.msra.mxu0 %v95
    %997 = vmatprep.subr.mxu0 %v98
    %998 = vmatpush1.msra.mxu0 %v97
    %999 = vmatprep.subr.mxu0 %v100
    %1000 = vmatpush1.msra.mxu0 %v99
    %1001 = vmatprep.subr.mxu0 %v102
    %1002 = vmatpush1.msra.mxu0 %v101
    %1003 = vmatprep.subr.mxu0 %v104
    %1004 = vmatpush1.msra.mxu0 %v103
    %1005 = vmatprep.subr.mxu0 %v106
    %1006 = vmatpush1.msra.mxu0 %v105
    %1007 = vmatprep.subr.mxu0 %v108
    %1008 = vmatpush1.msra.mxu0 %v107
    %1009 = vmatprep.subr.mxu0 %v110
    %1010 = vmatpush1.msra.mxu0 %v109
    %1011 = vmatprep.subr.mxu0 0.0
    %1012 = vmatpush1.msra.mxu0 0.0
    %1013 = vmatprep.subr.mxu0 0.0
    %1014 = vmatpush1.msra.mxu0 0.0
    %1015 = vmatprep.subr.mxu0 0.0
    %1016 = vmatpush1.msra.mxu0 0.0
    %1017 = vmatprep.subr.mxu0 0.0
    %1018 = vmatpush1.msra.mxu0 0.0
    %1019 = vmatprep.subr.mxu0 0.0
    %1020 = vmatpush1.msra.mxu0 0.0
    %1021 = vmatprep.subr.mxu0 0.0
    %1022 = vmatpush1.msra.mxu0 0.0
    %1023 = vmatprep.subr.mxu0 0.0
    %1024 = vmatpush1.msra.mxu0 0.0
    %1025 = vmatprep.subr.mxu0 0.0
    %1026 = vmatpush1.msra.mxu0 0.0
    %1027 = vmatprep.subr.mxu0 0.0
    %1028 = vmatpush1.msra.mxu0 0.0
    %1029 = vmatprep.subr.mxu0 0.0
    %1030 = vmatpush1.msra.mxu0 0.0
    %1031 = vmatprep.subr.mxu0 0.0
    %1032 = vmatpush1.msra.mxu0 0.0
    %1033 = vmatprep.subr.mxu0 0.0
    %1034 = vmatpush1.msra.mxu0 0.0
    %1035 = vmatprep.subr.mxu0 0.0
    %1036 = vmatpush1.msra.mxu0 0.0
    %1037 = vmatprep.subr.mxu0 0.0
    %1038 = vmatpush1.msra.mxu0 0.0
    %1039 = vmatprep.subr.mxu0 0.0
    %1040 = vmatpush1.msra.mxu0 0.0
    %1041 = vmatprep.subr.mxu0 0.0
    %1042 = vmatpush1.msra.mxu0 0.0
    %1043 = vmatprep.subr.mxu0 0.0
    %1044 = vmatpush1.msra.mxu0 0.0
    %1045 = vmatprep.subr.mxu0 0.0
    %1046 = vmatpush1.msra.mxu0 0.0
    %1047 = vmatprep.subr.mxu0 0.0
    %1048 = vmatpush1.msra.mxu0 0.0
    %1049 = vmatprep.subr.mxu0 0.0
    %1050 = vmatpush1.msra.mxu0 0.0
    %1051 = vmatprep.subr.mxu0 0.0
    %1052 = vmatpush1.msra.mxu0 0.0
    %1053 = vmatprep.subr.mxu0 0.0
    %1054 = vmatpush1.msra.mxu0 0.0
    %1055 = vmatprep.subr.mxu0 0.0
    %1056 = vmatpush1.msra.mxu0 0.0
    %1057 = vmatprep.subr.mxu0 0.0
    %1058 = vmatpush1.msra.mxu0 0.0
    %1059 = vmatprep.mubr.f32.mxu0 0.0
    %1060 = vmatmul.mubr.f32.gmra.mrb[0].mxu0 %v895
    %v1061 = vpop.f32.mrb[0].mxu0
    %v1062 = vadd.f32 0.0, %v1061
    %v1063 = vpop.f32.mrb[0].mxu0
    %v1064 = vadd.f32 0.0, %v1063
    %1065 = vdwg.mxu0
    %v1066 = vadd.f32 %v993, %v1062
    %v1067 = vadd.f32 %v994, %v1064
    %v1068 = vxor.u32 %v1066, 2147483648
    %v1069 = vmul.f32 %v1068, 1.442695
    %v1070 = vpow.pop %v1069
    %v1071 = vadd.f32 %v1070, 1.0
    %v1072 = vrcp.pop %v1071
    %v1073 = vmul.f32 1.0, %v1072
    %v1074 = vtanh.pop %v1067
    %v1075 = vxor.u32 %v1067, 2147483648
    %v1076 = vmul.f32 %v1075, 1.442695
    %v1077 = vpow.pop %v1076
    %v1078 = vadd.f32 %v1077, 1.0
    %v1079 = vrcp.pop %v1078
    %v1080 = vmul.f32 1.0, %v1079
    %v1081 = vmul.f32 %v1073, %v813
    %v1082 = vmul.f32 %v1073, %v1074
    %1084 = vrot.lane.b32.xlu0 %v1082, 64
    %v1085 = vpop.permute.xlu0 %1084
    %v1087 = vadd.f32 %v1081, %v1085
    %v1088 = vtanh.pop %v1087
    %v1089 = vmul.f32 %v1080, %v1088
    %1091 = vrot.lane.b32.xlu0 %v991, 64
    %v1092 = vpop.permute.xlu0 %1091
    %v1093 = vsel %vm163, %v1092, 0
    %1095 = vmatprep.subr.mxu0 %v128
    %1096 = vmatpush1.msra.mxu0 %v127
    %1097 = vmatprep.subr.mxu0 %v130
    %1098 = vmatpush1.msra.mxu0 %v129
    %1099 = vmatprep.subr.mxu0 %v132
    %1100 = vmatpush1.msra.mxu0 %v131
    %1101 = vmatprep.subr.mxu0 %v134
    %1102 = vmatpush1.msra.mxu0 %v133
    %1103 = vmatprep.subr.mxu0 %v136
    %1104 = vmatpush1.msra.mxu0 %v135
    %1105 = vmatprep.subr.mxu0 %v138
    %1106 = vmatpush1.msra.mxu0 %v137
    %1107 = vmatprep.subr.mxu0 %v140
    %1108 = vmatpush1.msra.mxu0 %v139
    %1109 = vmatprep.subr.mxu0 %v142
    %1110 = vmatpush1.msra.mxu0 %v141
    %1111 = vmatprep.subr.mxu0 0.0
    %1112 = vmatpush1.msra.mxu0 0.0
    %1113 = vmatprep.subr.mxu0 0.0
    %1114 = vmatpush1.msra.mxu0 0.0
    %1115 = vmatprep.subr.mxu0 0.0
    %1116 = vmatpush1.msra.mxu0 0.0
    %1117 = vmatprep.subr.mxu0 0.0
    %1118 = vmatpush1.msra.mxu0 0.0
    %1119 = vmatprep.subr.mxu0 0.0
    %1120 = vmatpush1.msra.mxu0 0.0
    %1121 = vmatprep.subr.mxu0 0.0
    %1122 = vmatpush1.msra.mxu0 0.0
    %1123 = vmatprep.subr.mxu0 0.0
    %1124 = vmatpush1.msra.mxu0 0.0
    %1125 = vmatprep.subr.mxu0 0.0
    %1126 = vmatpush1.msra.mxu0 0.0
    %1127 = vmatprep.subr.mxu0 0.0
    %1128 = vmatpush1.msra.mxu0 0.0
    %1129 = vmatprep.subr.mxu0 0.0
    %1130 = vmatpush1.msra.mxu0 0.0
    %1131 = vmatprep.subr.mxu0 0.0
    %1132 = vmatpush1.msra.mxu0 0.0
    %1133 = vmatprep.subr.mxu0 0.0
    %1134 = vmatpush1.msra.mxu0 0.0
    %1135 = vmatprep.subr.mxu0 0.0
    %1136 = vmatpush1.msra.mxu0 0.0
    %1137 = vmatprep.subr.mxu0 0.0
    %1138 = vmatpush1.msra.mxu0 0.0
    %1139 = vmatprep.subr.mxu0 0.0
    %1140 = vmatpush1.msra.mxu0 0.0
    %1141 = vmatprep.subr.mxu0 0.0
    %1142 = vmatpush1.msra.mxu0 0.0
    %1143 = vmatprep.subr.mxu0 0.0
    %1144 = vmatpush1.msra.mxu0 0.0
    %1145 = vmatprep.subr.mxu0 0.0
    %1146 = vmatpush1.msra.mxu0 0.0
    %1147 = vmatprep.subr.mxu0 0.0
    %1148 = vmatpush1.msra.mxu0 0.0
    %1149 = vmatprep.subr.mxu0 0.0
    %1150 = vmatpush1.msra.mxu0 0.0
    %1151 = vmatprep.subr.mxu0 0.0
    %1152 = vmatpush1.msra.mxu0 0.0
    %1153 = vmatprep.subr.mxu0 0.0
    %1154 = vmatpush1.msra.mxu0 0.0
    %1155 = vmatprep.subr.mxu0 0.0
    %1156 = vmatpush1.msra.mxu0 0.0
    %1157 = vmatprep.subr.mxu0 0.0
    %1158 = vmatpush1.msra.mxu0 0.0
    %1159 = vmatprep.mubr.f32.mxu0 0.0
    %1160 = vmatmul.mubr.f32.gmra.mrb[0].mxu0 %v1093
    %v1161 = vpop.f32.mrb[0].mxu0
    %v1162 = vadd.f32 0.0, %v1161
    %v1163 = vpop.f32.mrb[0].mxu0
    %v1164 = vadd.f32 0.0, %v1163
    %1165 = vdwg.mxu0
    %1167 = vrot.lane.b32.xlu0 %v1089, 64
    %v1168 = vpop.permute.xlu0 %1167
    %v1169 = vsel %vm163, %v1168, 0
    %1171 = vmatprep.subr.mxu0 %v112
    %1172 = vmatpush1.msra.mxu0 %v111
    %1173 = vmatprep.subr.mxu0 %v114
    %1174 = vmatpush1.msra.mxu0 %v113
    %1175 = vmatprep.subr.mxu0 %v116
    %1176 = vmatpush1.msra.mxu0 %v115
    %1177 = vmatprep.subr.mxu0 %v118
    %1178 = vmatpush1.msra.mxu0 %v117
    %1179 = vmatprep.subr.mxu0 %v120
    %1180 = vmatpush1.msra.mxu0 %v119
    %1181 = vmatprep.subr.mxu0 %v122
    %1182 = vmatpush1.msra.mxu0 %v121
    %1183 = vmatprep.subr.mxu0 %v124
    %1184 = vmatpush1.msra.mxu0 %v123
    %1185 = vmatprep.subr.mxu0 %v126
    %1186 = vmatpush1.msra.mxu0 %v125
    %1187 = vmatprep.subr.mxu0 0.0
    %1188 = vmatpush1.msra.mxu0 0.0
    %1189 = vmatprep.subr.mxu0 0.0
    %1190 = vmatpush1.msra.mxu0 0.0
    %1191 = vmatprep.subr.mxu0 0.0
    %1192 = vmatpush1.msra.mxu0 0.0
    %1193 = vmatprep.subr.mxu0 0.0
    %1194 = vmatpush1.msra.mxu0 0.0
    %1195 = vmatprep.subr.mxu0 0.0
    %1196 = vmatpush1.msra.mxu0 0.0
    %1197 = vmatprep.subr.mxu0 0.0
    %1198 = vmatpush1.msra.mxu0 0.0
    %1199 = vmatprep.subr.mxu0 0.0
    %1200 = vmatpush1.msra.mxu0 0.0
    %1201 = vmatprep.subr.mxu0 0.0
    %1202 = vmatpush1.msra.mxu0 0.0
    %1203 = vmatprep.subr.mxu0 0.0
    %1204 = vmatpush1.msra.mxu0 0.0
    %1205 = vmatprep.subr.mxu0 0.0
    %1206 = vmatpush1.msra.mxu0 0.0
    %1207 = vmatprep.subr.mxu0 0.0
    %1208 = vmatpush1.msra.mxu0 0.0
    %1209 = vmatprep.subr.mxu0 0.0
    %1210 = vmatpush1.msra.mxu0 0.0
    %1211 = vmatprep.subr.mxu0 0.0
    %1212 = vmatpush1.msra.mxu0 0.0
    %1213 = vmatprep.subr.mxu0 0.0
    %1214 = vmatpush1.msra.mxu0 0.0
    %1215 = vmatprep.subr.mxu0 0.0
    %1216 = vmatpush1.msra.mxu0 0.0
    %1217 = vmatprep.subr.mxu0 0.0
    %1218 = vmatpush1.msra.mxu0 0.0
    %1219 = vmatprep.subr.mxu0 0.0
    %1220 = vmatpush1.msra.mxu0 0.0
    %1221 = vmatprep.subr.mxu0 0.0
    %1222 = vmatpush1.msra.mxu0 0.0
    %1223 = vmatprep.subr.mxu0 0.0
    %1224 = vmatpush1.msra.mxu0 0.0
    %1225 = vmatprep.subr.mxu0 0.0
    %1226 = vmatpush1.msra.mxu0 0.0
    %1227 = vmatprep.subr.mxu0 0.0
    %1228 = vmatpush1.msra.mxu0 0.0
    %1229 = vmatprep.subr.mxu0 0.0
    %1230 = vmatpush1.msra.mxu0 0.0
    %1231 = vmatprep.subr.mxu0 0.0
    %1232 = vmatpush1.msra.mxu0 0.0
    %1233 = vmatprep.subr.mxu0 0.0
    %1234 = vmatpush1.msra.mxu0 0.0
    %1235 = vmatprep.mubr.f32.mxu0 0.0
    %1236 = vmatmul.mubr.f32.gmra.mrb[0].mxu0 %v1169
    %v1237 = vpop.f32.mrb[0].mxu0
    %v1238 = vadd.f32 %v1162, %v1237
    %v1239 = vpop.f32.mrb[0].mxu0
    %v1240 = vadd.f32 %v1164, %v1239
    %1241 = vdwg.mxu0
    %v1242 = vadd.f32 %v1238, %v148
    %v1243 = vadd.f32 %v1240, %v152
    %v1244 = vxor.u32 %v1242, 2147483648
    %v1245 = vmul.f32 %v1244, 1.442695
    %v1246 = vpow.pop %v1245
    %v1247 = vadd.f32 %v1246, 1.0
    %v1248 = vrcp.pop %v1247
    %v1249 = vmul.f32 1.0, %v1248
    %v1250 = vtanh.pop %v1243
    %v1251 = vxor.u32 %v1243, 2147483648
    %v1252 = vmul.f32 %v1251, 1.442695
    %v1253 = vpow.pop %v1252
    %v1254 = vadd.f32 %v1253, 1.0
    %v1255 = vrcp.pop %v1254
    %v1256 = vmul.f32 1.0, %v1255
    %v1257 = vmul.f32 %v1249, %v989
    %v1258 = vmul.f32 %v1249, %v1250
    %1260 = vrot.lane.b32.xlu0 %v1258, 64
    %v1261 = vpop.permute.xlu0 %1260
    %v1263 = vadd.f32 %v1257, %v1261
    %v1264 = vtanh.pop %v1263
    %v1265 = vmul.f32 %v1256, %v1264
    %s1266 = scalar_lea.vmem [#allocation2], 64
    %v1267 = vld [vmem:[%s1266] sm:$0xff]
    %v1268 = vld [vmem:[%s1266 + $0x8] sm:$0xff]
    %1269 = vmatprep.subr.mxu0 %v96
    %1270 = vmatpush1.msra.mxu0 %v95
    %1271 = vmatprep.subr.mxu0 %v98
    %1272 = vmatpush1.msra.mxu0 %v97
    %1273 = vmatprep.subr.mxu0 %v100
    %1274 = vmatpush1.msra.mxu0 %v99
    %1275 = vmatprep.subr.mxu0 %v102
    %1276 = vmatpush1.msra.mxu0 %v101
    %1277 = vmatprep.subr.mxu0 %v104
    %1278 = vmatpush1.msra.mxu0 %v103
    %1279 = vmatprep.subr.mxu0 %v106
    %1280 = vmatpush1.msra.mxu0 %v105
    %1281 = vmatprep.subr.mxu0 %v108
    %1282 = vmatpush1.msra.mxu0 %v107
    %1283 = vmatprep.subr.mxu0 %v110
    %1284 = vmatpush1.msra.mxu0 %v109
    %1285 = vmatprep.subr.mxu0 0.0
    %1286 = vmatpush1.msra.mxu0 0.0
    %1287 = vmatprep.subr.mxu0 0.0
    %1288 = vmatpush1.msra.mxu0 0.0
    %1289 = vmatprep.subr.mxu0 0.0
    %1290 = vmatpush1.msra.mxu0 0.0
    %1291 = vmatprep.subr.mxu0 0.0
    %1292 = vmatpush1.msra.mxu0 0.0
    %1293 = vmatprep.subr.mxu0 0.0
    %1294 = vmatpush1.msra.mxu0 0.0
    %1295 = vmatprep.subr.mxu0 0.0
    %1296 = vmatpush1.msra.mxu0 0.0
    %1297 = vmatprep.subr.mxu0 0.0
    %1298 = vmatpush1.msra.mxu0 0.0
    %1299 = vmatprep.subr.mxu0 0.0
    %1300 = vmatpush1.msra.mxu0 0.0
    %1301 = vmatprep.subr.mxu0 0.0
    %1302 = vmatpush1.msra.mxu0 0.0
    %1303 = vmatprep.subr.mxu0 0.0
    %1304 = vmatpush1.msra.mxu0 0.0
    %1305 = vmatprep.subr.mxu0 0.0
    %1306 = vmatpush1.msra.mxu0 0.0
    %1307 = vmatprep.subr.mxu0 0.0
    %1308 = vmatpush1.msra.mxu0 0.0
    %1309 = vmatprep.subr.mxu0 0.0
    %1310 = vmatpush1.msra.mxu0 0.0
    %1311 = vmatprep.subr.mxu0 0.0
    %1312 = vmatpush1.msra.mxu0 0.0
    %1313 = vmatprep.subr.mxu0 0.0
    %1314 = vmatpush1.msra.mxu0 0.0
    %1315 = vmatprep.subr.mxu0 0.0
    %1316 = vmatpush1.msra.mxu0 0.0
    %1317 = vmatprep.subr.mxu0 0.0
    %1318 = vmatpush1.msra.mxu0 0.0
    %1319 = vmatprep.subr.mxu0 0.0
    %1320 = vmatpush1.msra.mxu0 0.0
    %1321 = vmatprep.subr.mxu0 0.0
    %1322 = vmatpush1.msra.mxu0 0.0
    %1323 = vmatprep.subr.mxu0 0.0
    %1324 = vmatpush1.msra.mxu0 0.0
    %1325 = vmatprep.subr.mxu0 0.0
    %1326 = vmatpush1.msra.mxu0 0.0
    %1327 = vmatprep.subr.mxu0 0.0
    %1328 = vmatpush1.msra.mxu0 0.0
    %1329 = vmatprep.subr.mxu0 0.0
    %1330 = vmatpush1.msra.mxu0 0.0
    %1331 = vmatprep.subr.mxu0 0.0
    %1332 = vmatpush1.msra.mxu0 0.0
    %1333 = vmatprep.mubr.f32.mxu0 0.0
    %1334 = vmatmul.mubr.f32.gmra.mrb[0].mxu0 %v1169
    %v1335 = vpop.f32.mrb[0].mxu0
    %v1336 = vadd.f32 0.0, %v1335
    %v1337 = vpop.f32.mrb[0].mxu0
    %v1338 = vadd.f32 0.0, %v1337
    %1339 = vdwg.mxu0
    %v1340 = vadd.f32 %v1267, %v1336
    %v1341 = vadd.f32 %v1268, %v1338
    %v1342 = vxor.u32 %v1340, 2147483648
    %v1343 = vmul.f32 %v1342, 1.442695
    %v1344 = vpow.pop %v1343
    %v1345 = vadd.f32 %v1344, 1.0
    %v1346 = vrcp.pop %v1345
    %v1347 = vmul.f32 1.0, %v1346
    %v1348 = vtanh.pop %v1341
    %v1349 = vxor.u32 %v1341, 2147483648
    %v1350 = vmul.f32 %v1349, 1.442695
    %v1351 = vpow.pop %v1350
    %v1352 = vadd.f32 %v1351, 1.0
    %v1353 = vrcp.pop %v1352
    %v1354 = vmul.f32 1.0, %v1353
    %v1355 = vmul.f32 %v1347, %v1087
    %v1356 = vmul.f32 %v1347, %v1348
    %1358 = vrot.lane.b32.xlu0 %v1356, 64
    %v1359 = vpop.permute.xlu0 %1358
    %v1361 = vadd.f32 %v1355, %v1359
    %v1362 = vtanh.pop %v1361
    %v1363 = vmul.f32 %v1354, %v1362
    %1365 = vrot.lane.b32.xlu0 %v1265, 64
    %v1366 = vpop.permute.xlu0 %1365
    %v1367 = vsel %vm163, %v1366, 0
    %1369 = vmatprep.subr.mxu0 %v128
    %1370 = vmatpush1.msra.mxu0 %v127
    %1371 = vmatprep.subr.mxu0 %v130
    %1372 = vmatpush1.msra.mxu0 %v129
    %1373 = vmatprep.subr.mxu0 %v132
    %1374 = vmatpush1.msra.mxu0 %v131
    %1375 = vmatprep.subr.mxu0 %v134
    %1376 = vmatpush1.msra.mxu0 %v133
    %1377 = vmatprep.subr.mxu0 %v136
    %1378 = vmatpush1.msra.mxu0 %v135
    %1379 = vmatprep.subr.mxu0 %v138
    %1380 = vmatpush1.msra.mxu0 %v137
    %1381 = vmatprep.subr.mxu0 %v140
    %1382 = vmatpush1.msra.mxu0 %v139
    %1383 = vmatprep.subr.mxu0 %v142
    %1384 = vmatpush1.msra.mxu0 %v141
    %1385 = vmatprep.subr.mxu0 0.0
    %1386 = vmatpush1.msra.mxu0 0.0
    %1387 = vmatprep.subr.mxu0 0.0
    %1388 = vmatpush1.msra.mxu0 0.0
    %1389 = vmatprep.subr.mxu0 0.0
    %1390 = vmatpush1.msra.mxu0 0.0
    %1391 = vmatprep.subr.mxu0 0.0
    %1392 = vmatpush1.msra.mxu0 0.0
    %1393 = vmatprep.subr.mxu0 0.0
    %1394 = vmatpush1.msra.mxu0 0.0
    %1395 = vmatprep.subr.mxu0 0.0
    %1396 = vmatpush1.msra.mxu0 0.0
    %1397 = vmatprep.subr.mxu0 0.0
    %1398 = vmatpush1.msra.mxu0 0.0
    %1399 = vmatprep.subr.mxu0 0.0
    %1400 = vmatpush1.msra.mxu0 0.0
    %1401 = vmatprep.subr.mxu0 0.0
    %1402 = vmatpush1.msra.mxu0 0.0
    %1403 = vmatprep.subr.mxu0 0.0
    %1404 = vmatpush1.msra.mxu0 0.0
    %1405 = vmatprep.subr.mxu0 0.0
    %1406 = vmatpush1.msra.mxu0 0.0
    %1407 = vmatprep.subr.mxu0 0.0
    %1408 = vmatpush1.msra.mxu0 0.0
    %1409 = vmatprep.subr.mxu0 0.0
    %1410 = vmatpush1.msra.mxu0 0.0
    %1411 = vmatprep.subr.mxu0 0.0
    %1412 = vmatpush1.msra.mxu0 0.0
    %1413 = vmatprep.subr.mxu0 0.0
    %1414 = vmatpush1.msra.mxu0 0.0
    %1415 = vmatprep.subr.mxu0 0.0
    %1416 = vmatpush1.msra.mxu0 0.0
    %1417 = vmatprep.subr.mxu0 0.0
    %1418 = vmatpush1.msra.mxu0 0.0
    %1419 = vmatprep.subr.mxu0 0.0
    %1420 = vmatpush1.msra.mxu0 0.0
    %1421 = vmatprep.subr.mxu0 0.0
    %1422 = vmatpush1.msra.mxu0 0.0
    %1423 = vmatprep.subr.mxu0 0.0
    %1424 = vmatpush1.msra.mxu0 0.0
    %1425 = vmatprep.subr.mxu0 0.0
    %1426 = vmatpush1.msra.mxu0 0.0
    %1427 = vmatprep.subr.mxu0 0.0
    %1428 = vmatpush1.msra.mxu0 0.0
    %1429 = vmatprep.subr.mxu0 0.0
    %1430 = vmatpush1.msra.mxu0 0.0
    %1431 = vmatprep.subr.mxu0 0.0
    %1432 = vmatpush1.msra.mxu0 0.0
    %1433 = vmatprep.mubr.f32.mxu0 0.0
    %1434 = vmatmul.mubr.f32.gmra.mrb[0].mxu0 %v1367
    %v1435 = vpop.f32.mrb[0].mxu0
    %v1436 = vadd.f32 0.0, %v1435
    %v1437 = vpop.f32.mrb[0].mxu0
    %v1438 = vadd.f32 0.0, %v1437
    %1439 = vdwg.mxu0
    %1441 = vrot.lane.b32.xlu0 %v1363, 64
    %v1442 = vpop.permute.xlu0 %1441
    %v1443 = vsel %vm163, %v1442, 0
    %1445 = vmatprep.subr.mxu0 %v112
    %1446 = vmatpush1.msra.mxu0 %v111
    %1447 = vmatprep.subr.mxu0 %v114
    %1448 = vmatpush1.msra.mxu0 %v113
    %1449 = vmatprep.subr.mxu0 %v116
    %1450 = vmatpush1.msra.mxu0 %v115
    %1451 = vmatprep.subr.mxu0 %v118
    %1452 = vmatpush1.msra.mxu0 %v117
    %1453 = vmatprep.subr.mxu0 %v120
    %1454 = vmatpush1.msra.mxu0 %v119
    %1455 = vmatprep.subr.mxu0 %v122
    %1456 = vmatpush1.msra.mxu0 %v121
    %1457 = vmatprep.subr.mxu0 %v124
    %1458 = vmatpush1.msra.mxu0 %v123
    %1459 = vmatprep.subr.mxu0 %v126
    %1460 = vmatpush1.msra.mxu0 %v125
    %1461 = vmatprep.subr.mxu0 0.0
    %1462 = vmatpush1.msra.mxu0 0.0
    %1463 = vmatprep.subr.mxu0 0.0
    %1464 = vmatpush1.msra.mxu0 0.0
    %1465 = vmatprep.subr.mxu0 0.0
    %1466 = vmatpush1.msra.mxu0 0.0
    %1467 = vmatprep.subr.mxu0 0.0
    %1468 = vmatpush1.msra.mxu0 0.0
    %1469 = vmatprep.subr.mxu0 0.0
    %1470 = vmatpush1.msra.mxu0 0.0
    %1471 = vmatprep.subr.mxu0 0.0
    %1472 = vmatpush1.msra.mxu0 0.0
    %1473 = vmatprep.subr.mxu0 0.0
    %1474 = vmatpush1.msra.mxu0 0.0
    %1475 = vmatprep.subr.mxu0 0.0
    %1476 = vmatpush1.msra.mxu0 0.0
    %1477 = vmatprep.subr.mxu0 0.0
    %1478 = vmatpush1.msra.mxu0 0.0
    %1479 = vmatprep.subr.mxu0 0.0
    %1480 = vmatpush1.msra.mxu0 0.0
    %1481 = vmatprep.subr.mxu0 0.0
    %1482 = vmatpush1.msra.mxu0 0.0
    %1483 = vmatprep.subr.mxu0 0.0
    %1484 = vmatpush1.msra.mxu0 0.0
    %1485 = vmatprep.subr.mxu0 0.0
    %1486 = vmatpush1.msra.mxu0 0.0
    %1487 = vmatprep.subr.mxu0 0.0
    %1488 = vmatpush1.msra.mxu0 0.0
    %1489 = vmatprep.subr.mxu0 0.0
    %1490 = vmatpush1.msra.mxu0 0.0
    %1491 = vmatprep.subr.mxu0 0.0
    %1492 = vmatpush1.msra.mxu0 0.0
    %1493 = vmatprep.subr.mxu0 0.0
    %1494 = vmatpush1.msra.mxu0 0.0
    %1495 = vmatprep.subr.mxu0 0.0
    %1496 = vmatpush1.msra.mxu0 0.0
    %1497 = vmatprep.subr.mxu0 0.0
    %1498 = vmatpush1.msra.mxu0 0.0
    %1499 = vmatprep.subr.mxu0 0.0
    %1500 = vmatpush1.msra.mxu0 0.0
    %1501 = vmatprep.subr.mxu0 0.0
    %1502 = vmatpush1.msra.mxu0 0.0
    %1503 = vmatprep.subr.mxu0 0.0
    %1504 = vmatpush1.msra.mxu0 0.0
    %1505 = vmatprep.subr.mxu0 0.0
    %1506 = vmatpush1.msra.mxu0 0.0
    %1507 = vmatprep.subr.mxu0 0.0
    %1508 = vmatpush1.msra.mxu0 0.0
    %1509 = vmatprep.mubr.f32.mxu0 0.0
    %1510 = vmatmul.mubr.f32.gmra.mrb[0].mxu0 %v1443
    %v1511 = vpop.f32.mrb[0].mxu0
    %v1512 = vadd.f32 %v1436, %v1511
    %v1513 = vpop.f32.mrb[0].mxu0
    %v1514 = vadd.f32 %v1438, %v1513
    %1515 = vdwg.mxu0
    %v1516 = vadd.f32 %v1512, %v148
    %v1517 = vadd.f32 %v1514, %v152
    %v1518 = vxor.u32 %v1516, 2147483648
    %v1519 = vmul.f32 %v1518, 1.442695
    %v1520 = vpow.pop %v1519
    %v1521 = vadd.f32 %v1520, 1.0
    %v1522 = vrcp.pop %v1521
    %v1523 = vmul.f32 1.0, %v1522
    %v1524 = vtanh.pop %v1517
    %v1525 = vxor.u32 %v1517, 2147483648
    %v1526 = vmul.f32 %v1525, 1.442695
    %v1527 = vpow.pop %v1526
    %v1528 = vadd.f32 %v1527, 1.0
    %v1529 = vrcp.pop %v1528
    %v1530 = vmul.f32 1.0, %v1529
    %v1531 = vmul.f32 %v1523, %v1263
    %v1532 = vmul.f32 %v1523, %v1524
    %1534 = vrot.lane.b32.xlu0 %v1532, 64
    %v1535 = vpop.permute.xlu0 %1534
    %v1537 = vadd.f32 %v1531, %v1535
    %v1538 = vtanh.pop %v1537
    %v1539 = vmul.f32 %v1530, %v1538
    %s1540 = scalar_lea.vmem [#allocation2], 80
    %v1541 = vld [vmem:[%s1540] sm:$0xff]
    %v1542 = vld [vmem:[%s1540 + $0x8] sm:$0xff]
    %1543 = vmatprep.subr.mxu0 %v96
    %1544 = vmatpush1.msra.mxu0 %v95
    %1545 = vmatprep.subr.mxu0 %v98
    %1546 = vmatpush1.msra.mxu0 %v97
    %1547 = vmatprep.subr.mxu0 %v100
    %1548 = vmatpush1.msra.mxu0 %v99
    %1549 = vmatprep.subr.mxu0 %v102
    %1550 = vmatpush1.msra.mxu0 %v101
    %1551 = vmatprep.subr.mxu0 %v104
    %1552 = vmatpush1.msra.mxu0 %v103
    %1553 = vmatprep.subr.mxu0 %v106
    %1554 = vmatpush1.msra.mxu0 %v105
    %1555 = vmatprep.subr.mxu0 %v108
    %1556 = vmatpush1.msra.mxu0 %v107
    %1557 = vmatprep.subr.mxu0 %v110
    %1558 = vmatpush1.msra.mxu0 %v109
    %1559 = vmatprep.subr.mxu0 0.0
    %1560 = vmatpush1.msra.mxu0 0.0
    %1561 = vmatprep.subr.mxu0 0.0
    %1562 = vmatpush1.msra.mxu0 0.0
    %1563 = vmatprep.subr.mxu0 0.0
    %1564 = vmatpush1.msra.mxu0 0.0
    %1565 = vmatprep.subr.mxu0 0.0
    %1566 = vmatpush1.msra.mxu0 0.0
    %1567 = vmatprep.subr.mxu0 0.0
    %1568 = vmatpush1.msra.mxu0 0.0
    %1569 = vmatprep.subr.mxu0 0.0
    %1570 = vmatpush1.msra.mxu0 0.0
    %1571 = vmatprep.subr.mxu0 0.0
    %1572 = vmatpush1.msra.mxu0 0.0
    %1573 = vmatprep.subr.mxu0 0.0
    %1574 = vmatpush1.msra.mxu0 0.0
    %1575 = vmatprep.subr.mxu0 0.0
    %1576 = vmatpush1.msra.mxu0 0.0
    %1577 = vmatprep.subr.mxu0 0.0
    %1578 = vmatpush1.msra.mxu0 0.0
    %1579 = vmatprep.subr.mxu0 0.0
    %1580 = vmatpush1.msra.mxu0 0.0
    %1581 = vmatprep.subr.mxu0 0.0
    %1582 = vmatpush1.msra.mxu0 0.0
    %1583 = vmatprep.subr.mxu0 0.0
    %1584 = vmatpush1.msra.mxu0 0.0
    %1585 = vmatprep.subr.mxu0 0.0
    %1586 = vmatpush1.msra.mxu0 0.0
    %1587 = vmatprep.subr.mxu0 0.0
    %1588 = vmatpush1.msra.mxu0 0.0
    %1589 = vmatprep.subr.mxu0 0.0
    %1590 = vmatpush1.msra.mxu0 0.0
    %1591 = vmatprep.subr.mxu0 0.0
    %1592 = vmatpush1.msra.mxu0 0.0
    %1593 = vmatprep.subr.mxu0 0.0
    %1594 = vmatpush1.msra.mxu0 0.0
    %1595 = vmatprep.subr.mxu0 0.0
    %1596 = vmatpush1.msra.mxu0 0.0
    %1597 = vmatprep.subr.mxu0 0.0
    %1598 = vmatpush1.msra.mxu0 0.0
    %1599 = vmatprep.subr.mxu0 0.0
    %1600 = vmatpush1.msra.mxu0 0.0
    %1601 = vmatprep.subr.mxu0 0.0
    %1602 = vmatpush1.msra.mxu0 0.0
    %1603 = vmatprep.subr.mxu0 0.0
    %1604 = vmatpush1.msra.mxu0 0.0
    %1605 = vmatprep.subr.mxu0 0.0
    %1606 = vmatpush1.msra.mxu0 0.0
    %1607 = vmatprep.mubr.f32.mxu0 0.0
    %1608 = vmatmul.mubr.f32.gmra.mrb[0].mxu0 %v1443
    %v1609 = vpop.f32.mrb[0].mxu0
    %v1610 = vadd.f32 0.0, %v1609
    %v1611 = vpop.f32.mrb[0].mxu0
    %v1612 = vadd.f32 0.0, %v1611
    %1613 = vdwg.mxu0
    %v1614 = vadd.f32 %v1541, %v1610
    %v1615 = vadd.f32 %v1542, %v1612
    %v1616 = vxor.u32 %v1614, 2147483648
    %v1617 = vmul.f32 %v1616, 1.442695
    %v1618 = vpow.pop %v1617
    %v1619 = vadd.f32 %v1618, 1.0
    %v1620 = vrcp.pop %v1619
    %v1621 = vmul.f32 1.0, %v1620
    %v1622 = vtanh.pop %v1615
    %v1623 = vxor.u32 %v1615, 2147483648
    %v1624 = vmul.f32 %v1623, 1.442695
    %v1625 = vpow.pop %v1624
    %v1626 = vadd.f32 %v1625, 1.0
    %v1627 = vrcp.pop %v1626
    %v1628 = vmul.f32 1.0, %v1627
    %v1629 = vmul.f32 %v1621, %v1361
    %v1630 = vmul.f32 %v1621, %v1622
    %1632 = vrot.lane.b32.xlu0 %v1630, 64
    %v1633 = vpop.permute.xlu0 %1632
    %v1635 = vadd.f32 %v1629, %v1633
    %v1636 = vtanh.pop %v1635
    %v1637 = vmul.f32 %v1628, %v1636
    %1639 = vrot.lane.b32.xlu0 %v1539, 64
    %v1640 = vpop.permute.xlu0 %1639
    %v1641 = vsel %vm163, %v1640, 0
    %1643 = vmatprep.subr.mxu0 %v128
    %1644 = vmatpush1.msra.mxu0 %v127
    %1645 = vmatprep.subr.mxu0 %v130
    %1646 = vmatpush1.msra.mxu0 %v129
    %1647 = vmatprep.subr.mxu0 %v132
    %1648 = vmatpush1.msra.mxu0 %v131
    %1649 = vmatprep.subr.mxu0 %v134
    %1650 = vmatpush1.msra.mxu0 %v133
    %1651 = vmatprep.subr.mxu0 %v136
    %1652 = vmatpush1.msra.mxu0 %v135
    %1653 = vmatprep.subr.mxu0 %v138
    %1654 = vmatpush1.msra.mxu0 %v137
    %1655 = vmatprep.subr.mxu0 %v140
    %1656 = vmatpush1.msra.mxu0 %v139
    %1657 = vmatprep.subr.mxu0 %v142
    %1658 = vmatpush1.msra.mxu0 %v141
    %1659 = vmatprep.subr.mxu0 0.0
    %1660 = vmatpush1.msra.mxu0 0.0
    %1661 = vmatprep.subr.mxu0 0.0
    %1662 = vmatpush1.msra.mxu0 0.0
    %1663 = vmatprep.subr.mxu0 0.0
    %1664 = vmatpush1.msra.mxu0 0.0
    %1665 = vmatprep.subr.mxu0 0.0
    %1666 = vmatpush1.msra.mxu0 0.0
    %1667 = vmatprep.subr.mxu0 0.0
    %1668 = vmatpush1.msra.mxu0 0.0
    %1669 = vmatprep.subr.mxu0 0.0
    %1670 = vmatpush1.msra.mxu0 0.0
    %1671 = vmatprep.subr.mxu0 0.0
    %1672 = vmatpush1.msra.mxu0 0.0
    %1673 = vmatprep.subr.mxu0 0.0
    %1674 = vmatpush1.msra.mxu0 0.0
    %1675 = vmatprep.subr.mxu0 0.0
    %1676 = vmatpush1.msra.mxu0 0.0
    %1677 = vmatprep.subr.mxu0 0.0
    %1678 = vmatpush1.msra.mxu0 0.0
    %1679 = vmatprep.subr.mxu0 0.0
    %1680 = vmatpush1.msra.mxu0 0.0
    %1681 = vmatprep.subr.mxu0 0.0
    %1682 = vmatpush1.msra.mxu0 0.0
    %1683 = vmatprep.subr.mxu0 0.0
    %1684 = vmatpush1.msra.mxu0 0.0
    %1685 = vmatprep.subr.mxu0 0.0
    %1686 = vmatpush1.msra.mxu0 0.0
    %1687 = vmatprep.subr.mxu0 0.0
    %1688 = vmatpush1.msra.mxu0 0.0
    %1689 = vmatprep.subr.mxu0 0.0
    %1690 = vmatpush1.msra.mxu0 0.0
    %1691 = vmatprep.subr.mxu0 0.0
    %1692 = vmatpush1.msra.mxu0 0.0
    %1693 = vmatprep.subr.mxu0 0.0
    %1694 = vmatpush1.msra.mxu0 0.0
    %1695 = vmatprep.subr.mxu0 0.0
    %1696 = vmatpush1.msra.mxu0 0.0
    %1697 = vmatprep.subr.mxu0 0.0
    %1698 = vmatpush1.msra.mxu0 0.0
    %1699 = vmatprep.subr.mxu0 0.0
    %1700 = vmatpush1.msra.mxu0 0.0
    %1701 = vmatprep.subr.mxu0 0.0
    %1702 = vmatpush1.msra.mxu0 0.0
    %1703 = vmatprep.subr.mxu0 0.0
    %1704 = vmatpush1.msra.mxu0 0.0
    %1705 = vmatprep.subr.mxu0 0.0
    %1706 = vmatpush1.msra.mxu0 0.0
    %1707 = vmatprep.mubr.f32.mxu0 0.0
    %1708 = vmatmul.mubr.f32.gmra.mrb[0].mxu0 %v1641
    %v1709 = vpop.f32.mrb[0].mxu0
    %v1710 = vadd.f32 0.0, %v1709
    %v1711 = vpop.f32.mrb[0].mxu0
    %v1712 = vadd.f32 0.0, %v1711
    %1713 = vdwg.mxu0
    %1715 = vrot.lane.b32.xlu0 %v1637, 64
    %v1716 = vpop.permute.xlu0 %1715
    %v1717 = vsel %vm163, %v1716, 0
    %1719 = vmatprep.subr.mxu0 %v112
    %1720 = vmatpush1.msra.mxu0 %v111
    %1721 = vmatprep.subr.mxu0 %v114
    %1722 = vmatpush1.msra.mxu0 %v113
    %1723 = vmatprep.subr.mxu0 %v116
    %1724 = vmatpush1.msra.mxu0 %v115
    %1725 = vmatprep.subr.mxu0 %v118
    %1726 = vmatpush1.msra.mxu0 %v117
    %1727 = vmatprep.subr.mxu0 %v120
    %1728 = vmatpush1.msra.mxu0 %v119
    %1729 = vmatprep.subr.mxu0 %v122
    %1730 = vmatpush1.msra.mxu0 %v121
    %1731 = vmatprep.subr.mxu0 %v124
    %1732 = vmatpush1.msra.mxu0 %v123
    %1733 = vmatprep.subr.mxu0 %v126
    %1734 = vmatpush1.msra.mxu0 %v125
    %1735 = vmatprep.subr.mxu0 0.0
    %1736 = vmatpush1.msra.mxu0 0.0
    %1737 = vmatprep.subr.mxu0 0.0
    %1738 = vmatpush1.msra.mxu0 0.0
    %1739 = vmatprep.subr.mxu0 0.0
    %1740 = vmatpush1.msra.mxu0 0.0
    %1741 = vmatprep.subr.mxu0 0.0
    %1742 = vmatpush1.msra.mxu0 0.0
    %1743 = vmatprep.subr.mxu0 0.0
    %1744 = vmatpush1.msra.mxu0 0.0
    %1745 = vmatprep.subr.mxu0 0.0
    %1746 = vmatpush1.msra.mxu0 0.0
    %1747 = vmatprep.subr.mxu0 0.0
    %1748 = vmatpush1.msra.mxu0 0.0
    %1749 = vmatprep.subr.mxu0 0.0
    %1750 = vmatpush1.msra.mxu0 0.0
    %1751 = vmatprep.subr.mxu0 0.0
    %1752 = vmatpush1.msra.mxu0 0.0
    %1753 = vmatprep.subr.mxu0 0.0
    %1754 = vmatpush1.msra.mxu0 0.0
    %1755 = vmatprep.subr.mxu0 0.0
    %1756 = vmatpush1.msra.mxu0 0.0
    %1757 = vmatprep.subr.mxu0 0.0
    %1758 = vmatpush1.msra.mxu0 0.0
    %1759 = vmatprep.subr.mxu0 0.0
    %1760 = vmatpush1.msra.mxu0 0.0
    %1761 = vmatprep.subr.mxu0 0.0
    %1762 = vmatpush1.msra.mxu0 0.0
    %1763 = vmatprep.subr.mxu0 0.0
    %1764 = vmatpush1.msra.mxu0 0.0
    %1765 = vmatprep.subr.mxu0 0.0
    %1766 = vmatpush1.msra.mxu0 0.0
    %1767 = vmatprep.subr.mxu0 0.0
    %1768 = vmatpush1.msra.mxu0 0.0
    %1769 = vmatprep.subr.mxu0 0.0
    %1770 = vmatpush1.msra.mxu0 0.0
    %1771 = vmatprep.subr.mxu0 0.0
    %1772 = vmatpush1.msra.mxu0 0.0
    %1773 = vmatprep.subr.mxu0 0.0
    %1774 = vmatpush1.msra.mxu0 0.0
    %1775 = vmatprep.subr.mxu0 0.0
    %1776 = vmatpush1.msra.mxu0 0.0
    %1777 = vmatprep.subr.mxu0 0.0
    %1778 = vmatpush1.msra.mxu0 0.0
    %1779 = vmatprep.subr.mxu0 0.0
    %1780 = vmatpush1.msra.mxu0 0.0
    %1781 = vmatprep.subr.mxu0 0.0
    %1782 = vmatpush1.msra.mxu0 0.0
    %1783 = vmatprep.mubr.f32.mxu0 0.0
    %1784 = vmatmul.mubr.f32.gmra.mrb[0].mxu0 %v1717
    %v1785 = vpop.f32.mrb[0].mxu0
    %v1786 = vadd.f32 %v1710, %v1785
    %v1787 = vpop.f32.mrb[0].mxu0
    %v1788 = vadd.f32 %v1712, %v1787
    %1789 = vdwg.mxu0
    %v1790 = vadd.f32 %v1786, %v148
    %v1791 = vadd.f32 %v1788, %v152
    %v1792 = vxor.u32 %v1790, 2147483648
    %v1793 = vmul.f32 %v1792, 1.442695
    %v1794 = vpow.pop %v1793
    %v1795 = vadd.f32 %v1794, 1.0
    %v1796 = vrcp.pop %v1795
    %v1797 = vmul.f32 1.0, %v1796
    %v1798 = vtanh.pop %v1791
    %v1799 = vxor.u32 %v1791, 2147483648
    %v1800 = vmul.f32 %v1799, 1.442695
    %v1801 = vpow.pop %v1800
    %v1802 = vadd.f32 %v1801, 1.0
    %v1803 = vrcp.pop %v1802
    %v1804 = vmul.f32 1.0, %v1803
    %v1805 = vmul.f32 %v1797, %v1537
    %v1806 = vmul.f32 %v1797, %v1798
    %1808 = vrot.lane.b32.xlu0 %v1806, 64
    %v1809 = vpop.permute.xlu0 %1808
    %v1811 = vadd.f32 %v1805, %v1809
    %v1812 = vtanh.pop %v1811
    %v1813 = vmul.f32 %v1804, %v1812
    %s1814 = scalar_lea.vmem [#allocation2], 96
    %v1815 = vld [vmem:[%s1814] sm:$0xff]
    %v1816 = vld [vmem:[%s1814 + $0x8] sm:$0xff]
    %1817 = vmatprep.subr.mxu0 %v96
    %1818 = vmatpush1.msra.mxu0 %v95
    %1819 = vmatprep.subr.mxu0 %v98
    %1820 = vmatpush1.msra.mxu0 %v97
    %1821 = vmatprep.subr.mxu0 %v100
    %1822 = vmatpush1.msra.mxu0 %v99
    %1823 = vmatprep.subr.mxu0 %v102
    %1824 = vmatpush1.msra.mxu0 %v101
    %1825 = vmatprep.subr.mxu0 %v104
    %1826 = vmatpush1.msra.mxu0 %v103
    %1827 = vmatprep.subr.mxu0 %v106
    %1828 = vmatpush1.msra.mxu0 %v105
    %1829 = vmatprep.subr.mxu0 %v108
    %1830 = vmatpush1.msra.mxu0 %v107
    %1831 = vmatprep.subr.mxu0 %v110
    %1832 = vmatpush1.msra.mxu0 %v109
    %1833 = vmatprep.subr.mxu0 0.0
    %1834 = vmatpush1.msra.mxu0 0.0
    %1835 = vmatprep.subr.mxu0 0.0
    %1836 = vmatpush1.msra.mxu0 0.0
    %1837 = vmatprep.subr.mxu0 0.0
    %1838 = vmatpush1.msra.mxu0 0.0
    %1839 = vmatprep.subr.mxu0 0.0
    %1840 = vmatpush1.msra.mxu0 0.0
    %1841 = vmatprep.subr.mxu0 0.0
    %1842 = vmatpush1.msra.mxu0 0.0
    %1843 = vmatprep.subr.mxu0 0.0
    %1844 = vmatpush1.msra.mxu0 0.0
    %1845 = vmatprep.subr.mxu0 0.0
    %1846 = vmatpush1.msra.mxu0 0.0
    %1847 = vmatprep.subr.mxu0 0.0
    %1848 = vmatpush1.msra.mxu0 0.0
    %1849 = vmatprep.subr.mxu0 0.0
    %1850 = vmatpush1.msra.mxu0 0.0
    %1851 = vmatprep.subr.mxu0 0.0
    %1852 = vmatpush1.msra.mxu0 0.0
    %1853 = vmatprep.subr.mxu0 0.0
    %1854 = vmatpush1.msra.mxu0 0.0
    %1855 = vmatprep.subr.mxu0 0.0
    %1856 = vmatpush1.msra.mxu0 0.0
    %1857 = vmatprep.subr.mxu0 0.0
    %1858 = vmatpush1.msra.mxu0 0.0
    %1859 = vmatprep.subr.mxu0 0.0
    %1860 = vmatpush1.msra.mxu0 0.0
    %1861 = vmatprep.subr.mxu0 0.0
    %1862 = vmatpush1.msra.mxu0 0.0
    %1863 = vmatprep.subr.mxu0 0.0
    %1864 = vmatpush1.msra.mxu0 0.0
    %1865 = vmatprep.subr.mxu0 0.0
    %1866 = vmatpush1.msra.mxu0 0.0
    %1867 = vmatprep.subr.mxu0 0.0
    %1868 = vmatpush1.msra.mxu0 0.0
    %1869 = vmatprep.subr.mxu0 0.0
    %1870 = vmatpush1.msra.mxu0 0.0
    %1871 = vmatprep.subr.mxu0 0.0
    %1872 = vmatpush1.msra.mxu0 0.0
    %1873 = vmatprep.subr.mxu0 0.0
    %1874 = vmatpush1.msra.mxu0 0.0
    %1875 = vmatprep.subr.mxu0 0.0
    %1876 = vmatpush1.msra.mxu0 0.0
    %1877 = vmatprep.subr.mxu0 0.0
    %1878 = vmatpush1.msra.mxu0 0.0
    %1879 = vmatprep.subr.mxu0 0.0
    %1880 = vmatpush1.msra.mxu0 0.0
    %1881 = vmatprep.mubr.f32.mxu0 0.0
    %1882 = vmatmul.mubr.f32.gmra.mrb[0].mxu0 %v1717
    %v1883 = vpop.f32.mrb[0].mxu0
    %v1884 = vadd.f32 0.0, %v1883
    %v1885 = vpop.f32.mrb[0].mxu0
    %v1886 = vadd.f32 0.0, %v1885
    %1887 = vdwg.mxu0
    %v1888 = vadd.f32 %v1815, %v1884
    %v1889 = vadd.f32 %v1816, %v1886
    %v1890 = vxor.u32 %v1888, 2147483648
    %v1891 = vmul.f32 %v1890, 1.442695
    %v1892 = vpow.pop %v1891
    %v1893 = vadd.f32 %v1892, 1.0
    %v1894 = vrcp.pop %v1893
    %v1895 = vmul.f32 1.0, %v1894
    %v1896 = vtanh.pop %v1889
    %v1897 = vxor.u32 %v1889, 2147483648
    %v1898 = vmul.f32 %v1897, 1.442695
    %v1899 = vpow.pop %v1898
    %v1900 = vadd.f32 %v1899, 1.0
    %v1901 = vrcp.pop %v1900
    %v1902 = vmul.f32 1.0, %v1901
    %v1903 = vmul.f32 %v1895, %v1635
    %v1904 = vmul.f32 %v1895, %v1896
    %1906 = vrot.lane.b32.xlu0 %v1904, 64
    %v1907 = vpop.permute.xlu0 %1906
    %v1909 = vadd.f32 %v1903, %v1907
    %v1910 = vtanh.pop %v1909
    %v1911 = vmul.f32 %v1902, %v1910
    %1913 = vrot.lane.b32.xlu0 %v1813, 64
    %v1914 = vpop.permute.xlu0 %1913
    %v1915 = vsel %vm163, %v1914, 0
    %1917 = vmatprep.subr.mxu0 %v128
    %1918 = vmatpush1.msra.mxu0 %v127
    %1919 = vmatprep.subr.mxu0 %v130
    %1920 = vmatpush1.msra.mxu0 %v129
    %1921 = vmatprep.subr.mxu0 %v132
    %1922 = vmatpush1.msra.mxu0 %v131
    %1923 = vmatprep.subr.mxu0 %v134
    %1924 = vmatpush1.msra.mxu0 %v133
    %1925 = vmatprep.subr.mxu0 %v136
    %1926 = vmatpush1.msra.mxu0 %v135
    %1927 = vmatprep.subr.mxu0 %v138
    %1928 = vmatpush1.msra.mxu0 %v137
    %1929 = vmatprep.subr.mxu0 %v140
    %1930 = vmatpush1.msra.mxu0 %v139
    %1931 = vmatprep.subr.mxu0 %v142
    %1932 = vmatpush1.msra.mxu0 %v141
    %1933 = vmatprep.subr.mxu0 0.0
    %1934 = vmatpush1.msra.mxu0 0.0
    %1935 = vmatprep.subr.mxu0 0.0
    %1936 = vmatpush1.msra.mxu0 0.0
    %1937 = vmatprep.subr.mxu0 0.0
    %1938 = vmatpush1.msra.mxu0 0.0
    %1939 = vmatprep.subr.mxu0 0.0
    %1940 = vmatpush1.msra.mxu0 0.0
    %1941 = vmatprep.subr.mxu0 0.0
    %1942 = vmatpush1.msra.mxu0 0.0
    %1943 = vmatprep.subr.mxu0 0.0
    %1944 = vmatpush1.msra.mxu0 0.0
    %1945 = vmatprep.subr.mxu0 0.0
    %1946 = vmatpush1.msra.mxu0 0.0
    %1947 = vmatprep.subr.mxu0 0.0
    %1948 = vmatpush1.msra.mxu0 0.0
    %1949 = vmatprep.subr.mxu0 0.0
    %1950 = vmatpush1.msra.mxu0 0.0
    %1951 = vmatprep.subr.mxu0 0.0
    %1952 = vmatpush1.msra.mxu0 0.0
    %1953 = vmatprep.subr.mxu0 0.0
    %1954 = vmatpush1.msra.mxu0 0.0
    %1955 = vmatprep.subr.mxu0 0.0
    %1956 = vmatpush1.msra.mxu0 0.0
    %1957 = vmatprep.subr.mxu0 0.0
    %1958 = vmatpush1.msra.mxu0 0.0
    %1959 = vmatprep.subr.mxu0 0.0
    %1960 = vmatpush1.msra.mxu0 0.0
    %1961 = vmatprep.subr.mxu0 0.0
    %1962 = vmatpush1.msra.mxu0 0.0
    %1963 = vmatprep.subr.mxu0 0.0
    %1964 = vmatpush1.msra.mxu0 0.0
    %1965 = vmatprep.subr.mxu0 0.0
    %1966 = vmatpush1.msra.mxu0 0.0
    %1967 = vmatprep.subr.mxu0 0.0
    %1968 = vmatpush1.msra.mxu0 0.0
    %1969 = vmatprep.subr.mxu0 0.0
    %1970 = vmatpush1.msra.mxu0 0.0
    %1971 = vmatprep.subr.mxu0 0.0
    %1972 = vmatpush1.msra.mxu0 0.0
    %1973 = vmatprep.subr.mxu0 0.0
    %1974 = vmatpush1.msra.mxu0 0.0
    %1975 = vmatprep.subr.mxu0 0.0
    %1976 = vmatpush1.msra.mxu0 0.0
    %1977 = vmatprep.subr.mxu0 0.0
    %1978 = vmatpush1.msra.mxu0 0.0
    %1979 = vmatprep.subr.mxu0 0.0
    %1980 = vmatpush1.msra.mxu0 0.0
    %1981 = vmatprep.mubr.f32.mxu0 0.0
    %1982 = vmatmul.mubr.f32.gmra.mrb[0].mxu0 %v1915
    %v1983 = vpop.f32.mrb[0].mxu0
    %v1984 = vadd.f32 0.0, %v1983
    %v1985 = vpop.f32.mrb[0].mxu0
    %v1986 = vadd.f32 0.0, %v1985
    %1987 = vdwg.mxu0
    %1989 = vrot.lane.b32.xlu0 %v1911, 64
    %v1990 = vpop.permute.xlu0 %1989
    %v1991 = vsel %vm163, %v1990, 0
    %1993 = vmatprep.subr.mxu0 %v112
    %1994 = vmatpush1.msra.mxu0 %v111
    %1995 = vmatprep.subr.mxu0 %v114
    %1996 = vmatpush1.msra.mxu0 %v113
    %1997 = vmatprep.subr.mxu0 %v116
    %1998 = vmatpush1.msra.mxu0 %v115
    %1999 = vmatprep.subr.mxu0 %v118
    %2000 = vmatpush1.msra.mxu0 %v117
    %2001 = vmatprep.subr.mxu0 %v120
    %2002 = vmatpush1.msra.mxu0 %v119
    %2003 = vmatprep.subr.mxu0 %v122
    %2004 = vmatpush1.msra.mxu0 %v121
    %2005 = vmatprep.subr.mxu0 %v124
    %2006 = vmatpush1.msra.mxu0 %v123
    %2007 = vmatprep.subr.mxu0 %v126
    %2008 = vmatpush1.msra.mxu0 %v125
    %2009 = vmatprep.subr.mxu0 0.0
    %2010 = vmatpush1.msra.mxu0 0.0
    %2011 = vmatprep.subr.mxu0 0.0
    %2012 = vmatpush1.msra.mxu0 0.0
    %2013 = vmatprep.subr.mxu0 0.0
    %2014 = vmatpush1.msra.mxu0 0.0
    %2015 = vmatprep.subr.mxu0 0.0
    %2016 = vmatpush1.msra.mxu0 0.0
    %2017 = vmatprep.subr.mxu0 0.0
    %2018 = vmatpush1.msra.mxu0 0.0
    %2019 = vmatprep.subr.mxu0 0.0
    %2020 = vmatpush1.msra.mxu0 0.0
    %2021 = vmatprep.subr.mxu0 0.0
    %2022 = vmatpush1.msra.mxu0 0.0
    %2023 = vmatprep.subr.mxu0 0.0
    %2024 = vmatpush1.msra.mxu0 0.0
    %2025 = vmatprep.subr.mxu0 0.0
    %2026 = vmatpush1.msra.mxu0 0.0
    %2027 = vmatprep.subr.mxu0 0.0
    %2028 = vmatpush1.msra.mxu0 0.0
    %2029 = vmatprep.subr.mxu0 0.0
    %2030 = vmatpush1.msra.mxu0 0.0
    %2031 = vmatprep.subr.mxu0 0.0
    %2032 = vmatpush1.msra.mxu0 0.0
    %2033 = vmatprep.subr.mxu0 0.0
    %2034 = vmatpush1.msra.mxu0 0.0
    %2035 = vmatprep.subr.mxu0 0.0
    %2036 = vmatpush1.msra.mxu0 0.0
    %2037 = vmatprep.subr.mxu0 0.0
    %2038 = vmatpush1.msra.mxu0 0.0
    %2039 = vmatprep.subr.mxu0 0.0
    %2040 = vmatpush1.msra.mxu0 0.0
    %2041 = vmatprep.subr.mxu0 0.0
    %2042 = vmatpush1.msra.mxu0 0.0
    %2043 = vmatprep.subr.mxu0 0.0
    %2044 = vmatpush1.msra.mxu0 0.0
    %2045 = vmatprep.subr.mxu0 0.0
    %2046 = vmatpush1.msra.mxu0 0.0
    %2047 = vmatprep.subr.mxu0 0.0
    %2048 = vmatpush1.msra.mxu0 0.0
    %2049 = vmatprep.subr.mxu0 0.0
    %2050 = vmatpush1.msra.mxu0 0.0
    %2051 = vmatprep.subr.mxu0 0.0
    %2052 = vmatpush1.msra.mxu0 0.0
    %2053 = vmatprep.subr.mxu0 0.0
    %2054 = vmatpush1.msra.mxu0 0.0
    %2055 = vmatprep.subr.mxu0 0.0
    %2056 = vmatpush1.msra.mxu0 0.0
    %2057 = vmatprep.mubr.f32.mxu0 0.0
    %2058 = vmatmul.mubr.f32.gmra.mrb[0].mxu0 %v1991
    %v2059 = vpop.f32.mrb[0].mxu0
    %v2060 = vadd.f32 %v1984, %v2059
    %v2061 = vpop.f32.mrb[0].mxu0
    %v2062 = vadd.f32 %v1986, %v2061
    %2063 = vdwg.mxu0
    %v2064 = vadd.f32 %v2060, %v148
    %v2065 = vadd.f32 %v2062, %v152
    %v2066 = vxor.u32 %v2064, 2147483648
    %v2067 = vmul.f32 %v2066, 1.442695
    %v2068 = vpow.pop %v2067
    %v2069 = vadd.f32 %v2068, 1.0
    %v2070 = vrcp.pop %v2069
    %v2071 = vmul.f32 1.0, %v2070
    %v2072 = vtanh.pop %v2065
    %v2073 = vxor.u32 %v2065, 2147483648
    %v2074 = vmul.f32 %v2073, 1.442695
    %v2075 = vpow.pop %v2074
    %v2076 = vadd.f32 %v2075, 1.0
    %v2077 = vrcp.pop %v2076
    %v2078 = vmul.f32 1.0, %v2077
    %v2079 = vmul.f32 %v2071, %v1811
    %v2080 = vmul.f32 %v2071, %v2072
    %2082 = vrot.lane.b32.xlu0 %v2080, 64
    %v2083 = vpop.permute.xlu0 %2082
    %v2085 = vadd.f32 %v2079, %v2083
    %v2086 = vtanh.pop %v2085
    %v2087 = vmul.f32 %v2078, %v2086
    %s2088 = scalar_lea.vmem [#allocation2], 112
    %v2089 = vld [vmem:[%s2088] sm:$0xff]
    %v2090 = vld [vmem:[%s2088 + $0x8] sm:$0xff]
    %2091 = vmatprep.subr.mxu0 %v96
    %2092 = vmatpush1.msra.mxu0 %v95
    %2093 = vmatprep.subr.mxu0 %v98
    %2094 = vmatpush1.msra.mxu0 %v97
    %2095 = vmatprep.subr.mxu0 %v100
    %2096 = vmatpush1.msra.mxu0 %v99
    %2097 = vmatprep.subr.mxu0 %v102
    %2098 = vmatpush1.msra.mxu0 %v101
    %2099 = vmatprep.subr.mxu0 %v104
    %2100 = vmatpush1.msra.mxu0 %v103
    %2101 = vmatprep.subr.mxu0 %v106
    %2102 = vmatpush1.msra.mxu0 %v105
    %2103 = vmatprep.subr.mxu0 %v108
    %2104 = vmatpush1.msra.mxu0 %v107
    %2105 = vmatprep.subr.mxu0 %v110
    %2106 = vmatpush1.msra.mxu0 %v109
    %2107 = vmatprep.subr.mxu0 0.0
    %2108 = vmatpush1.msra.mxu0 0.0
    %2109 = vmatprep.subr.mxu0 0.0
    %2110 = vmatpush1.msra.mxu0 0.0
    %2111 = vmatprep.subr.mxu0 0.0
    %2112 = vmatpush1.msra.mxu0 0.0
    %2113 = vmatprep.subr.mxu0 0.0
    %2114 = vmatpush1.msra.mxu0 0.0
    %2115 = vmatprep.subr.mxu0 0.0
    %2116 = vmatpush1.msra.mxu0 0.0
    %2117 = vmatprep.subr.mxu0 0.0
    %2118 = vmatpush1.msra.mxu0 0.0
    %2119 = vmatprep.subr.mxu0 0.0
    %2120 = vmatpush1.msra.mxu0 0.0
    %2121 = vmatprep.subr.mxu0 0.0
    %2122 = vmatpush1.msra.mxu0 0.0
    %2123 = vmatprep.subr.mxu0 0.0
    %2124 = vmatpush1.msra.mxu0 0.0
    %2125 = vmatprep.subr.mxu0 0.0
    %2126 = vmatpush1.msra.mxu0 0.0
    %2127 = vmatprep.subr.mxu0 0.0
    %2128 = vmatpush1.msra.mxu0 0.0
    %2129 = vmatprep.subr.mxu0 0.0
    %2130 = vmatpush1.msra.mxu0 0.0
    %2131 = vmatprep.subr.mxu0 0.0
    %2132 = vmatpush1.msra.mxu0 0.0
    %2133 = vmatprep.subr.mxu0 0.0
    %2134 = vmatpush1.msra.mxu0 0.0
    %2135 = vmatprep.subr.mxu0 0.0
    %2136 = vmatpush1.msra.mxu0 0.0
    %2137 = vmatprep.subr.mxu0 0.0
    %2138 = vmatpush1.msra.mxu0 0.0
    %2139 = vmatprep.subr.mxu0 0.0
    %2140 = vmatpush1.msra.mxu0 0.0
    %2141 = vmatprep.subr.mxu0 0.0
    %2142 = vmatpush1.msra.mxu0 0.0
    %2143 = vmatprep.subr.mxu0 0.0
    %2144 = vmatpush1.msra.mxu0 0.0
    %2145 = vmatprep.subr.mxu0 0.0
    %2146 = vmatpush1.msra.mxu0 0.0
    %2147 = vmatprep.subr.mxu0 0.0
    %2148 = vmatpush1.msra.mxu0 0.0
    %2149 = vmatprep.subr.mxu0 0.0
    %2150 = vmatpush1.msra.mxu0 0.0
    %2151 = vmatprep.subr.mxu0 0.0
    %2152 = vmatpush1.msra.mxu0 0.0
    %2153 = vmatprep.subr.mxu0 0.0
    %2154 = vmatpush1.msra.mxu0 0.0
    %2155 = vmatprep.mubr.f32.mxu0 0.0
    %2156 = vmatmul.mubr.f32.gmra.mrb[0].mxu0 %v1991
    %v2157 = vpop.f32.mrb[0].mxu0
    %v2158 = vadd.f32 0.0, %v2157
    %v2159 = vpop.f32.mrb[0].mxu0
    %v2160 = vadd.f32 0.0, %v2159
    %2161 = vdwg.mxu0
    %v2162 = vadd.f32 %v2089, %v2158
    %v2163 = vadd.f32 %v2090, %v2160
    %v2164 = vxor.u32 %v2162, 2147483648
    %v2165 = vmul.f32 %v2164, 1.442695
    %v2166 = vpow.pop %v2165
    %v2167 = vadd.f32 %v2166, 1.0
    %v2168 = vrcp.pop %v2167
    %v2169 = vmul.f32 1.0, %v2168
    %v2170 = vtanh.pop %v2163
    %v2171 = vxor.u32 %v2163, 2147483648
    %v2172 = vmul.f32 %v2171, 1.442695
    %v2173 = vpow.pop %v2172
    %v2174 = vadd.f32 %v2173, 1.0
    %v2175 = vrcp.pop %v2174
    %v2176 = vmul.f32 1.0, %v2175
    %v2177 = vmul.f32 %v2169, %v1909
    %v2178 = vmul.f32 %v2169, %v2170
    %2180 = vrot.lane.b32.xlu0 %v2178, 64
    %v2181 = vpop.permute.xlu0 %2180
    %v2183 = vadd.f32 %v2177, %v2181
    %v2184 = vtanh.pop %v2183
    %v2185 = vmul.f32 %v2176, %v2184
    %2187 = vrot.lane.b32.xlu0 %v2087, 64
    %v2188 = vpop.permute.xlu0 %2187
    %v2189 = vsel %vm163, %v2188, 0
    %2191 = vmatprep.subr.mxu0 %v128
    %2192 = vmatpush1.msra.mxu0 %v127
    %2193 = vmatprep.subr.mxu0 %v130
    %2194 = vmatpush1.msra.mxu0 %v129
    %2195 = vmatprep.subr.mxu0 %v132
    %2196 = vmatpush1.msra.mxu0 %v131
    %2197 = vmatprep.subr.mxu0 %v134
    %2198 = vmatpush1.msra.mxu0 %v133
    %2199 = vmatprep.subr.mxu0 %v136
    %2200 = vmatpush1.msra.mxu0 %v135
    %2201 = vmatprep.subr.mxu0 %v138
    %2202 = vmatpush1.msra.mxu0 %v137
    %2203 = vmatprep.subr.mxu0 %v140
    %2204 = vmatpush1.msra.mxu0 %v139
    %2205 = vmatprep.subr.mxu0 %v142
    %2206 = vmatpush1.msra.mxu0 %v141
    %2207 = vmatprep.subr.mxu0 0.0
    %2208 = vmatpush1.msra.mxu0 0.0
    %2209 = vmatprep.subr.mxu0 0.0
    %2210 = vmatpush1.msra.mxu0 0.0
    %2211 = vmatprep.subr.mxu0 0.0
    %2212 = vmatpush1.msra.mxu0 0.0
    %2213 = vmatprep.subr.mxu0 0.0
    %2214 = vmatpush1.msra.mxu0 0.0
    %2215 = vmatprep.subr.mxu0 0.0
    %2216 = vmatpush1.msra.mxu0 0.0
    %2217 = vmatprep.subr.mxu0 0.0
    %2218 = vmatpush1.msra.mxu0 0.0
    %2219 = vmatprep.subr.mxu0 0.0
    %2220 = vmatpush1.msra.mxu0 0.0
    %2221 = vmatprep.subr.mxu0 0.0
    %2222 = vmatpush1.msra.mxu0 0.0
    %2223 = vmatprep.subr.mxu0 0.0
    %2224 = vmatpush1.msra.mxu0 0.0
    %2225 = vmatprep.subr.mxu0 0.0
    %2226 = vmatpush1.msra.mxu0 0.0
    %2227 = vmatprep.subr.mxu0 0.0
    %2228 = vmatpush1.msra.mxu0 0.0
    %2229 = vmatprep.subr.mxu0 0.0
    %2230 = vmatpush1.msra.mxu0 0.0
    %2231 = vmatprep.subr.mxu0 0.0
    %2232 = vmatpush1.msra.mxu0 0.0
    %2233 = vmatprep.subr.mxu0 0.0
    %2234 = vmatpush1.msra.mxu0 0.0
    %2235 = vmatprep.subr.mxu0 0.0
    %2236 = vmatpush1.msra.mxu0 0.0
    %2237 = vmatprep.subr.mxu0 0.0
    %2238 = vmatpush1.msra.mxu0 0.0
    %2239 = vmatprep.subr.mxu0 0.0
    %2240 = vmatpush1.msra.mxu0 0.0
    %2241 = vmatprep.subr.mxu0 0.0
    %2242 = vmatpush1.msra.mxu0 0.0
    %2243 = vmatprep.subr.mxu0 0.0
    %2244 = vmatpush1.msra.mxu0 0.0
    %2245 = vmatprep.subr.mxu0 0.0
    %2246 = vmatpush1.msra.mxu0 0.0
    %2247 = vmatprep.subr.mxu0 0.0
    %2248 = vmatpush1.msra.mxu0 0.0
    %2249 = vmatprep.subr.mxu0 0.0
    %2250 = vmatpush1.msra.mxu0 0.0
    %2251 = vmatprep.subr.mxu0 0.0
    %2252 = vmatpush1.msra.mxu0 0.0
    %2253 = vmatprep.subr.mxu0 0.0
    %2254 = vmatpush1.msra.mxu0 0.0
    %2255 = vmatprep.mubr.f32.mxu0 0.0
    %2256 = vmatmul.mubr.f32.gmra.mrb[0].mxu0 %v2189
    %v2257 = vpop.f32.mrb[0].mxu0
    %v2258 = vadd.f32 0.0, %v2257
    %v2259 = vpop.f32.mrb[0].mxu0
    %v2260 = vadd.f32 0.0, %v2259
    %2261 = vdwg.mxu0
    %2263 = vrot.lane.b32.xlu0 %v2185, 64
    %v2264 = vpop.permute.xlu0 %2263
    %v2265 = vsel %vm163, %v2264, 0
    %2267 = vmatprep.subr.mxu0 %v112
    %2268 = vmatpush1.msra.mxu0 %v111
    %2269 = vmatprep.subr.mxu0 %v114
    %2270 = vmatpush1.msra.mxu0 %v113
    %2271 = vmatprep.subr.mxu0 %v116
    %2272 = vmatpush1.msra.mxu0 %v115
    %2273 = vmatprep.subr.mxu0 %v118
    %2274 = vmatpush1.msra.mxu0 %v117
    %2275 = vmatprep.subr.mxu0 %v120
    %2276 = vmatpush1.msra.mxu0 %v119
    %2277 = vmatprep.subr.mxu0 %v122
    %2278 = vmatpush1.msra.mxu0 %v121
    %2279 = vmatprep.subr.mxu0 %v124
    %2280 = vmatpush1.msra.mxu0 %v123
    %2281 = vmatprep.subr.mxu0 %v126
    %2282 = vmatpush1.msra.mxu0 %v125
    %2283 = vmatprep.subr.mxu0 0.0
    %2284 = vmatpush1.msra.mxu0 0.0
    %2285 = vmatprep.subr.mxu0 0.0
    %2286 = vmatpush1.msra.mxu0 0.0
    %2287 = vmatprep.subr.mxu0 0.0
    %2288 = vmatpush1.msra.mxu0 0.0
    %2289 = vmatprep.subr.mxu0 0.0
    %2290 = vmatpush1.msra.mxu0 0.0
    %2291 = vmatprep.subr.mxu0 0.0
    %2292 = vmatpush1.msra.mxu0 0.0
    %2293 = vmatprep.subr.mxu0 0.0
    %2294 = vmatpush1.msra.mxu0 0.0
    %2295 = vmatprep.subr.mxu0 0.0
    %2296 = vmatpush1.msra.mxu0 0.0
    %2297 = vmatprep.subr.mxu0 0.0
    %2298 = vmatpush1.msra.mxu0 0.0
    %2299 = vmatprep.subr.mxu0 0.0
    %2300 = vmatpush1.msra.mxu0 0.0
    %2301 = vmatprep.subr.mxu0 0.0
    %2302 = vmatpush1.msra.mxu0 0.0
    %2303 = vmatprep.subr.mxu0 0.0
    %2304 = vmatpush1.msra.mxu0 0.0
    %2305 = vmatprep.subr.mxu0 0.0
    %2306 = vmatpush1.msra.mxu0 0.0
    %2307 = vmatprep.subr.mxu0 0.0
    %2308 = vmatpush1.msra.mxu0 0.0
    %2309 = vmatprep.subr.mxu0 0.0
    %2310 = vmatpush1.msra.mxu0 0.0
    %2311 = vmatprep.subr.mxu0 0.0
    %2312 = vmatpush1.msra.mxu0 0.0
    %2313 = vmatprep.subr.mxu0 0.0
    %2314 = vmatpush1.msra.mxu0 0.0
    %2315 = vmatprep.subr.mxu0 0.0
    %2316 = vmatpush1.msra.mxu0 0.0
    %2317 = vmatprep.subr.mxu0 0.0
    %2318 = vmatpush1.msra.mxu0 0.0
    %2319 = vmatprep.subr.mxu0 0.0
    %2320 = vmatpush1.msra.mxu0 0.0
    %2321 = vmatprep.subr.mxu0 0.0
    %2322 = vmatpush1.msra.mxu0 0.0
    %2323 = vmatprep.subr.mxu0 0.0
    %2324 = vmatpush1.msra.mxu0 0.0
    %2325 = vmatprep.subr.mxu0 0.0
    %2326 = vmatpush1.msra.mxu0 0.0
    %2327 = vmatprep.subr.mxu0 0.0
    %2328 = vmatpush1.msra.mxu0 0.0
    %2329 = vmatprep.subr.mxu0 0.0
    %2330 = vmatpush1.msra.mxu0 0.0
    %2331 = vmatprep.mubr.f32.mxu0 0.0
    %2332 = vmatmul.mubr.f32.gmra.mrb[0].mxu0 %v2265
    %v2333 = vpop.f32.mrb[0].mxu0
    %v2334 = vadd.f32 %v2258, %v2333
    %v2335 = vpop.f32.mrb[0].mxu0
    %v2336 = vadd.f32 %v2260, %v2335
    %2337 = vdwg.mxu0
    %v2338 = vadd.f32 %v2334, %v148
    %v2339 = vadd.f32 %v2336, %v152
    %v2340 = vxor.u32 %v2338, 2147483648
    %v2341 = vmul.f32 %v2340, 1.442695
    %v2342 = vpow.pop %v2341
    %v2343 = vadd.f32 %v2342, 1.0
    %v2344 = vrcp.pop %v2343
    %v2345 = vmul.f32 1.0, %v2344
    %v2346 = vtanh.pop %v2339
    %v2347 = vxor.u32 %v2339, 2147483648
    %v2348 = vmul.f32 %v2347, 1.442695
    %v2349 = vpow.pop %v2348
    %v2350 = vadd.f32 %v2349, 1.0
    %v2351 = vrcp.pop %v2350
    %v2352 = vmul.f32 1.0, %v2351
    %v2353 = vmul.f32 %v2345, %v2085
    %v2354 = vmul.f32 %v2345, %v2346
    %2356 = vrot.lane.b32.xlu0 %v2354, 64
    %v2357 = vpop.permute.xlu0 %2356
    %v2359 = vadd.f32 %v2353, %v2357
    %v2360 = vtanh.pop %v2359
    %v2361 = vmul.f32 %v2352, %v2360
    %2363 = vrot.lane.b32.xlu0 %v2361, 64
    %v2364 = vpop.permute.xlu0 %2363
    %2366 = vst.msk [vmem:[#allocation11] sm:$0xff] %vm163, %v2364
    // Predicated region
    $region50: #{tpu_custom_call.1} parent=1 // pred_check
      _
    $region51: #{tpu_custom_call.1} parent=1 // pred_check_branch
      %2368 = sbr.rel (0) target = $region53
    $region52: #{tpu_custom_call.1} parent=1 // pred_region
      %s2370 = ssub.s32 128, 128
      %2371 = vsyncadd [#allocation4], %s2370
      %s2373 = sshll.u32 [#allocation11], 4
      %s2374 = int_to_ptr.vmem [resolvable:$true] %s2373
      %2376 = dma.vmem_to_hbm [thread:$0]  %s2374, 128, %s7, [#allocation4]
    $region53: #{tpu_custom_call.1} parent=1 // pred_fallthru
      _
    // Predicated region
    $region54: #{tpu_custom_call.1} parent=1 // pred_check
      _
    $region55: #{tpu_custom_call.1} parent=1 // pred_check_branch
      %2378 = sbr.rel (0) target = $region57
    $region56: #{tpu_custom_call.1} parent=1 // pred_region
      %2379 = dma.done [#allocation4], 128
    $region57: #{tpu_custom_call.1} parent=1 // pred_fallthru
      _
    %2380 = vsyncpa [#allocation3], 1
    %2381 = vsyncpa [#allocation6], 1
    %2382 = vsyncpa [#allocation9], 1
    %2383 = vsyncpa [#allocation4], 1

</llo_original>
